<compile_context>
chip_gen: v6e
topology: v6e:2x2x1
jax: 0.10.0
libtpu: 0.0.40
codegen_flags: <defaults>
</compile_context>

<pallas_src>
import math

import numpy as np

import jax
import jax.numpy as jnp
from jax.experimental import pallas as pl
from jax.experimental.pallas import tpu as pltpu

D_MODEL = 32
NHEAD = 4
HEAD_DIM = D_MODEL // NHEAD
DIM_FF = 64
LN_EPS = 1e-5
NEG_BIG = -1e30

_VMEM = pl.BlockSpec(memory_space=pltpu.MemorySpace.VMEM)


# ----------------------------- fused decoder-layer kernel -----------------------------

def _build_kernel(has_qpos: bool, has_pos: bool):
    """Kernel specialized at trace time on whether query_pos / pos are present."""

    def kernel(*refs):
        it = iter(refs)
        tgt_ref = next(it)                       # (S, B, D)
        mem_ref = next(it)                       # (Sm, B, D)
        qpos_ref = next(it) if has_qpos else None
        pos_ref = next(it) if has_pos else None
        (self_bias_ref,    # (N, N)  0 / -1e30 : causal AND same-batch
         cross_bias_ref,   # (N, M)  0 / -1e30 : same-batch
         head_mask_ref,    # (H, D)  0/1 lane masks, row h has ones in lanes h*Hd..(h+1)*Hd
         sa_w_ref,         # (2D, 3D) blockdiag([Wq|Wk], Wv)   (custom attn: x @ W)
         sa_b_ref,         # (1, 4D)  [bq | bk | bv | b_out]
         sa_out_w_ref,     # (D, D)   out_proj.weight.T
         ca_q_w_ref,       # (D, D)   Wq^T                      (nn.MHA: x @ W^T)
         ca_kv_w_ref,      # (2D, 2D) blockdiag(Wk^T, Wv^T)
         ca_out_w_ref,     # (D, D)   out_proj.weight.T
         ca_b_ref,         # (1, 4D)  [bq | bk | bv | b_out]
         l1_w_ref,         # (D, F)   linear1.weight.T
         l2_w_ref,         # (F, D)   linear2.weight.T
         ff_b_ref,         # (1, F+D) [b1 | b2]
         ln_g_ref,         # (3, D)   [norm1, norm3, norm4] gammas
         ln_b_ref,         # (3, D)   betas
         out_ref,          # (S, B, D)
         ) = tuple(it)

        f32 = jnp.float32
        S, B, D = tgt_ref.shape
        Sm = mem_ref.shape[0]
        N = S * B
        M = Sm * B
        H = NHEAD
        Hd = D // H
        F = l1_w_ref.shape[1]

        def layer_norm(h, g, beta):
            # single-pass: var = E[x^2] - mean^2
            mean = jnp.mean(h, axis=-1, keepdims=True)
            msq = jnp.mean(h * h, axis=-1, keepdims=True)
            var = msq - mean * mean
            return (h - mean) * jax.lax.rsqrt(var + LN_EPS) * g + beta

        def softmax_rows(s):
            m = jnp.max(s, axis=-1, keepdims=True)
            p = jnp.exp(s - m)
            denom = jnp.sum(p, axis=-1, keepdims=True)
            return p * pl.reciprocal(denom, approx=True)

        def masked_mha(q, k, v, bias, scale):
            """Multi-head attention over all B*rows jointly.

            The batch structure is enforced by the additive `bias` (disallowed pairs = -1e30);
            the head structure is enforced by lane-dense 0/1 head masks, so every matmul is a
            plain 2-D lane-dense MXU op (no per-head lane slices, no scratch stores)."""
            ctx = jnp.zeros(q.shape, f32)
            for h in range(H):                                   # H=4, unrolled at trace time
                mh = head_mask_ref[h:h + 1, :]                   # (1, D)
                s_h = jax.lax.dot_general(                       # q_h @ k_h^T  (full width)
                    q * mh, k, (((1,), (1,)), ((), ())),
                    preferred_element_type=f32) * scale + bias
                p_h = softmax_rows(s_h)
                ctx = ctx + jnp.dot(p_h, v * mh, preferred_element_type=f32)
            return ctx

        # residual stream in native seq-major flattening: row r = s*B + b
        x = tgt_ref[...].reshape(N, D).astype(f32)
        mem = mem_ref[...].reshape(M, D).astype(f32)
        qpos = qpos_ref[...].reshape(N, D).astype(f32) if has_qpos else None

        sa_b = sa_b_ref[...]
        ca_b = ca_b_ref[...]
        ln_g = ln_g_ref[...]
        ln_b = ln_b_ref[...]

        # ---- 1) self-attention (custom MHA, causal, softmax_scale = sqrt(head_dim) as written) ----
        x_q = (x + qpos) if has_qpos else x
        qkv = jnp.dot(jnp.concatenate([x_q, x], axis=-1), sa_w_ref[...],
                      preferred_element_type=f32) + sa_b[:, 0:3 * D]        # (N, 3D)
        ctx = masked_mha(qkv[:, 0:D], qkv[:, D:2 * D], qkv[:, 2 * D:3 * D],
                         self_bias_ref[...], float(Hd) ** 0.5)
        sa_out = jnp.dot(ctx, sa_out_w_ref[...], preferred_element_type=f32) + sa_b[:, 3 * D:4 * D]
        h1 = layer_norm(x + sa_out, ln_g[0:1, :], ln_b[0:1, :])             # dropout_add (eval) + norm1

        # ---- 2) cross-attention with image memory (standard nn.MultiheadAttention) ----
        mem_k = (mem + pos_ref[...].reshape(M, D).astype(f32)) if has_pos else mem
        kv = jnp.dot(jnp.concatenate([mem_k, mem], axis=-1), ca_kv_w_ref[...],
                     preferred_element_type=f32) + ca_b[:, D:3 * D]         # (M, 2D) = [k | v]
        q_in = (h1 + qpos) if has_qpos else h1
        qc = jnp.dot(q_in, ca_q_w_ref[...], preferred_element_type=f32) + ca_b[:, 0:D]
        ctx2 = masked_mha(qc, kv[:, 0:D], kv[:, D:2 * D],
                          cross_bias_ref[...], 1.0 / (float(Hd) ** 0.5))
        ca_out = jnp.dot(ctx2, ca_out_w_ref[...], preferred_element_type=f32) + ca_b[:, 3 * D:4 * D]
        h2 = layer_norm(h1 + ca_out, ln_g[1:2, :], ln_b[1:2, :])            # + norm3

        # ---- 3) feed-forward ----
        ff_b = ff_b_ref[...]
        hid = jnp.maximum(
            jnp.dot(h2, l1_w_ref[...], preferred_element_type=f32) + ff_b[:, 0:F], 0.0)
        ffn_out = jnp.dot(hid, l2_w_ref[...], preferred_element_type=f32) + ff_b[:, F:F + D]
        h3 = layer_norm(h2 + ffn_out, ln_g[2:3, :], ln_b[2:3, :])           # + norm4

        out_ref[...] = h3.reshape(S, B, D).astype(out_ref.dtype)

    return kernel


# ----------------------------- mask-bias constants (trace-time, tiny) -----------------------------

def _self_attention_bias(S, B):
    """(S*B, S*B) additive bias: 0 where same batch AND causal, -1e30 otherwise."""
    N = S * B
    r = np.arange(N)
    same_batch = (r[:, None] % B) == (r[None, :] % B)
    causal = r[None, :] <= r[:, None]          # same residue => col <= row  <=>  s_k <= s_q
    return jnp.asarray(np.where(same_batch & causal, 0.0, NEG_BIG), dtype=jnp.float32)


def _cross_attention_bias(S, Sm, B):
    """(S*B, Sm*B) additive bias: 0 where same batch, -1e30 otherwise."""
    rq = np.arange(S * B)
    rk = np.arange(Sm * B)
    same_batch = (rq[:, None] % B) == (rk[None, :] % B)
    return jnp.asarray(np.where(same_batch, 0.0, NEG_BIG), dtype=jnp.float32)


# ----------------------------- wrapper -----------------------------

def decoder_layer_forward(params, tgt, memory, pos=None, query_pos=None):
    """tgt:(S,B,D) memory:(Sm,B,D) -> (S,B,D).  Single fused, gridless pallas_call.

    No wrapper-side transposes / zero tensors: inputs go to the kernel in their native layout,
    the output comes back in (S,B,D) directly, and None pos/query_pos specialize the kernel."""
    S, B, D = tgt.shape
    Sm = memory.shape[0]
    has_qpos = query_pos is not None
    has_pos = pos is not None

    inputs = [tgt, memory]
    if has_qpos:
        inputs.append(query_pos)
    if has_pos:
        inputs.append(pos)
    inputs += [
        _self_attention_bias(S, B), _cross_attention_bias(S, Sm, B),
        params["head_mask"],
        params["sa_w"], params["sa_b"], params["sa_out_wT"],
        params["ca_q_wT"], params["ca_kv_wT"], params["ca_out_wT"], params["ca_b"],
        params["l1_wT"], params["l2_wT"], params["ff_b"],
        params["ln_g"], params["ln_b"],
    ]

    # Whole problem resident in VMEM (~60 KiB) -> no grid, no tiling, no extra buffering.
    # TODO(synk): on v7x, grid=(B,) + dimension_semantics=("parallel",) would use both TCs.
    return pl.pallas_call(
        _build_kernel(has_qpos, has_pos),
        out_shape=jax.ShapeDtypeStruct((S, B, D), jnp.float32),
        in_specs=[_VMEM] * len(inputs),
        out_specs=_VMEM,
    )(*inputs)


# ----------------------------- parameters -----------------------------

def init_params(key):
    """Raw parameters in PyTorch layout (same as the nn.Module)."""
    ks = jax.random.split(key, 20)
    n = lambda k, shape, s=0.05: jax.random.normal(k, shape, jnp.float32) * s
    D, F = D_MODEL, DIM_FF
    return {
        # custom self-attn MultiheadAttention
        "sa_in_w": n(ks[0], (3, D, D)),
        "sa_in_b": n(ks[1], (3, D)),
        "sa_out_w": n(ks[2], (D, D)),          # torch Linear weight (out,in)
        "sa_out_b": n(ks[3], (D,)),
        # nn.MultiheadAttention (cross)
        "ca_in_w": n(ks[4], (3 * D, D)),
        "ca_in_b": n(ks[5], (3 * D,)),
        "ca_out_w": n(ks[6], (D, D)),
        "ca_out_b": n(ks[7], (D,)),
        # FFN
        "l1_w": n(ks[8], (F, D)),
        "l1_b": n(ks[9], (F,)),
        "l2_w": n(ks[10], (D, F)),
        "l2_b": n(ks[11], (D,)),
        # LayerNorms
        "ln1_g": jnp.ones((D,), jnp.float32) + n(ks[12], (D,), 0.01),
        "ln1_b": n(ks[13], (D,), 0.01),
        "ln3_g": jnp.ones((D,), jnp.float32) + n(ks[14], (D,), 0.01),
        "ln3_b": n(ks[15], (D,), 0.01),
        "ln4_g": jnp.ones((D,), jnp.float32) + n(ks[16], (D,), 0.01),
        "ln4_b": n(ks[17], (D,), 0.01),
    }


def prepare_params(raw):
    """One-time packing / pre-transposition for the fused kernel (done at init, not per call)."""
    D, F, H = D_MODEL, DIM_FF, NHEAD
    Hd = D // H

    Wq, Wk, Wv = raw["sa_in_w"][0], raw["sa_in_w"][1], raw["sa_in_w"][2]
    bq, bk, bv = raw["sa_in_b"][0], raw["sa_in_b"][1], raw["sa_in_b"][2]

    # self-attn: input packed [x+qpos | x]; blockdiag so q,k use (x+qpos), v uses x
    sa_w = jnp.zeros((2 * D, 3 * D), jnp.float32)
    sa_w = sa_w.at[:D, 0:D].set(Wq)
    sa_w = sa_w.at[:D, D:2 * D].set(Wk)
    sa_w = sa_w.at[D:, 2 * D:3 * D].set(Wv)

    # cross-attn k/v: input packed [mem+pos | mem]; blockdiag(Wk^T, Wv^T)
    Wc, bc = raw["ca_in_w"], raw["ca_in_b"]
    ca_kv_w = jnp.zeros((2 * D, 2 * D), jnp.float32)
    ca_kv_w = ca_kv_w.at[:D, 0:D].set(Wc[D:2 * D].T)
    ca_kv_w = ca_kv_w.at[D:, D:2 * D].set(Wc[2 * D:].T)

    # lane-dense per-head 0/1 masks: row h selects lanes [h*Hd, (h+1)*Hd)
    head_mask = jnp.asarray(np.repeat(np.eye(H, dtype=np.float32), Hd, axis=1))

    return {
        "head_mask": head_mask,                                             # (H, D)
        "sa_w": sa_w,                                                       # (2D, 3D)
        "sa_b": jnp.concatenate([bq, bk, bv, raw["sa_out_b"]])[None, :],    # (1, 4D)
        "sa_out_wT": raw["sa_out_w"].T,                                     # (D, D)
        "ca_q_wT": Wc[:D].T,                                                # (D, D)
        "ca_kv_wT": ca_kv_w,                                                # (2D, 2D)
        "ca_out_wT": raw["ca_out_w"].T,                                     # (D, D)
        "ca_b": jnp.concatenate([bc, raw["ca_out_b"]])[None, :],            # (1, 4D)
        "l1_wT": raw["l1_w"].T,                                             # (D, F)
        "l2_wT": raw["l2_w"].T,                                             # (F, D)
        "ff_b": jnp.concatenate([raw["l1_b"], raw["l2_b"]])[None, :],       # (1, F+D)
        "ln_g": jnp.stack([raw["ln1_g"], raw["ln3_g"], raw["ln4_g"]]),      # (3, D)
        "ln_b": jnp.stack([raw["ln1_b"], raw["ln3_b"], raw["ln4_b"]]),      # (3, D)
    }


# ----------------------------- pure-JAX reference (for validation) -----------------------------

def _reference_forward(raw, tgt, memory, pos, query_pos):
    S, B, D = tgt.shape
    H, Hd = NHEAD, HEAD_DIM

    def ln(x, g, b):
        mu = x.mean(-1, keepdims=True)
        var = ((x - mu) ** 2).mean(-1, keepdims=True)
        return (x - mu) / jnp.sqrt(var + LN_EPS) * g + b

    def heads(x):        # (S', B, D) -> (B, H, S', Hd)
        s = x.shape[0]
        return x.reshape(s, B, H, Hd).transpose(1, 2, 0, 3)

    def unheads(x):      # (B, H, S, Hd) -> (S, B, D)
        return x.transpose(2, 0, 1, 3).reshape(-1, B, D)

    qk_in = tgt + query_pos
    q = qk_in @ raw["sa_in_w"][0] + raw["sa_in_b"][0]
    k = qk_in @ raw["sa_in_w"][1] + raw["sa_in_b"][1]
    v = tgt @ raw["sa_in_w"][2] + raw["sa_in_b"][2]
    s = jnp.einsum('bhqd,bhkd->bhqk', heads(q), heads(k)) * math.sqrt(Hd)
    mask = jnp.triu(jnp.ones((S, S), bool), 1)
    s = jnp.where(mask, -jnp.inf, s)
    ctx = unheads(jnp.einsum('bhqk,bhkd->bhqd', jax.nn.softmax(s, -1), heads(v)))
    x1 = ln(tgt + ctx @ raw["sa_out_w"].T + raw["sa_out_b"], raw["ln1_g"], raw["ln1_b"])

    Wc, bc = raw["ca_in_w"], raw["ca_in_b"]
    qc = (x1 + query_pos) @ Wc[:D].T + bc[:D]
    kc = (memory + pos) @ Wc[D:2 * D].T + bc[D:2 * D]
    vc = memory @ Wc[2 * D:].T + bc[2 * D:]
    s2 = jnp.einsum('bhqd,bhkd->bhqk', heads(qc), heads(kc)) / math.sqrt(Hd)
    ctx2 = unheads(jnp.einsum('bhqk,bhkd->bhqd', jax.nn.softmax(s2, -1), heads(vc)))
    x2 = ln(x1 + ctx2 @ raw["ca_out_w"].T + raw["ca_out_b"], raw["ln3_g"], raw["ln3_b"])

    hid = jnp.maximum(x2 @ raw["l1_w"].T + raw["l1_b"], 0.0)
    x3 = ln(x2 + hid @ raw["l2_w"].T + raw["l2_b"], raw["ln4_g"], raw["ln4_b"])
    return x3


# ----------------------------- main -----------------------------

if __name__ == "__main__":
    key = jax.random.PRNGKey(0)
    k_p, k_t, k_m, k_qp, k_pp = jax.random.split(key, 5)

    S, Sm, B = 8, 12, 2   # tgt seq, memory seq, batch
    raw = init_params(k_p)
    params = prepare_params(raw)

    tgt = jax.random.normal(k_t, (S, B, D_MODEL), jnp.float32)
    memory = jax.random.normal(k_m, (Sm, B, D_MODEL), jnp.float32)
    query_pos = jax.random.normal(k_qp, (S, B, D_MODEL), jnp.float32)
    pos = jax.random.normal(k_pp, (Sm, B, D_MODEL), jnp.float32)

    fwd = jax.jit(decoder_layer_forward)
    out = jax.block_until_ready(fwd(params, tgt, memory, pos, query_pos))
    assert out.shape == (S, B, D_MODEL) and out.dtype == jnp.float32

    ref = _reference_forward(raw, tgt, memory, pos, query_pos)
    max_err = float(jnp.max(jnp.abs(out - ref)))
    # 2e-3 headroom for the approx (EUP) reciprocal in the softmax denominator; observed error
    # is typically well below 1e-3.
    assert max_err < 2e-3, f"mismatch vs reference: max abs err {max_err}"

    print("KERNEL_OK")
</pallas_src>

<mosaic_0001>
module attributes {stable_mosaic.version = 11 : i64} {
  func.func @kernel(%arg0: memref<8x2x32xf32, #tpu.memory_space<vmem>>, %arg1: memref<12x2x32xf32, #tpu.memory_space<vmem>>, %arg2: memref<8x2x32xf32, #tpu.memory_space<vmem>>, %arg3: memref<12x2x32xf32, #tpu.memory_space<vmem>>, %arg4: memref<16x16xf32, #tpu.memory_space<vmem>>, %arg5: memref<16x24xf32, #tpu.memory_space<vmem>>, %arg6: memref<4x32xf32, #tpu.memory_space<vmem>>, %arg7: memref<64x96xf32, #tpu.memory_space<vmem>>, %arg8: memref<1x128xf32, #tpu.memory_space<vmem>>, %arg9: memref<32x32xf32, #tpu.memory_space<vmem>>, %arg10: memref<32x32xf32, #tpu.memory_space<vmem>>, %arg11: memref<64x64xf32, #tpu.memory_space<vmem>>, %arg12: memref<32x32xf32, #tpu.memory_space<vmem>>, %arg13: memref<1x128xf32, #tpu.memory_space<vmem>>, %arg14: memref<32x64xf32, #tpu.memory_space<vmem>>, %arg15: memref<64x32xf32, #tpu.memory_space<vmem>>, %arg16: memref<1x96xf32, #tpu.memory_space<vmem>>, %arg17: memref<3x32xf32, #tpu.memory_space<vmem>>, %arg18: memref<3x32xf32, #tpu.memory_space<vmem>>, %arg19: memref<8x2x32xf32, #tpu.memory_space<vmem>>) attributes {dimension_semantics = [], scalar_prefetch = 0 : i64, scratch_operands = 0 : i64, tpu.core_type = #tpu.core_type<tc>} {
    %c0 = arith.constant 0 : index
    %c0_0 = arith.constant 0 : index
    %c0_1 = arith.constant 0 : index
    %0 = vector.load %arg0[%c0, %c0_0, %c0_1] : memref<8x2x32xf32, #tpu.memory_space<vmem>>, vector<8x2x32xf32>
    %1 = vector.shape_cast %0 : vector<8x2x32xf32> to vector<16x32xf32>
    %c0_2 = arith.constant 0 : index
    %c0_3 = arith.constant 0 : index
    %c0_4 = arith.constant 0 : index
    %2 = vector.load %arg1[%c0_2, %c0_3, %c0_4] : memref<12x2x32xf32, #tpu.memory_space<vmem>>, vector<12x2x32xf32>
    %3 = vector.shape_cast %2 : vector<12x2x32xf32> to vector<24x32xf32>
    %c0_5 = arith.constant 0 : index
    %c0_6 = arith.constant 0 : index
    %c0_7 = arith.constant 0 : index
    %4 = vector.load %arg2[%c0_5, %c0_6, %c0_7] : memref<8x2x32xf32, #tpu.memory_space<vmem>>, vector<8x2x32xf32>
    %5 = vector.shape_cast %4 : vector<8x2x32xf32> to vector<16x32xf32>
    %c0_8 = arith.constant 0 : index
    %c0_9 = arith.constant 0 : index
    %6 = vector.load %arg8[%c0_8, %c0_9] : memref<1x128xf32, #tpu.memory_space<vmem>>, vector<1x128xf32>
    %c0_10 = arith.constant 0 : index
    %c0_11 = arith.constant 0 : index
    %7 = vector.load %arg13[%c0_10, %c0_11] : memref<1x128xf32, #tpu.memory_space<vmem>>, vector<1x128xf32>
    %c0_12 = arith.constant 0 : index
    %c0_13 = arith.constant 0 : index
    %8 = vector.load %arg17[%c0_12, %c0_13] : memref<3x32xf32, #tpu.memory_space<vmem>>, vector<3x32xf32>
    %c0_14 = arith.constant 0 : index
    %c0_15 = arith.constant 0 : index
    %9 = vector.load %arg18[%c0_14, %c0_15] : memref<3x32xf32, #tpu.memory_space<vmem>>, vector<3x32xf32>
    %10 = arith.addf %1, %5 : vector<16x32xf32>
    %11 = tpu.concatenate %10, %1 in 1 : vector<16x32xf32>, vector<16x32xf32> -> vector<16x64xf32>
    %c0_16 = arith.constant 0 : index
    %c0_17 = arith.constant 0 : index
    %12 = vector.load %arg7[%c0_16, %c0_17] : memref<64x96xf32, #tpu.memory_space<vmem>>, vector<64x96xf32>
    %cst = arith.constant dense<0.000000e+00> : vector<16x96xf32>
    %13 = tpu.matmul %11, %12, %cst {dimension_numbers = #tpu.dot_dimension_numbers<[1], [0], [0], [1], [0, 0, 1, 1], [], []>} : vector<16x64xf32>, vector<64x96xf32>, vector<16x96xf32> -> vector<16x96xf32>
    %14 = vector.extract_strided_slice %6 {offsets = [0, 0], sizes = [1, 96], strides = [1, 1]} : vector<1x128xf32> to vector<1x96xf32>
    %15 = vector.broadcast %14 : vector<1x96xf32> to vector<16x96xf32>
    %16 = arith.addf %13, %15 : vector<16x96xf32>
    %17 = vector.extract_strided_slice %16 {offsets = [0, 0], sizes = [16, 32], strides = [1, 1]} : vector<16x96xf32> to vector<16x32xf32>
    %18 = vector.extract_strided_slice %16 {offsets = [0, 32], sizes = [16, 32], strides = [1, 1]} : vector<16x96xf32> to vector<16x32xf32>
    %19 = vector.extract_strided_slice %16 {offsets = [0, 64], sizes = [16, 32], strides = [1, 1]} : vector<16x96xf32> to vector<16x32xf32>
    %c0_18 = arith.constant 0 : index
    %c0_19 = arith.constant 0 : index
    %20 = vector.load %arg4[%c0_18, %c0_19] : memref<16x16xf32, #tpu.memory_space<vmem>>, vector<16x16xf32>
    %cst_20 = arith.constant 0.000000e+00 : f32
    %21 = vector.broadcast %cst_20 : f32 to vector<16x32xf32>
    %c0_21 = arith.constant 0 : index
    %c0_22 = arith.constant 0 : index
    %22 = vector.load %arg6[%c0_21, %c0_22] : memref<4x32xf32, #tpu.memory_space<vmem>>, vector<1x32xf32>
    %23 = vector.broadcast %22 : vector<1x32xf32> to vector<16x32xf32>
    %24 = arith.mulf %17, %23 : vector<16x32xf32>
    %cst_23 = arith.constant dense<0.000000e+00> : vector<16x16xf32>
    %25 = tpu.matmul %24, %18, %cst_23 {dimension_numbers = #tpu.dot_dimension_numbers<[1], [1], [0], [0], [0, 0, 1, 0], [], []>} : vector<16x32xf32>, vector<16x32xf32>, vector<16x16xf32> -> vector<16x16xf32>
    %cst_24 = arith.constant 2.82842708 : f32
    %26 = vector.broadcast %cst_24 : f32 to vector<16x16xf32>
    %27 = arith.mulf %25, %26 : vector<16x16xf32>
    %28 = arith.addf %27, %20 : vector<16x16xf32>
    %cst_25 = arith.constant dense<0xFF800000> : vector<16xf32>
    %29 = vector.multi_reduction <maximumf>, %28, %cst_25 [1] : vector<16x16xf32> to vector<16xf32>
    %30 = vector.shape_cast %29 : vector<16xf32> to vector<16x1xf32>
    %31 = vector.broadcast %30 : vector<16x1xf32> to vector<16x16xf32>
    %32 = arith.subf %28, %31 : vector<16x16xf32>
    %33 = math.exp %32 : vector<16x16xf32>
    %cst_26 = arith.constant dense<0.000000e+00> : vector<16xf32>
    %34 = vector.multi_reduction <add>, %33, %cst_26 [1] : vector<16x16xf32> to vector<16xf32>
    %35 = vector.shape_cast %34 : vector<16xf32> to vector<16x1xf32>
    %36 = tpu.reciprocal %35 {approx = true} : vector<16x1xf32> -> vector<16x1xf32>
    %37 = vector.broadcast %36 : vector<16x1xf32> to vector<16x16xf32>
    %38 = arith.mulf %33, %37 : vector<16x16xf32>
    %39 = vector.broadcast %22 : vector<1x32xf32> to vector<16x32xf32>
    %40 = arith.mulf %19, %39 : vector<16x32xf32>
    %cst_27 = arith.constant dense<0.000000e+00> : vector<16x32xf32>
    %41 = tpu.matmul %38, %40, %cst_27 {dimension_numbers = #tpu.dot_dimension_numbers<[1], [0], [0], [1], [0, 0, 1, 1], [], []>} : vector<16x16xf32>, vector<16x32xf32>, vector<16x32xf32> -> vector<16x32xf32>
    %42 = arith.addf %21, %41 : vector<16x32xf32>
    %c1 = arith.constant 1 : index
    %c0_28 = arith.constant 0 : index
    %43 = vector.load %arg6[%c1, %c0_28] : memref<4x32xf32, #tpu.memory_space<vmem>>, vector<1x32xf32>
    %44 = vector.broadcast %43 : vector<1x32xf32> to vector<16x32xf32>
    %45 = arith.mulf %17, %44 : vector<16x32xf32>
    %cst_29 = arith.constant dense<0.000000e+00> : vector<16x16xf32>
    %46 = tpu.matmul %45, %18, %cst_29 {dimension_numbers = #tpu.dot_dimension_numbers<[1], [1], [0], [0], [0, 0, 1, 0], [], []>} : vector<16x32xf32>, vector<16x32xf32>, vector<16x16xf32> -> vector<16x16xf32>
    %cst_30 = arith.constant 2.82842708 : f32
    %47 = vector.broadcast %cst_30 : f32 to vector<16x16xf32>
    %48 = arith.mulf %46, %47 : vector<16x16xf32>
    %49 = arith.addf %48, %20 : vector<16x16xf32>
    %cst_31 = arith.constant dense<0xFF800000> : vector<16xf32>
    %50 = vector.multi_reduction <maximumf>, %49, %cst_31 [1] : vector<16x16xf32> to vector<16xf32>
    %51 = vector.shape_cast %50 : vector<16xf32> to vector<16x1xf32>
    %52 = vector.broadcast %51 : vector<16x1xf32> to vector<16x16xf32>
    %53 = arith.subf %49, %52 : vector<16x16xf32>
    %54 = math.exp %53 : vector<16x16xf32>
    %cst_32 = arith.constant dense<0.000000e+00> : vector<16xf32>
    %55 = vector.multi_reduction <add>, %54, %cst_32 [1] : vector<16x16xf32> to vector<16xf32>
    %56 = vector.shape_cast %55 : vector<16xf32> to vector<16x1xf32>
    %57 = tpu.reciprocal %56 {approx = true} : vector<16x1xf32> -> vector<16x1xf32>
    %58 = vector.broadcast %57 : vector<16x1xf32> to vector<16x16xf32>
    %59 = arith.mulf %54, %58 : vector<16x16xf32>
    %60 = vector.broadcast %43 : vector<1x32xf32> to vector<16x32xf32>
    %61 = arith.mulf %19, %60 : vector<16x32xf32>
    %cst_33 = arith.constant dense<0.000000e+00> : vector<16x32xf32>
    %62 = tpu.matmul %59, %61, %cst_33 {dimension_numbers = #tpu.dot_dimension_numbers<[1], [0], [0], [1], [0, 0, 1, 1], [], []>} : vector<16x16xf32>, vector<16x32xf32>, vector<16x32xf32> -> vector<16x32xf32>
    %63 = arith.addf %42, %62 : vector<16x32xf32>
    %c2 = arith.constant 2 : index
    %c0_34 = arith.constant 0 : index
    %64 = vector.load %arg6[%c2, %c0_34] : memref<4x32xf32, #tpu.memory_space<vmem>>, vector<1x32xf32>
    %65 = vector.broadcast %64 : vector<1x32xf32> to vector<16x32xf32>
    %66 = arith.mulf %17, %65 : vector<16x32xf32>
    %cst_35 = arith.constant dense<0.000000e+00> : vector<16x16xf32>
    %67 = tpu.matmul %66, %18, %cst_35 {dimension_numbers = #tpu.dot_dimension_numbers<[1], [1], [0], [0], [0, 0, 1, 0], [], []>} : vector<16x32xf32>, vector<16x32xf32>, vector<16x16xf32> -> vector<16x16xf32>
    %cst_36 = arith.constant 2.82842708 : f32
    %68 = vector.broadcast %cst_36 : f32 to vector<16x16xf32>
    %69 = arith.mulf %67, %68 : vector<16x16xf32>
    %70 = arith.addf %69, %20 : vector<16x16xf32>
    %cst_37 = arith.constant dense<0xFF800000> : vector<16xf32>
    %71 = vector.multi_reduction <maximumf>, %70, %cst_37 [1] : vector<16x16xf32> to vector<16xf32>
    %72 = vector.shape_cast %71 : vector<16xf32> to vector<16x1xf32>
    %73 = vector.broadcast %72 : vector<16x1xf32> to vector<16x16xf32>
    %74 = arith.subf %70, %73 : vector<16x16xf32>
    %75 = math.exp %74 : vector<16x16xf32>
    %cst_38 = arith.constant dense<0.000000e+00> : vector<16xf32>
    %76 = vector.multi_reduction <add>, %75, %cst_38 [1] : vector<16x16xf32> to vector<16xf32>
    %77 = vector.shape_cast %76 : vector<16xf32> to vector<16x1xf32>
    %78 = tpu.reciprocal %77 {approx = true} : vector<16x1xf32> -> vector<16x1xf32>
    %79 = vector.broadcast %78 : vector<16x1xf32> to vector<16x16xf32>
    %80 = arith.mulf %75, %79 : vector<16x16xf32>
    %81 = vector.broadcast %64 : vector<1x32xf32> to vector<16x32xf32>
    %82 = arith.mulf %19, %81 : vector<16x32xf32>
    %cst_39 = arith.constant dense<0.000000e+00> : vector<16x32xf32>
    %83 = tpu.matmul %80, %82, %cst_39 {dimension_numbers = #tpu.dot_dimension_numbers<[1], [0], [0], [1], [0, 0, 1, 1], [], []>} : vector<16x16xf32>, vector<16x32xf32>, vector<16x32xf32> -> vector<16x32xf32>
    %84 = arith.addf %63, %83 : vector<16x32xf32>
    %c3 = arith.constant 3 : index
    %c0_40 = arith.constant 0 : index
    %85 = vector.load %arg6[%c3, %c0_40] : memref<4x32xf32, #tpu.memory_space<vmem>>, vector<1x32xf32>
    %86 = vector.broadcast %85 : vector<1x32xf32> to vector<16x32xf32>
    %87 = arith.mulf %17, %86 : vector<16x32xf32>
    %cst_41 = arith.constant dense<0.000000e+00> : vector<16x16xf32>
    %88 = tpu.matmul %87, %18, %cst_41 {dimension_numbers = #tpu.dot_dimension_numbers<[1], [1], [0], [0], [0, 0, 1, 0], [], []>} : vector<16x32xf32>, vector<16x32xf32>, vector<16x16xf32> -> vector<16x16xf32>
    %cst_42 = arith.constant 2.82842708 : f32
    %89 = vector.broadcast %cst_42 : f32 to vector<16x16xf32>
    %90 = arith.mulf %88, %89 : vector<16x16xf32>
    %91 = arith.addf %90, %20 : vector<16x16xf32>
    %cst_43 = arith.constant dense<0xFF800000> : vector<16xf32>
    %92 = vector.multi_reduction <maximumf>, %91, %cst_43 [1] : vector<16x16xf32> to vector<16xf32>
    %93 = vector.shape_cast %92 : vector<16xf32> to vector<16x1xf32>
    %94 = vector.broadcast %93 : vector<16x1xf32> to vector<16x16xf32>
    %95 = arith.subf %91, %94 : vector<16x16xf32>
    %96 = math.exp %95 : vector<16x16xf32>
    %cst_44 = arith.constant dense<0.000000e+00> : vector<16xf32>
    %97 = vector.multi_reduction <add>, %96, %cst_44 [1] : vector<16x16xf32> to vector<16xf32>
    %98 = vector.shape_cast %97 : vector<16xf32> to vector<16x1xf32>
    %99 = tpu.reciprocal %98 {approx = true} : vector<16x1xf32> -> vector<16x1xf32>
    %100 = vector.broadcast %99 : vector<16x1xf32> to vector<16x16xf32>
    %101 = arith.mulf %96, %100 : vector<16x16xf32>
    %102 = vector.broadcast %85 : vector<1x32xf32> to vector<16x32xf32>
    %103 = arith.mulf %19, %102 : vector<16x32xf32>
    %cst_45 = arith.constant dense<0.000000e+00> : vector<16x32xf32>
    %104 = tpu.matmul %101, %103, %cst_45 {dimension_numbers = #tpu.dot_dimension_numbers<[1], [0], [0], [1], [0, 0, 1, 1], [], []>} : vector<16x16xf32>, vector<16x32xf32>, vector<16x32xf32> -> vector<16x32xf32>
    %105 = arith.addf %84, %104 : vector<16x32xf32>
    %c0_46 = arith.constant 0 : index
    %c0_47 = arith.constant 0 : index
    %106 = vector.load %arg9[%c0_46, %c0_47] : memref<32x32xf32, #tpu.memory_space<vmem>>, vector<32x32xf32>
    %cst_48 = arith.constant dense<0.000000e+00> : vector<16x32xf32>
    %107 = tpu.matmul %105, %106, %cst_48 {dimension_numbers = #tpu.dot_dimension_numbers<[1], [0], [0], [1], [0, 0, 1, 1], [], []>} : vector<16x32xf32>, vector<32x32xf32>, vector<16x32xf32> -> vector<16x32xf32>
    %108 = vector.extract_strided_slice %6 {offsets = [0, 96], sizes = [1, 32], strides = [1, 1]} : vector<1x128xf32> to vector<1x32xf32>
    %109 = vector.broadcast %108 : vector<1x32xf32> to vector<16x32xf32>
    %110 = arith.addf %107, %109 : vector<16x32xf32>
    %111 = arith.addf %1, %110 : vector<16x32xf32>
    %112 = vector.extract_strided_slice %8 {offsets = [0, 0], sizes = [1, 32], strides = [1, 1]} : vector<3x32xf32> to vector<1x32xf32>
    %113 = vector.extract_strided_slice %9 {offsets = [0, 0], sizes = [1, 32], strides = [1, 1]} : vector<3x32xf32> to vector<1x32xf32>
    %cst_49 = arith.constant dense<0.000000e+00> : vector<16xf32>
    %114 = vector.multi_reduction <add>, %111, %cst_49 [1] : vector<16x32xf32> to vector<16xf32>
    %115 = vector.shape_cast %114 : vector<16xf32> to vector<16x1xf32>
    %cst_50 = arith.constant 3.200000e+01 : f32
    %116 = vector.broadcast %cst_50 : f32 to vector<16x1xf32>
    %117 = arith.divf %115, %116 : vector<16x1xf32>
    %118 = arith.mulf %111, %111 : vector<16x32xf32>
    %cst_51 = arith.constant dense<0.000000e+00> : vector<16xf32>
    %119 = vector.multi_reduction <add>, %118, %cst_51 [1] : vector<16x32xf32> to vector<16xf32>
    %120 = vector.shape_cast %119 : vector<16xf32> to vector<16x1xf32>
    %cst_52 = arith.constant 3.200000e+01 : f32
    %121 = vector.broadcast %cst_52 : f32 to vector<16x1xf32>
    %122 = arith.divf %120, %121 : vector<16x1xf32>
    %123 = arith.mulf %117, %117 : vector<16x1xf32>
    %124 = arith.subf %122, %123 : vector<16x1xf32>
    %125 = vector.broadcast %117 : vector<16x1xf32> to vector<16x32xf32>
    %126 = arith.subf %111, %125 : vector<16x32xf32>
    %cst_53 = arith.constant 9.99999974E-6 : f32
    %127 = vector.broadcast %cst_53 : f32 to vector<16x1xf32>
    %128 = arith.addf %124, %127 : vector<16x1xf32>
    %129 = math.rsqrt %128 : vector<16x1xf32>
    %130 = vector.broadcast %129 : vector<16x1xf32> to vector<16x32xf32>
    %131 = arith.mulf %126, %130 : vector<16x32xf32>
    %132 = vector.broadcast %112 : vector<1x32xf32> to vector<16x32xf32>
    %133 = arith.mulf %131, %132 : vector<16x32xf32>
    %134 = vector.broadcast %113 : vector<1x32xf32> to vector<16x32xf32>
    %135 = arith.addf %133, %134 : vector<16x32xf32>
    %c0_54 = arith.constant 0 : index
    %c0_55 = arith.constant 0 : index
    %c0_56 = arith.constant 0 : index
    %136 = vector.load %arg3[%c0_54, %c0_55, %c0_56] : memref<12x2x32xf32, #tpu.memory_space<vmem>>, vector<12x2x32xf32>
    %137 = vector.shape_cast %136 : vector<12x2x32xf32> to vector<24x32xf32>
    %138 = arith.addf %3, %137 : vector<24x32xf32>
    %139 = tpu.concatenate %138, %3 in 1 : vector<24x32xf32>, vector<24x32xf32> -> vector<24x64xf32>
    %c0_57 = arith.constant 0 : index
    %c0_58 = arith.constant 0 : index
    %140 = vector.load %arg11[%c0_57, %c0_58] : memref<64x64xf32, #tpu.memory_space<vmem>>, vector<64x64xf32>
    %cst_59 = arith.constant dense<0.000000e+00> : vector<24x64xf32>
    %141 = tpu.matmul %139, %140, %cst_59 {dimension_numbers = #tpu.dot_dimension_numbers<[1], [0], [0], [1], [0, 0, 1, 1], [], []>} : vector<24x64xf32>, vector<64x64xf32>, vector<24x64xf32> -> vector<24x64xf32>
    %142 = vector.extract_strided_slice %7 {offsets = [0, 32], sizes = [1, 64], strides = [1, 1]} : vector<1x128xf32> to vector<1x64xf32>
    %143 = vector.broadcast %142 : vector<1x64xf32> to vector<24x64xf32>
    %144 = arith.addf %141, %143 : vector<24x64xf32>
    %145 = arith.addf %135, %5 : vector<16x32xf32>
    %c0_60 = arith.constant 0 : index
    %c0_61 = arith.constant 0 : index
    %146 = vector.load %arg10[%c0_60, %c0_61] : memref<32x32xf32, #tpu.memory_space<vmem>>, vector<32x32xf32>
    %cst_62 = arith.constant dense<0.000000e+00> : vector<16x32xf32>
    %147 = tpu.matmul %145, %146, %cst_62 {dimension_numbers = #tpu.dot_dimension_numbers<[1], [0], [0], [1], [0, 0, 1, 1], [], []>} : vector<16x32xf32>, vector<32x32xf32>, vector<16x32xf32> -> vector<16x32xf32>
    %148 = vector.extract_strided_slice %7 {offsets = [0, 0], sizes = [1, 32], strides = [1, 1]} : vector<1x128xf32> to vector<1x32xf32>
    %149 = vector.broadcast %148 : vector<1x32xf32> to vector<16x32xf32>
    %150 = arith.addf %147, %149 : vector<16x32xf32>
    %151 = vector.extract_strided_slice %144 {offsets = [0, 0], sizes = [24, 32], strides = [1, 1]} : vector<24x64xf32> to vector<24x32xf32>
    %152 = vector.extract_strided_slice %144 {offsets = [0, 32], sizes = [24, 32], strides = [1, 1]} : vector<24x64xf32> to vector<24x32xf32>
    %c0_63 = arith.constant 0 : index
    %c0_64 = arith.constant 0 : index
    %153 = vector.load %arg5[%c0_63, %c0_64] : memref<16x24xf32, #tpu.memory_space<vmem>>, vector<16x24xf32>
    %cst_65 = arith.constant 0.000000e+00 : f32
    %154 = vector.broadcast %cst_65 : f32 to vector<16x32xf32>
    %c0_66 = arith.constant 0 : index
    %c0_67 = arith.constant 0 : index
    %155 = vector.load %arg6[%c0_66, %c0_67] : memref<4x32xf32, #tpu.memory_space<vmem>>, vector<1x32xf32>
    %156 = vector.broadcast %155 : vector<1x32xf32> to vector<16x32xf32>
    %157 = arith.mulf %150, %156 : vector<16x32xf32>
    %cst_68 = arith.constant dense<0.000000e+00> : vector<16x24xf32>
    %158 = tpu.matmul %157, %151, %cst_68 {dimension_numbers = #tpu.dot_dimension_numbers<[1], [1], [0], [0], [0, 0, 1, 0], [], []>} : vector<16x32xf32>, vector<24x32xf32>, vector<16x24xf32> -> vector<16x24xf32>
    %cst_69 = arith.constant 0.353553385 : f32
    %159 = vector.broadcast %cst_69 : f32 to vector<16x24xf32>
    %160 = arith.mulf %158, %159 : vector<16x24xf32>
    %161 = arith.addf %160, %153 : vector<16x24xf32>
    %cst_70 = arith.constant dense<0xFF800000> : vector<16xf32>
    %162 = vector.multi_reduction <maximumf>, %161, %cst_70 [1] : vector<16x24xf32> to vector<16xf32>
    %163 = vector.shape_cast %162 : vector<16xf32> to vector<16x1xf32>
    %164 = vector.broadcast %163 : vector<16x1xf32> to vector<16x24xf32>
    %165 = arith.subf %161, %164 : vector<16x24xf32>
    %166 = math.exp %165 : vector<16x24xf32>
    %cst_71 = arith.constant dense<0.000000e+00> : vector<16xf32>
    %167 = vector.multi_reduction <add>, %166, %cst_71 [1] : vector<16x24xf32> to vector<16xf32>
    %168 = vector.shape_cast %167 : vector<16xf32> to vector<16x1xf32>
    %169 = tpu.reciprocal %168 {approx = true} : vector<16x1xf32> -> vector<16x1xf32>
    %170 = vector.broadcast %169 : vector<16x1xf32> to vector<16x24xf32>
    %171 = arith.mulf %166, %170 : vector<16x24xf32>
    %172 = vector.broadcast %155 : vector<1x32xf32> to vector<24x32xf32>
    %173 = arith.mulf %152, %172 : vector<24x32xf32>
    %cst_72 = arith.constant dense<0.000000e+00> : vector<16x32xf32>
    %174 = tpu.matmul %171, %173, %cst_72 {dimension_numbers = #tpu.dot_dimension_numbers<[1], [0], [0], [1], [0, 0, 1, 1], [], []>} : vector<16x24xf32>, vector<24x32xf32>, vector<16x32xf32> -> vector<16x32xf32>
    %175 = arith.addf %154, %174 : vector<16x32xf32>
    %c1_73 = arith.constant 1 : index
    %c0_74 = arith.constant 0 : index
    %176 = vector.load %arg6[%c1_73, %c0_74] : memref<4x32xf32, #tpu.memory_space<vmem>>, vector<1x32xf32>
    %177 = vector.broadcast %176 : vector<1x32xf32> to vector<16x32xf32>
    %178 = arith.mulf %150, %177 : vector<16x32xf32>
    %cst_75 = arith.constant dense<0.000000e+00> : vector<16x24xf32>
    %179 = tpu.matmul %178, %151, %cst_75 {dimension_numbers = #tpu.dot_dimension_numbers<[1], [1], [0], [0], [0, 0, 1, 0], [], []>} : vector<16x32xf32>, vector<24x32xf32>, vector<16x24xf32> -> vector<16x24xf32>
    %cst_76 = arith.constant 0.353553385 : f32
    %180 = vector.broadcast %cst_76 : f32 to vector<16x24xf32>
    %181 = arith.mulf %179, %180 : vector<16x24xf32>
    %182 = arith.addf %181, %153 : vector<16x24xf32>
    %cst_77 = arith.constant dense<0xFF800000> : vector<16xf32>
    %183 = vector.multi_reduction <maximumf>, %182, %cst_77 [1] : vector<16x24xf32> to vector<16xf32>
    %184 = vector.shape_cast %183 : vector<16xf32> to vector<16x1xf32>
    %185 = vector.broadcast %184 : vector<16x1xf32> to vector<16x24xf32>
    %186 = arith.subf %182, %185 : vector<16x24xf32>
    %187 = math.exp %186 : vector<16x24xf32>
    %cst_78 = arith.constant dense<0.000000e+00> : vector<16xf32>
    %188 = vector.multi_reduction <add>, %187, %cst_78 [1] : vector<16x24xf32> to vector<16xf32>
    %189 = vector.shape_cast %188 : vector<16xf32> to vector<16x1xf32>
    %190 = tpu.reciprocal %189 {approx = true} : vector<16x1xf32> -> vector<16x1xf32>
    %191 = vector.broadcast %190 : vector<16x1xf32> to vector<16x24xf32>
    %192 = arith.mulf %187, %191 : vector<16x24xf32>
    %193 = vector.broadcast %176 : vector<1x32xf32> to vector<24x32xf32>
    %194 = arith.mulf %152, %193 : vector<24x32xf32>
    %cst_79 = arith.constant dense<0.000000e+00> : vector<16x32xf32>
    %195 = tpu.matmul %192, %194, %cst_79 {dimension_numbers = #tpu.dot_dimension_numbers<[1], [0], [0], [1], [0, 0, 1, 1], [], []>} : vector<16x24xf32>, vector<24x32xf32>, vector<16x32xf32> -> vector<16x32xf32>
    %196 = arith.addf %175, %195 : vector<16x32xf32>
    %c2_80 = arith.constant 2 : index
    %c0_81 = arith.constant 0 : index
    %197 = vector.load %arg6[%c2_80, %c0_81] : memref<4x32xf32, #tpu.memory_space<vmem>>, vector<1x32xf32>
    %198 = vector.broadcast %197 : vector<1x32xf32> to vector<16x32xf32>
    %199 = arith.mulf %150, %198 : vector<16x32xf32>
    %cst_82 = arith.constant dense<0.000000e+00> : vector<16x24xf32>
    %200 = tpu.matmul %199, %151, %cst_82 {dimension_numbers = #tpu.dot_dimension_numbers<[1], [1], [0], [0], [0, 0, 1, 0], [], []>} : vector<16x32xf32>, vector<24x32xf32>, vector<16x24xf32> -> vector<16x24xf32>
    %cst_83 = arith.constant 0.353553385 : f32
    %201 = vector.broadcast %cst_83 : f32 to vector<16x24xf32>
    %202 = arith.mulf %200, %201 : vector<16x24xf32>
    %203 = arith.addf %202, %153 : vector<16x24xf32>
    %cst_84 = arith.constant dense<0xFF800000> : vector<16xf32>
    %204 = vector.multi_reduction <maximumf>, %203, %cst_84 [1] : vector<16x24xf32> to vector<16xf32>
    %205 = vector.shape_cast %204 : vector<16xf32> to vector<16x1xf32>
    %206 = vector.broadcast %205 : vector<16x1xf32> to vector<16x24xf32>
    %207 = arith.subf %203, %206 : vector<16x24xf32>
    %208 = math.exp %207 : vector<16x24xf32>
    %cst_85 = arith.constant dense<0.000000e+00> : vector<16xf32>
    %209 = vector.multi_reduction <add>, %208, %cst_85 [1] : vector<16x24xf32> to vector<16xf32>
    %210 = vector.shape_cast %209 : vector<16xf32> to vector<16x1xf32>
    %211 = tpu.reciprocal %210 {approx = true} : vector<16x1xf32> -> vector<16x1xf32>
    %212 = vector.broadcast %211 : vector<16x1xf32> to vector<16x24xf32>
    %213 = arith.mulf %208, %212 : vector<16x24xf32>
    %214 = vector.broadcast %197 : vector<1x32xf32> to vector<24x32xf32>
    %215 = arith.mulf %152, %214 : vector<24x32xf32>
    %cst_86 = arith.constant dense<0.000000e+00> : vector<16x32xf32>
    %216 = tpu.matmul %213, %215, %cst_86 {dimension_numbers = #tpu.dot_dimension_numbers<[1], [0], [0], [1], [0, 0, 1, 1], [], []>} : vector<16x24xf32>, vector<24x32xf32>, vector<16x32xf32> -> vector<16x32xf32>
    %217 = arith.addf %196, %216 : vector<16x32xf32>
    %c3_87 = arith.constant 3 : index
    %c0_88 = arith.constant 0 : index
    %218 = vector.load %arg6[%c3_87, %c0_88] : memref<4x32xf32, #tpu.memory_space<vmem>>, vector<1x32xf32>
    %219 = vector.broadcast %218 : vector<1x32xf32> to vector<16x32xf32>
    %220 = arith.mulf %150, %219 : vector<16x32xf32>
    %cst_89 = arith.constant dense<0.000000e+00> : vector<16x24xf32>
    %221 = tpu.matmul %220, %151, %cst_89 {dimension_numbers = #tpu.dot_dimension_numbers<[1], [1], [0], [0], [0, 0, 1, 0], [], []>} : vector<16x32xf32>, vector<24x32xf32>, vector<16x24xf32> -> vector<16x24xf32>
    %cst_90 = arith.constant 0.353553385 : f32
    %222 = vector.broadcast %cst_90 : f32 to vector<16x24xf32>
    %223 = arith.mulf %221, %222 : vector<16x24xf32>
    %224 = arith.addf %223, %153 : vector<16x24xf32>
    %cst_91 = arith.constant dense<0xFF800000> : vector<16xf32>
    %225 = vector.multi_reduction <maximumf>, %224, %cst_91 [1] : vector<16x24xf32> to vector<16xf32>
    %226 = vector.shape_cast %225 : vector<16xf32> to vector<16x1xf32>
    %227 = vector.broadcast %226 : vector<16x1xf32> to vector<16x24xf32>
    %228 = arith.subf %224, %227 : vector<16x24xf32>
    %229 = math.exp %228 : vector<16x24xf32>
    %cst_92 = arith.constant dense<0.000000e+00> : vector<16xf32>
    %230 = vector.multi_reduction <add>, %229, %cst_92 [1] : vector<16x24xf32> to vector<16xf32>
    %231 = vector.shape_cast %230 : vector<16xf32> to vector<16x1xf32>
    %232 = tpu.reciprocal %231 {approx = true} : vector<16x1xf32> -> vector<16x1xf32>
    %233 = vector.broadcast %232 : vector<16x1xf32> to vector<16x24xf32>
    %234 = arith.mulf %229, %233 : vector<16x24xf32>
    %235 = vector.broadcast %218 : vector<1x32xf32> to vector<24x32xf32>
    %236 = arith.mulf %152, %235 : vector<24x32xf32>
    %cst_93 = arith.constant dense<0.000000e+00> : vector<16x32xf32>
    %237 = tpu.matmul %234, %236, %cst_93 {dimension_numbers = #tpu.dot_dimension_numbers<[1], [0], [0], [1], [0, 0, 1, 1], [], []>} : vector<16x24xf32>, vector<24x32xf32>, vector<16x32xf32> -> vector<16x32xf32>
    %238 = arith.addf %217, %237 : vector<16x32xf32>
    %c0_94 = arith.constant 0 : index
    %c0_95 = arith.constant 0 : index
    %239 = vector.load %arg12[%c0_94, %c0_95] : memref<32x32xf32, #tpu.memory_space<vmem>>, vector<32x32xf32>
    %cst_96 = arith.constant dense<0.000000e+00> : vector<16x32xf32>
    %240 = tpu.matmul %238, %239, %cst_96 {dimension_numbers = #tpu.dot_dimension_numbers<[1], [0], [0], [1], [0, 0, 1, 1], [], []>} : vector<16x32xf32>, vector<32x32xf32>, vector<16x32xf32> -> vector<16x32xf32>
    %241 = vector.extract_strided_slice %7 {offsets = [0, 96], sizes = [1, 32], strides = [1, 1]} : vector<1x128xf32> to vector<1x32xf32>
    %242 = vector.broadcast %241 : vector<1x32xf32> to vector<16x32xf32>
    %243 = arith.addf %240, %242 : vector<16x32xf32>
    %244 = arith.addf %135, %243 : vector<16x32xf32>
    %245 = vector.extract_strided_slice %8 {offsets = [1, 0], sizes = [1, 32], strides = [1, 1]} : vector<3x32xf32> to vector<1x32xf32>
    %246 = vector.extract_strided_slice %9 {offsets = [1, 0], sizes = [1, 32], strides = [1, 1]} : vector<3x32xf32> to vector<1x32xf32>
    %cst_97 = arith.constant dense<0.000000e+00> : vector<16xf32>
    %247 = vector.multi_reduction <add>, %244, %cst_97 [1] : vector<16x32xf32> to vector<16xf32>
    %248 = vector.shape_cast %247 : vector<16xf32> to vector<16x1xf32>
    %cst_98 = arith.constant 3.200000e+01 : f32
    %249 = vector.broadcast %cst_98 : f32 to vector<16x1xf32>
    %250 = arith.divf %248, %249 : vector<16x1xf32>
    %251 = arith.mulf %244, %244 : vector<16x32xf32>
    %cst_99 = arith.constant dense<0.000000e+00> : vector<16xf32>
    %252 = vector.multi_reduction <add>, %251, %cst_99 [1] : vector<16x32xf32> to vector<16xf32>
    %253 = vector.shape_cast %252 : vector<16xf32> to vector<16x1xf32>
    %cst_100 = arith.constant 3.200000e+01 : f32
    %254 = vector.broadcast %cst_100 : f32 to vector<16x1xf32>
    %255 = arith.divf %253, %254 : vector<16x1xf32>
    %256 = arith.mulf %250, %250 : vector<16x1xf32>
    %257 = arith.subf %255, %256 : vector<16x1xf32>
    %258 = vector.broadcast %250 : vector<16x1xf32> to vector<16x32xf32>
    %259 = arith.subf %244, %258 : vector<16x32xf32>
    %cst_101 = arith.constant 9.99999974E-6 : f32
    %260 = vector.broadcast %cst_101 : f32 to vector<16x1xf32>
    %261 = arith.addf %257, %260 : vector<16x1xf32>
    %262 = math.rsqrt %261 : vector<16x1xf32>
    %263 = vector.broadcast %262 : vector<16x1xf32> to vector<16x32xf32>
    %264 = arith.mulf %259, %263 : vector<16x32xf32>
    %265 = vector.broadcast %245 : vector<1x32xf32> to vector<16x32xf32>
    %266 = arith.mulf %264, %265 : vector<16x32xf32>
    %267 = vector.broadcast %246 : vector<1x32xf32> to vector<16x32xf32>
    %268 = arith.addf %266, %267 : vector<16x32xf32>
    %c0_102 = arith.constant 0 : index
    %c0_103 = arith.constant 0 : index
    %269 = vector.load %arg16[%c0_102, %c0_103] : memref<1x96xf32, #tpu.memory_space<vmem>>, vector<1x96xf32>
    %c0_104 = arith.constant 0 : index
    %c0_105 = arith.constant 0 : index
    %270 = vector.load %arg14[%c0_104, %c0_105] : memref<32x64xf32, #tpu.memory_space<vmem>>, vector<32x64xf32>
    %cst_106 = arith.constant dense<0.000000e+00> : vector<16x64xf32>
    %271 = tpu.matmul %268, %270, %cst_106 {dimension_numbers = #tpu.dot_dimension_numbers<[1], [0], [0], [1], [0, 0, 1, 1], [], []>} : vector<16x32xf32>, vector<32x64xf32>, vector<16x64xf32> -> vector<16x64xf32>
    %272 = vector.extract_strided_slice %269 {offsets = [0, 0], sizes = [1, 64], strides = [1, 1]} : vector<1x96xf32> to vector<1x64xf32>
    %273 = vector.broadcast %272 : vector<1x64xf32> to vector<16x64xf32>
    %274 = arith.addf %271, %273 : vector<16x64xf32>
    %cst_107 = arith.constant 0.000000e+00 : f32
    %275 = vector.broadcast %cst_107 : f32 to vector<16x64xf32>
    %276 = arith.maximumf %274, %275 : vector<16x64xf32>
    %c0_108 = arith.constant 0 : index
    %c0_109 = arith.constant 0 : index
    %277 = vector.load %arg15[%c0_108, %c0_109] : memref<64x32xf32, #tpu.memory_space<vmem>>, vector<64x32xf32>
    %cst_110 = arith.constant dense<0.000000e+00> : vector<16x32xf32>
    %278 = tpu.matmul %276, %277, %cst_110 {dimension_numbers = #tpu.dot_dimension_numbers<[1], [0], [0], [1], [0, 0, 1, 1], [], []>} : vector<16x64xf32>, vector<64x32xf32>, vector<16x32xf32> -> vector<16x32xf32>
    %279 = vector.extract_strided_slice %269 {offsets = [0, 64], sizes = [1, 32], strides = [1, 1]} : vector<1x96xf32> to vector<1x32xf32>
    %280 = vector.broadcast %279 : vector<1x32xf32> to vector<16x32xf32>
    %281 = arith.addf %278, %280 : vector<16x32xf32>
    %282 = arith.addf %268, %281 : vector<16x32xf32>
    %283 = vector.extract_strided_slice %8 {offsets = [2, 0], sizes = [1, 32], strides = [1, 1]} : vector<3x32xf32> to vector<1x32xf32>
    %284 = vector.extract_strided_slice %9 {offsets = [2, 0], sizes = [1, 32], strides = [1, 1]} : vector<3x32xf32> to vector<1x32xf32>
    %cst_111 = arith.constant dense<0.000000e+00> : vector<16xf32>
    %285 = vector.multi_reduction <add>, %282, %cst_111 [1] : vector<16x32xf32> to vector<16xf32>
    %286 = vector.shape_cast %285 : vector<16xf32> to vector<16x1xf32>
    %cst_112 = arith.constant 3.200000e+01 : f32
    %287 = vector.broadcast %cst_112 : f32 to vector<16x1xf32>
    %288 = arith.divf %286, %287 : vector<16x1xf32>
    %289 = arith.mulf %282, %282 : vector<16x32xf32>
    %cst_113 = arith.constant dense<0.000000e+00> : vector<16xf32>
    %290 = vector.multi_reduction <add>, %289, %cst_113 [1] : vector<16x32xf32> to vector<16xf32>
    %291 = vector.shape_cast %290 : vector<16xf32> to vector<16x1xf32>
    %cst_114 = arith.constant 3.200000e+01 : f32
    %292 = vector.broadcast %cst_114 : f32 to vector<16x1xf32>
    %293 = arith.divf %291, %292 : vector<16x1xf32>
    %294 = arith.mulf %288, %288 : vector<16x1xf32>
    %295 = arith.subf %293, %294 : vector<16x1xf32>
    %296 = vector.broadcast %288 : vector<16x1xf32> to vector<16x32xf32>
    %297 = arith.subf %282, %296 : vector<16x32xf32>
    %cst_115 = arith.constant 9.99999974E-6 : f32
    %298 = vector.broadcast %cst_115 : f32 to vector<16x1xf32>
    %299 = arith.addf %295, %298 : vector<16x1xf32>
    %300 = math.rsqrt %299 : vector<16x1xf32>
    %301 = vector.broadcast %300 : vector<16x1xf32> to vector<16x32xf32>
    %302 = arith.mulf %297, %301 : vector<16x32xf32>
    %303 = vector.broadcast %283 : vector<1x32xf32> to vector<16x32xf32>
    %304 = arith.mulf %302, %303 : vector<16x32xf32>
    %305 = vector.broadcast %284 : vector<1x32xf32> to vector<16x32xf32>
    %306 = arith.addf %304, %305 : vector<16x32xf32>
    %307 = vector.shape_cast %306 : vector<16x32xf32> to vector<8x2x32xf32>
    %c0_116 = arith.constant 0 : index
    %c0_117 = arith.constant 0 : index
    %c0_118 = arith.constant 0 : index
    %308 = vector.load %arg19[%c0_116, %c0_117, %c0_118] : memref<8x2x32xf32, #tpu.memory_space<vmem>>, vector<8x2x32xf32>
    tpu.vector_store %arg19[%c0_116, %c0_117, %c0_118], %307 {strides = array<i32>} : memref<8x2x32xf32, #tpu.memory_space<vmem>>, vector<8x2x32xf32>,
    return
  }
}

</mosaic_0001>

<llo_original>
// kernel: decoder_layer_forward.1
$region0: #{decoder_layer_forward.1}
  #allocation0 [shape = 'u32[]', space=smem, size = 0x4, offset = 0x4, fixed_abs, tag = 'smem constant byte address 0x4 - core index']
  #allocation1 [shape = 'u32[144,128]{1,0:T(1,128)}', space=vmem, size = 0x12000, scoped, tag = 'internal scratch']
  %s0 = inlined_call_operand.hbm [shape: f32[8,2,32], index: 0, kind: input, shape index: {}]
  %s1 = inlined_call_operand.vmem [shape: f32[12,2,32], index: 1, kind: input, shape index: {}]
  %s2 = inlined_call_operand.hbm [shape: f32[8,2,32], index: 2, kind: input, shape index: {}]
  %s3 = inlined_call_operand.hbm [shape: f32[12,2,32], index: 3, kind: input, shape index: {}]
  %s4 = inlined_call_operand.hbm [shape: f32[16,16], index: 4, kind: input, shape index: {}]
  %s5 = inlined_call_operand.hbm [shape: f32[16,24], index: 5, kind: input, shape index: {}]
  %s6 = inlined_call_operand.hbm [shape: f32[4,32], index: 6, kind: input, shape index: {}]
  %s7 = inlined_call_operand.vmem [shape: f32[64,96], index: 7, kind: input, shape index: {}]
  %s8 = inlined_call_operand.vmem [shape: f32[1,128], index: 8, kind: input, shape index: {}]
  %s9 = inlined_call_operand.vmem [shape: f32[32,32], index: 9, kind: input, shape index: {}]
  %s10 = inlined_call_operand.hbm [shape: f32[32,32], index: 10, kind: input, shape index: {}]
  %s11 = inlined_call_operand.hbm [shape: f32[64,64], index: 11, kind: input, shape index: {}]
  %s12 = inlined_call_operand.hbm [shape: f32[32,32], index: 12, kind: input, shape index: {}]
  %s13 = inlined_call_operand.hbm [shape: f32[1,128], index: 13, kind: input, shape index: {}]
  %s14 = inlined_call_operand.hbm [shape: f32[32,64], index: 14, kind: input, shape index: {}]
  %s15 = inlined_call_operand.vmem [shape: f32[64,32], index: 15, kind: input, shape index: {}]
  %s16 = inlined_call_operand.hbm [shape: f32[1,96], index: 16, kind: input, shape index: {}]
  %s17 = inlined_call_operand.hbm [shape: f32[3,32], index: 17, kind: input, shape index: {}]
  %s18 = inlined_call_operand.hbm [shape: f32[3,32], index: 18, kind: input, shape index: {}]
  %s19 = inlined_call_operand.hbm [shape: f32[8,2,32], index: 19, kind: output, shape index: {}]
  %s20 = sld [smem:[#allocation0]]
  $region142: #{decoder_layer_forward.1} parent=0
    _
  %s22 = ssub.s32 1, %s20
  %s23 = scalar_select 0, %s22, %s20
  $region1: #{decoder_layer_forward.1} parent=0
    #allocation2 [shape = 'u8[8192]{0}', space=vmem, size = 0x2000, scoped, tag = 'input window, operand 0, single buffered']
    #allocation3 [shape = 's32[1]{0}', space=sflag, size = 0x4, scoped, tag = 'scoped memory for decoder_layer_forward.1']
    #allocation4 [shape = 's32[1]{0}', space=sflag, size = 0x4, scoped, tag = 'scoped memory for decoder_layer_forward.1']
    #allocation5 [shape = 'u8[8192]{0}', space=vmem, size = 0x2000, scoped, tag = 'input window, operand 2, single buffered']
    #allocation6 [shape = 's32[1]{0}', space=sflag, size = 0x4, scoped, tag = 'scoped memory for decoder_layer_forward.1']
    #allocation7 [shape = 'u8[12288]{0}', space=vmem, size = 0x3000, scoped, tag = 'input window, operand 3, single buffered']
    #allocation8 [shape = 'u8[8192]{0}', space=vmem, size = 0x2000, scoped, tag = 'input window, operand 4, single buffered']
    #allocation9 [shape = 's32[1]{0}', space=sflag, size = 0x4, scoped, tag = 'scoped memory for decoder_layer_forward.1']
    #allocation10 [shape = 'u8[8192]{0}', space=vmem, size = 0x2000, scoped, tag = 'input window, operand 5, single buffered']
    #allocation11 [shape = 'u8[2048]{0}', space=vmem, size = 0x800, scoped, tag = 'input window, operand 6, single buffered']
    #allocation12 [shape = 's32[1]{0}', space=sflag, size = 0x4, scoped, tag = 'scoped memory for decoder_layer_forward.1']
    #allocation13 [shape = 'u8[16384]{0}', space=vmem, size = 0x4000, scoped, tag = 'input window, operand 10, single buffered']
    #allocation14 [shape = 'u8[32768]{0}', space=vmem, size = 0x8000, scoped, tag = 'input window, operand 11, single buffered']
    #allocation15 [shape = 's32[1]{0}', space=sflag, size = 0x4, scoped, tag = 'scoped memory for decoder_layer_forward.1']
    #allocation16 [shape = 'u8[16384]{0}', space=vmem, size = 0x4000, scoped, tag = 'input window, operand 12, single buffered']
    #allocation17 [shape = 'u8[512]{0}', space=vmem, size = 0x400, scoped, tag = 'input window, operand 13, single buffered']
    #allocation18 [shape = 's32[1]{0}', space=sflag, size = 0x4, scoped, tag = 'scoped memory for decoder_layer_forward.1']
    #allocation19 [shape = 'u8[16384]{0}', space=vmem, size = 0x4000, scoped, tag = 'input window, operand 14, single buffered']
    #allocation20 [shape = 'u8[512]{0}', space=vmem, size = 0x400, scoped, tag = 'input window, operand 16, single buffered']
    #allocation21 [shape = 's32[1]{0}', space=sflag, size = 0x4, scoped, tag = 'scoped memory for decoder_layer_forward.1']
    #allocation22 [shape = 'u8[2048]{0}', space=vmem, size = 0x800, scoped, tag = 'input window, operand 17, single buffered']
    #allocation23 [shape = 'u8[2048]{0}', space=vmem, size = 0x800, scoped, tag = 'input window, operand 18, single buffered']
    #allocation24 [shape = 's32[1]{0}', space=sflag, size = 0x4, scoped, tag = 'scoped memory for decoder_layer_forward.1']
    #allocation25 [shape = 'u8[8192]{0}', space=vmem, size = 0x2000, scoped, tag = 'output window, operand 0, single buffered']
    %24 = vsyncpa [#allocation3], 0
    %25 = vsyncpa [#allocation6], 0
    %26 = vsyncpa [#allocation9], 0
    %27 = vsyncpa [#allocation12], 0
    %28 = vsyncpa [#allocation15], 0
    %29 = vsyncpa [#allocation18], 0
    %30 = vsyncpa [#allocation21], 0
    %31 = vsyncpa [#allocation24], 0
    %32 = vsyncpa [#allocation4], 0
    // Predicated region
    $region2: #{decoder_layer_forward.1} parent=1 // pred_check
      _
    $region3: #{decoder_layer_forward.1} parent=1 // pred_check_branch
      %34 = sbr.rel (0) target = $region5
    $region4: #{decoder_layer_forward.1} parent=1 // pred_region
      %s36 = ssub.s32 256, 256
      %37 = vsyncadd [#allocation3], %s36
      %s38 = sshll.u32 [#allocation2], 4
      %s39 = int_to_ptr.vmem [resolvable:$true] %s38
      %44 = dma.hbm_to_vmem [thread:$0]  %s0, 256, %s39, [#allocation3], 32, 32, 2
    $region5: #{decoder_layer_forward.1} parent=1 // pred_fallthru
      _
    // Predicated region
    $region6: #{decoder_layer_forward.1} parent=1 // pred_check
      _
    $region7: #{decoder_layer_forward.1} parent=1 // pred_check_branch
      %46 = sbr.rel (0) target = $region9
    $region8: #{decoder_layer_forward.1} parent=1 // pred_region
      _
    $region9: #{decoder_layer_forward.1} parent=1 // pred_fallthru
      _
    // Predicated region
    $region10: #{decoder_layer_forward.1} parent=1 // pred_check
      _
    $region11: #{decoder_layer_forward.1} parent=1 // pred_check_branch
      %48 = sbr.rel (0) target = $region13
    $region12: #{decoder_layer_forward.1} parent=1 // pred_region
      %s50 = ssub.s32 256, 256
      %51 = vsyncadd [#allocation6], %s50
      %s52 = sshll.u32 [#allocation5], 4
      %s53 = int_to_ptr.vmem [resolvable:$true] %s52
      %58 = dma.hbm_to_vmem [thread:$0]  %s2, 256, %s53, [#allocation6], 32, 32, 2
    $region13: #{decoder_layer_forward.1} parent=1 // pred_fallthru
      _
    // Predicated region
    $region14: #{decoder_layer_forward.1} parent=1 // pred_check
      _
    $region15: #{decoder_layer_forward.1} parent=1 // pred_check_branch
      %60 = sbr.rel (0) target = $region17
    $region16: #{decoder_layer_forward.1} parent=1 // pred_region
      %s62 = ssub.s32 384, 384
      %63 = vsyncadd [#allocation6], %s62
      %s64 = sshll.u32 [#allocation7], 4
      %s65 = int_to_ptr.vmem [resolvable:$true] %s64
      %70 = dma.hbm_to_vmem [thread:$0]  %s3, 384, %s65, [#allocation6], 32, 32, 2
    $region17: #{decoder_layer_forward.1} parent=1 // pred_fallthru
      _
    // Predicated region
    $region18: #{decoder_layer_forward.1} parent=1 // pred_check
      _
    $region19: #{decoder_layer_forward.1} parent=1 // pred_check_branch
      %72 = sbr.rel (0) target = $region21
    $region20: #{decoder_layer_forward.1} parent=1 // pred_region
      %s74 = ssub.s32 256, 256
      %75 = vsyncadd [#allocation9], %s74
      %s76 = sshll.u32 [#allocation8], 4
      %s77 = int_to_ptr.vmem [resolvable:$true] %s76
      %82 = dma.hbm_to_vmem [thread:$0]  %s4, 256, %s77, [#allocation9], 128, 128, 8
    $region21: #{decoder_layer_forward.1} parent=1 // pred_fallthru
      _
    // Predicated region
    $region22: #{decoder_layer_forward.1} parent=1 // pred_check
      _
    $region23: #{decoder_layer_forward.1} parent=1 // pred_check_branch
      %84 = sbr.rel (0) target = $region25
    $region24: #{decoder_layer_forward.1} parent=1 // pred_region
      %s86 = ssub.s32 256, 256
      %87 = vsyncadd [#allocation9], %s86
      %s88 = sshll.u32 [#allocation10], 4
      %s89 = int_to_ptr.vmem [resolvable:$true] %s88
      %94 = dma.hbm_to_vmem [thread:$0]  %s5, 256, %s89, [#allocation9], 128, 128, 8
    $region25: #{decoder_layer_forward.1} parent=1 // pred_fallthru
      _
    // Predicated region
    $region26: #{decoder_layer_forward.1} parent=1 // pred_check
      _
    $region27: #{decoder_layer_forward.1} parent=1 // pred_check_branch
      %96 = sbr.rel (0) target = $region29
    $region28: #{decoder_layer_forward.1} parent=1 // pred_region
      %s98 = ssub.s32 64, 64
      %99 = vsyncadd [#allocation12], %s98
      %s101 = sshll.u32 [#allocation11], 4
      %s102 = int_to_ptr.vmem [resolvable:$true] %s101
      %104 = dma.hbm_to_vmem [thread:$0]  %s6, 64, %s102, [#allocation12]
    $region29: #{decoder_layer_forward.1} parent=1 // pred_fallthru
      _
    // Predicated region
    $region30: #{decoder_layer_forward.1} parent=1 // pred_check
      _
    $region31: #{decoder_layer_forward.1} parent=1 // pred_check_branch
      %106 = sbr.rel (0) target = $region33
    $region32: #{decoder_layer_forward.1} parent=1 // pred_region
      _
    $region33: #{decoder_layer_forward.1} parent=1 // pred_fallthru
      _
    // Predicated region
    $region34: #{decoder_layer_forward.1} parent=1 // pred_check
      _
    $region35: #{decoder_layer_forward.1} parent=1 // pred_check_branch
      %108 = sbr.rel (0) target = $region37
    $region36: #{decoder_layer_forward.1} parent=1 // pred_region
      _
    $region37: #{decoder_layer_forward.1} parent=1 // pred_fallthru
      _
    // Predicated region
    $region38: #{decoder_layer_forward.1} parent=1 // pred_check
      _
    $region39: #{decoder_layer_forward.1} parent=1 // pred_check_branch
      %110 = sbr.rel (0) target = $region41
    $region40: #{decoder_layer_forward.1} parent=1 // pred_region
      _
    $region41: #{decoder_layer_forward.1} parent=1 // pred_fallthru
      _
    // Predicated region
    $region42: #{decoder_layer_forward.1} parent=1 // pred_check
      _
    $region43: #{decoder_layer_forward.1} parent=1 // pred_check_branch
      %112 = sbr.rel (0) target = $region45
    $region44: #{decoder_layer_forward.1} parent=1 // pred_region
      %s114 = ssub.s32 512, 512
      %115 = vsyncadd [#allocation12], %s114
      %s116 = sshll.u32 [#allocation13], 4
      %s117 = int_to_ptr.vmem [resolvable:$true] %s116
      %122 = dma.hbm_to_vmem [thread:$0]  %s10, 512, %s117, [#allocation12], 128, 128, 8
    $region45: #{decoder_layer_forward.1} parent=1 // pred_fallthru
      _
    // Predicated region
    $region46: #{decoder_layer_forward.1} parent=1 // pred_check
      _
    $region47: #{decoder_layer_forward.1} parent=1 // pred_check_branch
      %124 = sbr.rel (0) target = $region49
    $region48: #{decoder_layer_forward.1} parent=1 // pred_region
      %s126 = ssub.s32 1024, 1024
      %127 = vsyncadd [#allocation15], %s126
      %s128 = sshll.u32 [#allocation14], 4
      %s129 = int_to_ptr.vmem [resolvable:$true] %s128
      %134 = dma.hbm_to_vmem [thread:$0]  %s11, 1024, %s129, [#allocation15], 128, 128, 8
    $region49: #{decoder_layer_forward.1} parent=1 // pred_fallthru
      _
    // Predicated region
    $region50: #{decoder_layer_forward.1} parent=1 // pred_check
      _
    $region51: #{decoder_layer_forward.1} parent=1 // pred_check_branch
      %136 = sbr.rel (0) target = $region53
    $region52: #{decoder_layer_forward.1} parent=1 // pred_region
      %s138 = ssub.s32 512, 512
      %139 = vsyncadd [#allocation15], %s138
      %s140 = sshll.u32 [#allocation16], 4
      %s141 = int_to_ptr.vmem [resolvable:$true] %s140
      %146 = dma.hbm_to_vmem [thread:$0]  %s12, 512, %s141, [#allocation15], 128, 128, 8
    $region53: #{decoder_layer_forward.1} parent=1 // pred_fallthru
      _
    // Predicated region
    $region54: #{decoder_layer_forward.1} parent=1 // pred_check
      _
    $region55: #{decoder_layer_forward.1} parent=1 // pred_check_branch
      %148 = sbr.rel (0) target = $region57
    $region56: #{decoder_layer_forward.1} parent=1 // pred_region
      %s150 = ssub.s32 16, 16
      %151 = vsyncadd [#allocation18], %s150
      %s153 = sshll.u32 [#allocation17], 4
      %s154 = int_to_ptr.vmem [resolvable:$true] %s153
      %156 = dma.hbm_to_vmem [thread:$0]  %s13, 16, %s154, [#allocation18]
    $region57: #{decoder_layer_forward.1} parent=1 // pred_fallthru
      _
    // Predicated region
    $region58: #{decoder_layer_forward.1} parent=1 // pred_check
      _
    $region59: #{decoder_layer_forward.1} parent=1 // pred_check_branch
      %158 = sbr.rel (0) target = $region61
    $region60: #{decoder_layer_forward.1} parent=1 // pred_region
      %s160 = ssub.s32 512, 512
      %161 = vsyncadd [#allocation18], %s160
      %s162 = sshll.u32 [#allocation19], 4
      %s163 = int_to_ptr.vmem [resolvable:$true] %s162
      %168 = dma.hbm_to_vmem [thread:$0]  %s14, 512, %s163, [#allocation18], 128, 128, 8
    $region61: #{decoder_layer_forward.1} parent=1 // pred_fallthru
      _
    // Predicated region
    $region62: #{decoder_layer_forward.1} parent=1 // pred_check
      _
    $region63: #{decoder_layer_forward.1} parent=1 // pred_check_branch
      %170 = sbr.rel (0) target = $region65
    $region64: #{decoder_layer_forward.1} parent=1 // pred_region
      _
    $region65: #{decoder_layer_forward.1} parent=1 // pred_fallthru
      _
    // Predicated region
    $region66: #{decoder_layer_forward.1} parent=1 // pred_check
      _
    $region67: #{decoder_layer_forward.1} parent=1 // pred_check_branch
      %172 = sbr.rel (0) target = $region69
    $region68: #{decoder_layer_forward.1} parent=1 // pred_region
      %s174 = ssub.s32 16, 16
      %175 = vsyncadd [#allocation21], %s174
      %s177 = sshll.u32 [#allocation20], 4
      %s178 = int_to_ptr.vmem [resolvable:$true] %s177
      %180 = dma.hbm_to_vmem [thread:$0]  %s16, 16, %s178, [#allocation21]
    $region69: #{decoder_layer_forward.1} parent=1 // pred_fallthru
      _
    // Predicated region
    $region70: #{decoder_layer_forward.1} parent=1 // pred_check
      _
    $region71: #{decoder_layer_forward.1} parent=1 // pred_check_branch
      %182 = sbr.rel (0) target = $region73
    $region72: #{decoder_layer_forward.1} parent=1 // pred_region
      %s184 = ssub.s32 64, 64
      %185 = vsyncadd [#allocation21], %s184
      %s187 = sshll.u32 [#allocation22], 4
      %s188 = int_to_ptr.vmem [resolvable:$true] %s187
      %190 = dma.hbm_to_vmem [thread:$0]  %s17, 64, %s188, [#allocation21]
    $region73: #{decoder_layer_forward.1} parent=1 // pred_fallthru
      _
    // Predicated region
    $region74: #{decoder_layer_forward.1} parent=1 // pred_check
      _
    $region75: #{decoder_layer_forward.1} parent=1 // pred_check_branch
      %192 = sbr.rel (0) target = $region77
    $region76: #{decoder_layer_forward.1} parent=1 // pred_region
      %s194 = ssub.s32 64, 64
      %195 = vsyncadd [#allocation24], %s194
      %s197 = sshll.u32 [#allocation23], 4
      %s198 = int_to_ptr.vmem [resolvable:$true] %s197
      %200 = dma.hbm_to_vmem [thread:$0]  %s18, 64, %s198, [#allocation24]
    $region77: #{decoder_layer_forward.1} parent=1 // pred_fallthru
      _
    // Predicated region
    $region78: #{decoder_layer_forward.1} parent=1 // pred_check
      _
    $region79: #{decoder_layer_forward.1} parent=1 // pred_check_branch
      %202 = sbr.rel (0) target = $region81
    $region80: #{decoder_layer_forward.1} parent=1 // pred_region
      %203 = dma.done [#allocation3], 256
    $region81: #{decoder_layer_forward.1} parent=1 // pred_fallthru
      _
    // Predicated region
    $region82: #{decoder_layer_forward.1} parent=1 // pred_check
      _
    $region83: #{decoder_layer_forward.1} parent=1 // pred_check_branch
      %205 = sbr.rel (0) target = $region85
    $region84: #{decoder_layer_forward.1} parent=1 // pred_region
      %206 = dma.done [#allocation6], 256
    $region85: #{decoder_layer_forward.1} parent=1 // pred_fallthru
      _
    // Predicated region
    $region86: #{decoder_layer_forward.1} parent=1 // pred_check
      _
    $region87: #{decoder_layer_forward.1} parent=1 // pred_check_branch
      %208 = sbr.rel (0) target = $region89
    $region88: #{decoder_layer_forward.1} parent=1 // pred_region
      %209 = dma.done [#allocation6], 384
    $region89: #{decoder_layer_forward.1} parent=1 // pred_fallthru
      _
    // Predicated region
    $region90: #{decoder_layer_forward.1} parent=1 // pred_check
      _
    $region91: #{decoder_layer_forward.1} parent=1 // pred_check_branch
      %211 = sbr.rel (0) target = $region93
    $region92: #{decoder_layer_forward.1} parent=1 // pred_region
      %212 = dma.done [#allocation9], 256
    $region93: #{decoder_layer_forward.1} parent=1 // pred_fallthru
      _
    // Predicated region
    $region94: #{decoder_layer_forward.1} parent=1 // pred_check
      _
    $region95: #{decoder_layer_forward.1} parent=1 // pred_check_branch
      %214 = sbr.rel (0) target = $region97
    $region96: #{decoder_layer_forward.1} parent=1 // pred_region
      %215 = dma.done [#allocation9], 256
    $region97: #{decoder_layer_forward.1} parent=1 // pred_fallthru
      _
    // Predicated region
    $region98: #{decoder_layer_forward.1} parent=1 // pred_check
      _
    $region99: #{decoder_layer_forward.1} parent=1 // pred_check_branch
      %217 = sbr.rel (0) target = $region101
    $region100: #{decoder_layer_forward.1} parent=1 // pred_region
      %218 = dma.done [#allocation12], 64
    $region101: #{decoder_layer_forward.1} parent=1 // pred_fallthru
      _
    // Predicated region
    $region102: #{decoder_layer_forward.1} parent=1 // pred_check
      _
    $region103: #{decoder_layer_forward.1} parent=1 // pred_check_branch
      %220 = sbr.rel (0) target = $region105
    $region104: #{decoder_layer_forward.1} parent=1 // pred_region
      %221 = dma.done [#allocation12], 512
    $region105: #{decoder_layer_forward.1} parent=1 // pred_fallthru
      _
    // Predicated region
    $region106: #{decoder_layer_forward.1} parent=1 // pred_check
      _
    $region107: #{decoder_layer_forward.1} parent=1 // pred_check_branch
      %223 = sbr.rel (0) target = $region109
    $region108: #{decoder_layer_forward.1} parent=1 // pred_region
      %224 = dma.done [#allocation15], 1024
    $region109: #{decoder_layer_forward.1} parent=1 // pred_fallthru
      _
    // Predicated region
    $region110: #{decoder_layer_forward.1} parent=1 // pred_check
      _
    $region111: #{decoder_layer_forward.1} parent=1 // pred_check_branch
      %226 = sbr.rel (0) target = $region113
    $region112: #{decoder_layer_forward.1} parent=1 // pred_region
      %227 = dma.done [#allocation15], 512
    $region113: #{decoder_layer_forward.1} parent=1 // pred_fallthru
      _
    // Predicated region
    $region114: #{decoder_layer_forward.1} parent=1 // pred_check
      _
    $region115: #{decoder_layer_forward.1} parent=1 // pred_check_branch
      %229 = sbr.rel (0) target = $region117
    $region116: #{decoder_layer_forward.1} parent=1 // pred_region
      %230 = dma.done [#allocation18], 16
    $region117: #{decoder_layer_forward.1} parent=1 // pred_fallthru
      _
    // Predicated region
    $region118: #{decoder_layer_forward.1} parent=1 // pred_check
      _
    $region119: #{decoder_layer_forward.1} parent=1 // pred_check_branch
      %232 = sbr.rel (0) target = $region121
    $region120: #{decoder_layer_forward.1} parent=1 // pred_region
      %233 = dma.done [#allocation18], 512
    $region121: #{decoder_layer_forward.1} parent=1 // pred_fallthru
      _
    // Predicated region
    $region122: #{decoder_layer_forward.1} parent=1 // pred_check
      _
    $region123: #{decoder_layer_forward.1} parent=1 // pred_check_branch
      %235 = sbr.rel (0) target = $region125
    $region124: #{decoder_layer_forward.1} parent=1 // pred_region
      %236 = dma.done [#allocation21], 16
    $region125: #{decoder_layer_forward.1} parent=1 // pred_fallthru
      _
    // Predicated region
    $region126: #{decoder_layer_forward.1} parent=1 // pred_check
      _
    $region127: #{decoder_layer_forward.1} parent=1 // pred_check_branch
      %238 = sbr.rel (0) target = $region129
    $region128: #{decoder_layer_forward.1} parent=1 // pred_region
      %239 = dma.done [#allocation21], 64
    $region129: #{decoder_layer_forward.1} parent=1 // pred_fallthru
      _
    // Predicated region
    $region130: #{decoder_layer_forward.1} parent=1 // pred_check
      _
    $region131: #{decoder_layer_forward.1} parent=1 // pred_check_branch
      %241 = sbr.rel (0) target = $region133
    $region132: #{decoder_layer_forward.1} parent=1 // pred_region
      %242 = dma.done [#allocation24], 64
    $region133: #{decoder_layer_forward.1} parent=1 // pred_fallthru
      _
    %v243 = vld [vmem:[#allocation2] sm:$0x3]
    %v244 = vld [vmem:[#allocation2 + $0x2] sm:$0x3]
    %v245 = vld [vmem:[#allocation2 + $0x4] sm:$0x3]
    %v246 = vld [vmem:[#allocation2 + $0x6] sm:$0x3]
    %v247 = vld [vmem:[#allocation2 + $0x8] sm:$0x3]
    %v248 = vld [vmem:[#allocation2 + $0xa] sm:$0x3]
    %v249 = vld [vmem:[#allocation2 + $0xc] sm:$0x3]
    %v250 = vld [vmem:[#allocation2 + $0xe] sm:$0x3]
    %v251 = vld [vmem:[%s1] sm:$0x3]
    %v252 = vld [vmem:[%s1 + $0x2] sm:$0x3]
    %v253 = vld [vmem:[%s1 + $0x4] sm:$0x3]
    %v254 = vld [vmem:[%s1 + $0x6] sm:$0x3]
    %v255 = vld [vmem:[%s1 + $0x8] sm:$0x3]
    %v256 = vld [vmem:[%s1 + $0xa] sm:$0x3]
    %v257 = vld [vmem:[%s1 + $0xc] sm:$0x3]
    %v258 = vld [vmem:[%s1 + $0xe] sm:$0x3]
    %v259 = vld [vmem:[%s1 + $0x10] sm:$0x3]
    %v260 = vld [vmem:[%s1 + $0x12] sm:$0x3]
    %v261 = vld [vmem:[%s1 + $0x14] sm:$0x3]
    %v262 = vld [vmem:[%s1 + $0x16] sm:$0x3]
    %v263 = vld [vmem:[#allocation5] sm:$0x3]
    %v264 = vld [vmem:[#allocation5 + $0x2] sm:$0x3]
    %v265 = vld [vmem:[#allocation5 + $0x4] sm:$0x3]
    %v266 = vld [vmem:[#allocation5 + $0x6] sm:$0x3]
    %v267 = vld [vmem:[#allocation5 + $0x8] sm:$0x3]
    %v268 = vld [vmem:[#allocation5 + $0xa] sm:$0x3]
    %v269 = vld [vmem:[#allocation5 + $0xc] sm:$0x3]
    %v270 = vld [vmem:[#allocation5 + $0xe] sm:$0x3]
    %v271 = vld [vmem:[%s8] sm:$0x1]
    %v272 = vld [vmem:[#allocation17] sm:$0x1]
    %v273 = vld [vmem:[#allocation22] sm:$0x7]
    %v274 = vld [vmem:[#allocation23] sm:$0x7]
    %v275 = vadd.f32 %v243, %v263
    %v276 = vadd.f32 %v244, %v264
    %v277 = vadd.f32 %v245, %v265
    %v278 = vadd.f32 %v246, %v266
    %v279 = vadd.f32 %v247, %v267
    %v280 = vadd.f32 %v248, %v268
    %v281 = vadd.f32 %v249, %v269
    %v282 = vadd.f32 %v250, %v270
    %v291 = vcombine.low %v275, %v276
    %v292 = vcombine.low %v277, %v278
    %v294 = vunpack.c.l.s4 1983009808
    %v295 = vunpack.c.0.s8 %v294
    %v296 = vlaneseq
    %v297 = vshrl.u32 %v296, 7
    %v298 = vsub.s32 %v295, %v297
    %v299 = vrot.slane %v291, %v298
    %v301 = vunpack.c.l.s4 1983009808
    %v302 = vunpack.c.0.s8 %v301
    %v303 = vlaneseq
    %v304 = vshrl.u32 %v303, 7
    %v305 = vsub.s32 %v302, %v304
    %v306 = vrot.slane %v292, %v305
    %v307 = vcombine.low %v299, %v306
    %v308 = vcombine.low %v279, %v280
    %v309 = vcombine.low %v281, %v282
    %v311 = vunpack.c.l.s4 1983009808
    %v312 = vunpack.c.0.s8 %v311
    %v313 = vlaneseq
    %v314 = vshrl.u32 %v313, 7
    %v315 = vsub.s32 %v312, %v314
    %v316 = vrot.slane %v308, %v315
    %v318 = vunpack.c.l.s4 1983009808
    %v319 = vunpack.c.0.s8 %v318
    %v320 = vlaneseq
    %v321 = vshrl.u32 %v320, 7
    %v322 = vsub.s32 %v319, %v321
    %v323 = vrot.slane %v309, %v322
    %v324 = vcombine.low %v316, %v323
    %v335 = vcombine.low %v243, %v244
    %v336 = vcombine.low %v245, %v246
    %v338 = vunpack.c.l.s4 1983009808
    %v339 = vunpack.c.0.s8 %v338
    %v340 = vlaneseq
    %v341 = vshrl.u32 %v340, 7
    %v342 = vsub.s32 %v339, %v341
    %v343 = vrot.slane %v335, %v342
    %v345 = vunpack.c.l.s4 1983009808
    %v346 = vunpack.c.0.s8 %v345
    %v347 = vlaneseq
    %v348 = vshrl.u32 %v347, 7
    %v349 = vsub.s32 %v346, %v348
    %v350 = vrot.slane %v336, %v349
    %v351 = vcombine.low %v343, %v350
    %v352 = vcombine.low %v247, %v248
    %v353 = vcombine.low %v249, %v250
    %v355 = vunpack.c.l.s4 1983009808
    %v356 = vunpack.c.0.s8 %v355
    %v357 = vlaneseq
    %v358 = vshrl.u32 %v357, 7
    %v359 = vsub.s32 %v356, %v358
    %v360 = vrot.slane %v352, %v359
    %v362 = vunpack.c.l.s4 1983009808
    %v363 = vunpack.c.0.s8 %v362
    %v364 = vlaneseq
    %v365 = vshrl.u32 %v364, 7
    %v366 = vsub.s32 %v363, %v365
    %v367 = vrot.slane %v353, %v366
    %v368 = vcombine.low %v360, %v367
    %369 = vrot.lane.b32.xlu0 %v351, 32
    %v370 = vpop.permute.xlu0 %369
    %371 = vrot.lane.b32.xlu0 %v368, 32
    %v372 = vpop.permute.xlu0 %371
    %vm375 = vcmask 261120
    %v376 = vsel %vm375, %v307, %v370
    %v377 = vsel %vm375, %v324, %v372
    %v378 = vld [vmem:[%s7] sm:$0xff]
    %v379 = vld [vmem:[%s7 + $0x8] sm:$0xff]
    %v380 = vld [vmem:[%s7 + $0x10] sm:$0xff]
    %v381 = vld [vmem:[%s7 + $0x18] sm:$0xff]
    %v382 = vld [vmem:[%s7 + $0x20] sm:$0xff]
    %v383 = vld [vmem:[%s7 + $0x28] sm:$0xff]
    %v384 = vld [vmem:[%s7 + $0x30] sm:$0xff]
    %v385 = vld [vmem:[%s7 + $0x38] sm:$0xff]
    %v387 = vlaneseq
    %v388 = vshrl.u32 %v387, 7
    %v389 = vsub.s32 0, %v388
    %v390 = vrot.slane %v271, %v389
    %vm392 = vcmask 523264
    %v394 = vsel %vm392, %v376, 0
    %v397 = vsel %vm392, %v377, 0
    %399 = vmatprep.subr.mxu0 0.0
    %400 = vmatpush1.msra.mxu0 0.0
    %401 = vmatprep.subr.mxu0 0.0
    %402 = vmatpush1.msra.mxu0 0.0
    %403 = vmatprep.subr.mxu0 0.0
    %404 = vmatpush1.msra.mxu0 0.0
    %405 = vmatprep.subr.mxu0 0.0
    %406 = vmatpush1.msra.mxu0 0.0
    %407 = vmatprep.subr.mxu0 0.0
    %408 = vmatpush1.msra.mxu0 0.0
    %409 = vmatprep.subr.mxu0 0.0
    %410 = vmatpush1.msra.mxu0 0.0
    %411 = vmatprep.subr.mxu0 0.0
    %412 = vmatpush1.msra.mxu0 0.0
    %413 = vmatprep.subr.mxu0 0.0
    %414 = vmatpush1.msra.mxu0 0.0
    %415 = vmatprep.subr.mxu0 0.0
    %416 = vmatpush1.msra.mxu0 %v385
    %417 = vmatprep.subr.mxu0 0.0
    %418 = vmatpush1.msra.mxu0 %v384
    %419 = vmatprep.subr.mxu0 0.0
    %420 = vmatpush1.msra.mxu0 %v383
    %421 = vmatprep.subr.mxu0 0.0
    %422 = vmatpush1.msra.mxu0 %v382
    %423 = vmatprep.subr.mxu0 0.0
    %424 = vmatpush1.msra.mxu0 %v381
    %425 = vmatprep.subr.mxu0 0.0
    %426 = vmatpush1.msra.mxu0 %v380
    %427 = vmatprep.subr.mxu0 0.0
    %428 = vmatpush1.msra.mxu0 %v379
    %429 = vmatprep.subr.mxu0 0.0
    %430 = vmatpush1.msra.mxu0 %v378
    %431 = vmatprep.subr.mxu0 0.0
    %432 = vmatpush2.msra.mxu0 0.0
    %433 = vmatprep.subr.mxu0 0.0
    %434 = vmatpush2.msra.mxu0 0.0
    %435 = vmatprep.subr.mxu0 0.0
    %436 = vmatpush2.msra.mxu0 0.0
    %437 = vmatprep.subr.mxu0 0.0
    %438 = vmatpush2.msra.mxu0 0.0
    %439 = vmatprep.subr.mxu0 0.0
    %440 = vmatpush2.msra.mxu0 0.0
    %441 = vmatprep.subr.mxu0 0.0
    %442 = vmatpush2.msra.mxu0 0.0
    %443 = vmatprep.subr.mxu0 0.0
    %444 = vmatpush2.msra.mxu0 0.0
    %445 = vmatprep.subr.mxu0 0.0
    %446 = vmatpush2.msra.mxu0 0.0
    %447 = vmatprep.subr.mxu0 0.0
    %448 = vmatpush2.msra.mxu0 0.0
    %449 = vmatprep.subr.mxu0 0.0
    %450 = vmatpush2.msra.mxu0 0.0
    %451 = vmatprep.subr.mxu0 0.0
    %452 = vmatpush2.msra.mxu0 0.0
    %453 = vmatprep.subr.mxu0 0.0
    %454 = vmatpush2.msra.mxu0 0.0
    %455 = vmatprep.subr.mxu0 0.0
    %456 = vmatpush2.msra.mxu0 0.0
    %457 = vmatprep.subr.mxu0 0.0
    %458 = vmatpush2.msra.mxu0 0.0
    %459 = vmatprep.subr.mxu0 0.0
    %460 = vmatpush2.msra.mxu0 0.0
    %461 = vmatprep.subr.mxu0 0.0
    %462 = vmatpush2.msra.mxu0 0.0
    %463 = vmatprep.mubr.f32.mxu0 0.0
    %464 = vmatmul.mubr.f32.gmra.mxu0 %v394
    %v465 = vpop.f32.mrf.mxu0
    %v466 = vadd.f32 %v390, %v465
    %v467 = vpop.f32.mrf.mxu0
    %468 = vmatprep.mubr.f32.mxu0 0.0
    %469 = vmatmul.mubr.f32.gmra.mxu0 %v397
    %v470 = vpop.f32.mrf.mxu0
    %v471 = vadd.f32 %v390, %v470
    %v472 = vpop.f32.mrf.mxu0
    %473 = vdwg.mxu0
    %v474 = vld [vmem:[#allocation8] sm:$0xff]
    %v475 = vld [vmem:[#allocation8 + $0x8] sm:$0xff]
    %v476 = vld [vmem:[#allocation11] sm:$0x1]
    %v477 = vlaneseq
    %v478 = vshrl.u32 %v477, 7
    %v479 = vsub.s32 0, %v478
    %v480 = vrot.slane %v476, %v479
    %v481 = vmul.f32 %v466, %v480
    %v482 = vmul.f32 %v471, %v480
    %485 = vrot.lane.b32.xlu0 %v466, 96
    %v486 = vpop.permute.xlu0 %485
    %487 = vrot.lane.b32.xlu0 %v471, 96
    %v488 = vpop.permute.xlu0 %487
    %v490 = vsel %vm375, %v481, 0
    %v493 = vsel %vm375, %v482, 0
    %v495 = vsel %vm375, %v486, 0
    %v497 = vsel %vm375, %v488, 0
    %499 = vmatprep.subr.mxu0 0.0
    %500 = vmatpush1.xpose.msra.mxu0 0.0
    %501 = vmatprep.subr.mxu0 0.0
    %502 = vmatpush1.xpose.msra.mxu0 0.0
    %503 = vmatprep.subr.mxu0 0.0
    %504 = vmatpush1.xpose.msra.mxu0 0.0
    %505 = vmatprep.subr.mxu0 0.0
    %506 = vmatpush1.xpose.msra.mxu0 0.0
    %507 = vmatprep.subr.mxu0 0.0
    %508 = vmatpush1.xpose.msra.mxu0 0.0
    %509 = vmatprep.subr.mxu0 0.0
    %510 = vmatpush1.xpose.msra.mxu0 0.0
    %511 = vmatprep.subr.mxu0 0.0
    %512 = vmatpush1.xpose.msra.mxu0 0.0
    %513 = vmatprep.subr.mxu0 0.0
    %514 = vmatpush1.xpose.msra.mxu0 0.0
    %515 = vmatprep.subr.mxu0 0.0
    %516 = vmatpush1.xpose.msra.mxu0 0.0
    %517 = vmatprep.subr.mxu0 0.0
    %518 = vmatpush1.xpose.msra.mxu0 0.0
    %519 = vmatprep.subr.mxu0 0.0
    %520 = vmatpush1.xpose.msra.mxu0 0.0
    %521 = vmatprep.subr.mxu0 0.0
    %522 = vmatpush1.xpose.msra.mxu0 0.0
    %523 = vmatprep.subr.mxu0 0.0
    %524 = vmatpush1.xpose.msra.mxu0 0.0
    %525 = vmatprep.subr.mxu0 0.0
    %526 = vmatpush1.xpose.msra.mxu0 0.0
    %527 = vmatprep.subr.mxu0 0.0
    %528 = vmatpush1.xpose.msra.mxu0 %v497
    %529 = vmatprep.subr.mxu0 0.0
    %530 = vmatpush1.xpose.msra.mxu0 %v495
    %531 = vmatprep.subr.mxu0 0.0
    %532 = vmatpush2.xpose.msra.mxu0 0.0
    %533 = vmatprep.subr.mxu0 0.0
    %534 = vmatpush2.xpose.msra.mxu0 0.0
    %535 = vmatprep.subr.mxu0 0.0
    %536 = vmatpush2.xpose.msra.mxu0 0.0
    %537 = vmatprep.subr.mxu0 0.0
    %538 = vmatpush2.xpose.msra.mxu0 0.0
    %539 = vmatprep.subr.mxu0 0.0
    %540 = vmatpush2.xpose.msra.mxu0 0.0
    %541 = vmatprep.subr.mxu0 0.0
    %542 = vmatpush2.xpose.msra.mxu0 0.0
    %543 = vmatprep.subr.mxu0 0.0
    %544 = vmatpush2.xpose.msra.mxu0 0.0
    %545 = vmatprep.subr.mxu0 0.0
    %546 = vmatpush2.xpose.msra.mxu0 0.0
    %547 = vmatprep.subr.mxu0 0.0
    %548 = vmatpush2.xpose.msra.mxu0 0.0
    %549 = vmatprep.subr.mxu0 0.0
    %550 = vmatpush2.xpose.msra.mxu0 0.0
    %551 = vmatprep.subr.mxu0 0.0
    %552 = vmatpush2.xpose.msra.mxu0 0.0
    %553 = vmatprep.subr.mxu0 0.0
    %554 = vmatpush2.xpose.msra.mxu0 0.0
    %555 = vmatprep.subr.mxu0 0.0
    %556 = vmatpush2.xpose.msra.mxu0 0.0
    %557 = vmatprep.subr.mxu0 0.0
    %558 = vmatpush2.xpose.msra.mxu0 0.0
    %559 = vmatprep.subr.mxu0 0.0
    %560 = vmatpush2.xpose.msra.mxu0 0.0
    %561 = vmatprep.subr.mxu0 0.0
    %562 = vmatpush2.xpose.msra.mxu0 0.0
    %563 = vmatprep.mubr.f32.mxu0 0.0
    %564 = vmatmul.mubr.f32.gmra.mxu0 %v490
    %v565 = vpop.f32.mrf.mxu0
    %v566 = vadd.f32 0.0, %v565
    %v567 = vpop.f32.mrf.mxu0
    %568 = vmatprep.mubr.f32.mxu0 0.0
    %569 = vmatmul.mubr.f32.gmra.mxu0 %v493
    %v570 = vpop.f32.mrf.mxu0
    %v571 = vadd.f32 0.0, %v570
    %v572 = vpop.f32.mrf.mxu0
    %573 = vdwg.mxu0
    %v574 = vmul.f32 %v566, 2.828427
    %v575 = vmul.f32 %v571, 2.828427
    %v576 = vadd.f32 %v574, %v474
    %v577 = vadd.f32 %v575, %v475
    %vm578 = vcmask 130048
    %v579 = vsel %vm578, %v576, -inf
    %580 = vmax.xlane.f32.xlu0 %v579
    %v581 = vpop.xlane.xlu0 %580
    %v582 = vsel %vm578, %v577, -inf
    %583 = vmax.xlane.f32.xlu0 %v582
    %v584 = vpop.xlane.xlu0 %583
    %v585 = vsub.f32 %v576, %v581
    %v586 = vsub.f32 %v577, %v584
    %v587 = vmul.f32 %v585, 1.442695
    %v588 = vpow.pop %v587
    %v589 = vmul.f32 %v586, 1.442695
    %v590 = vpow.pop %v589
    %v591 = vsel %vm578, %v588, 0.0
    %592 = vadd.xlane.f32.xlu0 %v591
    %v593 = vpop.xlane.xlu0 %592
    %v594 = vsel %vm578, %v590, 0.0
    %595 = vadd.xlane.f32.xlu0 %v594
    %v596 = vpop.xlane.xlu0 %595
    %v597 = vrcp.pop %v593
    %v598 = vrcp.pop %v596
    %v599 = vmul.f32 %v588, %v597
    %v600 = vmul.f32 %v590, %v598
    %602 = vrot.lane.b32.xlu0 %v480, 64
    %v603 = vpop.permute.xlu0 %602
    %v605 = vmul.f32 %v466, %v603
    %v606 = vmul.f32 %v471, %v603
    %v607 = vld [vmem:[#allocation11 + $0x1] sm:$0x1]
    %v608 = vlaneseq
    %v609 = vshrl.u32 %v608, 7
    %v610 = vsub.s32 0, %v609
    %v611 = vrot.slane %v607, %v610
    %v612 = vmul.f32 %v466, %v611
    %v613 = vmul.f32 %v471, %v611
    %v615 = vsel %vm375, %v612, 0
    %v618 = vsel %vm375, %v613, 0
    %620 = vmatprep.subr.mxu0 0.0
    %621 = vmatpush1.xpose.msra.mxu0 0.0
    %622 = vmatprep.subr.mxu0 0.0
    %623 = vmatpush1.xpose.msra.mxu0 0.0
    %624 = vmatprep.subr.mxu0 0.0
    %625 = vmatpush1.xpose.msra.mxu0 0.0
    %626 = vmatprep.subr.mxu0 0.0
    %627 = vmatpush1.xpose.msra.mxu0 0.0
    %628 = vmatprep.subr.mxu0 0.0
    %629 = vmatpush1.xpose.msra.mxu0 0.0
    %630 = vmatprep.subr.mxu0 0.0
    %631 = vmatpush1.xpose.msra.mxu0 0.0
    %632 = vmatprep.subr.mxu0 0.0
    %633 = vmatpush1.xpose.msra.mxu0 0.0
    %634 = vmatprep.subr.mxu0 0.0
    %635 = vmatpush1.xpose.msra.mxu0 0.0
    %636 = vmatprep.subr.mxu0 0.0
    %637 = vmatpush1.xpose.msra.mxu0 0.0
    %638 = vmatprep.subr.mxu0 0.0
    %639 = vmatpush1.xpose.msra.mxu0 0.0
    %640 = vmatprep.subr.mxu0 0.0
    %641 = vmatpush1.xpose.msra.mxu0 0.0
    %642 = vmatprep.subr.mxu0 0.0
    %643 = vmatpush1.xpose.msra.mxu0 0.0
    %644 = vmatprep.subr.mxu0 0.0
    %645 = vmatpush1.xpose.msra.mxu0 0.0
    %646 = vmatprep.subr.mxu0 0.0
    %647 = vmatpush1.xpose.msra.mxu0 0.0
    %648 = vmatprep.subr.mxu0 0.0
    %649 = vmatpush1.xpose.msra.mxu0 %v497
    %650 = vmatprep.subr.mxu0 0.0
    %651 = vmatpush1.xpose.msra.mxu0 %v495
    %652 = vmatprep.subr.mxu0 0.0
    %653 = vmatpush2.xpose.msra.mxu0 0.0
    %654 = vmatprep.subr.mxu0 0.0
    %655 = vmatpush2.xpose.msra.mxu0 0.0
    %656 = vmatprep.subr.mxu0 0.0
    %657 = vmatpush2.xpose.msra.mxu0 0.0
    %658 = vmatprep.subr.mxu0 0.0
    %659 = vmatpush2.xpose.msra.mxu0 0.0
    %660 = vmatprep.subr.mxu0 0.0
    %661 = vmatpush2.xpose.msra.mxu0 0.0
    %662 = vmatprep.subr.mxu0 0.0
    %663 = vmatpush2.xpose.msra.mxu0 0.0
    %664 = vmatprep.subr.mxu0 0.0
    %665 = vmatpush2.xpose.msra.mxu0 0.0
    %666 = vmatprep.subr.mxu0 0.0
    %667 = vmatpush2.xpose.msra.mxu0 0.0
    %668 = vmatprep.subr.mxu0 0.0
    %669 = vmatpush2.xpose.msra.mxu0 0.0
    %670 = vmatprep.subr.mxu0 0.0
    %671 = vmatpush2.xpose.msra.mxu0 0.0
    %672 = vmatprep.subr.mxu0 0.0
    %673 = vmatpush2.xpose.msra.mxu0 0.0
    %674 = vmatprep.subr.mxu0 0.0
    %675 = vmatpush2.xpose.msra.mxu0 0.0
    %676 = vmatprep.subr.mxu0 0.0
    %677 = vmatpush2.xpose.msra.mxu0 0.0
    %678 = vmatprep.subr.mxu0 0.0
    %679 = vmatpush2.xpose.msra.mxu0 0.0
    %680 = vmatprep.subr.mxu0 0.0
    %681 = vmatpush2.xpose.msra.mxu0 0.0
    %682 = vmatprep.subr.mxu0 0.0
    %683 = vmatpush2.xpose.msra.mxu0 0.0
    %684 = vmatprep.mubr.f32.mxu0 0.0
    %685 = vmatmul.mubr.f32.gmra.mxu0 %v615
    %v686 = vpop.f32.mrf.mxu0
    %v687 = vadd.f32 0.0, %v686
    %v688 = vpop.f32.mrf.mxu0
    %689 = vmatprep.mubr.f32.mxu0 0.0
    %690 = vmatmul.mubr.f32.gmra.mxu0 %v618
    %v691 = vpop.f32.mrf.mxu0
    %v692 = vadd.f32 0.0, %v691
    %v693 = vpop.f32.mrf.mxu0
    %694 = vdwg.mxu0
    %v695 = vmul.f32 %v687, 2.828427
    %v696 = vmul.f32 %v692, 2.828427
    %v697 = vadd.f32 %v695, %v474
    %v698 = vadd.f32 %v696, %v475
    %v699 = vsel %vm578, %v697, -inf
    %700 = vmax.xlane.f32.xlu0 %v699
    %v701 = vpop.xlane.xlu0 %700
    %v702 = vsel %vm578, %v698, -inf
    %703 = vmax.xlane.f32.xlu0 %v702
    %v704 = vpop.xlane.xlu0 %703
    %v705 = vsub.f32 %v697, %v701
    %v706 = vsub.f32 %v698, %v704
    %v707 = vmul.f32 %v705, 1.442695
    %v708 = vpow.pop %v707
    %v709 = vmul.f32 %v706, 1.442695
    %v710 = vpow.pop %v709
    %v711 = vsel %vm578, %v708, 0.0
    %712 = vadd.xlane.f32.xlu0 %v711
    %v713 = vpop.xlane.xlu0 %712
    %v714 = vsel %vm578, %v710, 0.0
    %715 = vadd.xlane.f32.xlu0 %v714
    %v716 = vpop.xlane.xlu0 %715
    %v717 = vrcp.pop %v713
    %v718 = vrcp.pop %v716
    %v719 = vmul.f32 %v708, %v717
    %v720 = vmul.f32 %v710, %v718
    %722 = vrot.lane.b32.xlu0 %v611, 64
    %v723 = vpop.permute.xlu0 %722
    %v725 = vmul.f32 %v466, %v723
    %v726 = vmul.f32 %v471, %v723
    %729 = vrot.lane.b32.xlu0 %v725, 64
    %v730 = vpop.permute.xlu0 %729
    %731 = vrot.lane.b32.xlu0 %v726, 64
    %v732 = vpop.permute.xlu0 %731
    %v736 = vsel %vm578, %v719, 0
    %v739 = vsel %vm578, %v720, 0
    %741 = vmatprep.subr.mxu0 0.0
    %742 = vmatpush1.msra.mxu0 0.0
    %743 = vmatprep.subr.mxu0 0.0
    %744 = vmatpush1.msra.mxu0 0.0
    %745 = vmatprep.subr.mxu0 0.0
    %746 = vmatpush1.msra.mxu0 0.0
    %747 = vmatprep.subr.mxu0 0.0
    %748 = vmatpush1.msra.mxu0 0.0
    %749 = vmatprep.subr.mxu0 0.0
    %750 = vmatpush1.msra.mxu0 0.0
    %751 = vmatprep.subr.mxu0 0.0
    %752 = vmatpush1.msra.mxu0 0.0
    %753 = vmatprep.subr.mxu0 0.0
    %754 = vmatpush1.msra.mxu0 0.0
    %755 = vmatprep.subr.mxu0 0.0
    %756 = vmatpush1.msra.mxu0 0.0
    %757 = vmatprep.subr.mxu0 0.0
    %758 = vmatpush1.msra.mxu0 0.0
    %759 = vmatprep.subr.mxu0 0.0
    %760 = vmatpush1.msra.mxu0 0.0
    %761 = vmatprep.subr.mxu0 0.0
    %762 = vmatpush1.msra.mxu0 0.0
    %763 = vmatprep.subr.mxu0 0.0
    %764 = vmatpush1.msra.mxu0 0.0
    %765 = vmatprep.subr.mxu0 0.0
    %766 = vmatpush1.msra.mxu0 0.0
    %767 = vmatprep.subr.mxu0 0.0
    %768 = vmatpush1.msra.mxu0 0.0
    %769 = vmatprep.subr.mxu0 0.0
    %770 = vmatpush1.msra.mxu0 %v732
    %771 = vmatprep.subr.mxu0 0.0
    %772 = vmatpush1.msra.mxu0 %v730
    %773 = vmatprep.subr.mxu0 0.0
    %774 = vmatpush2.msra.mxu0 0.0
    %775 = vmatprep.subr.mxu0 0.0
    %776 = vmatpush2.msra.mxu0 0.0
    %777 = vmatprep.subr.mxu0 0.0
    %778 = vmatpush2.msra.mxu0 0.0
    %779 = vmatprep.subr.mxu0 0.0
    %780 = vmatpush2.msra.mxu0 0.0
    %781 = vmatprep.subr.mxu0 0.0
    %782 = vmatpush2.msra.mxu0 0.0
    %783 = vmatprep.subr.mxu0 0.0
    %784 = vmatpush2.msra.mxu0 0.0
    %785 = vmatprep.subr.mxu0 0.0
    %786 = vmatpush2.msra.mxu0 0.0
    %787 = vmatprep.subr.mxu0 0.0
    %788 = vmatpush2.msra.mxu0 0.0
    %789 = vmatprep.subr.mxu0 0.0
    %790 = vmatpush2.msra.mxu0 0.0
    %791 = vmatprep.subr.mxu0 0.0
    %792 = vmatpush2.msra.mxu0 0.0
    %793 = vmatprep.subr.mxu0 0.0
    %794 = vmatpush2.msra.mxu0 0.0
    %795 = vmatprep.subr.mxu0 0.0
    %796 = vmatpush2.msra.mxu0 0.0
    %797 = vmatprep.subr.mxu0 0.0
    %798 = vmatpush2.msra.mxu0 0.0
    %799 = vmatprep.subr.mxu0 0.0
    %800 = vmatpush2.msra.mxu0 0.0
    %801 = vmatprep.subr.mxu0 0.0
    %802 = vmatpush2.msra.mxu0 0.0
    %803 = vmatprep.subr.mxu0 0.0
    %804 = vmatpush2.msra.mxu0 0.0
    %805 = vmatprep.mubr.f32.mxu0 0.0
    %806 = vmatmul.mubr.f32.gmra.mxu0 %v736
    %v807 = vpop.f32.mrf.mxu0
    %v808 = vadd.f32 0.0, %v807
    %v809 = vpop.f32.mrf.mxu0
    %810 = vmatprep.mubr.f32.mxu0 0.0
    %811 = vmatmul.mubr.f32.gmra.mxu0 %v739
    %v812 = vpop.f32.mrf.mxu0
    %v813 = vadd.f32 0.0, %v812
    %v814 = vpop.f32.mrf.mxu0
    %815 = vdwg.mxu0
    %818 = vrot.lane.b32.xlu0 %v605, 64
    %v819 = vpop.permute.xlu0 %818
    %820 = vrot.lane.b32.xlu0 %v606, 64
    %v821 = vpop.permute.xlu0 %820
    %v825 = vsel %vm578, %v599, 0
    %v828 = vsel %vm578, %v600, 0
    %830 = vmatprep.subr.mxu0 0.0
    %831 = vmatpush1.msra.mxu0 0.0
    %832 = vmatprep.subr.mxu0 0.0
    %833 = vmatpush1.msra.mxu0 0.0
    %834 = vmatprep.subr.mxu0 0.0
    %835 = vmatpush1.msra.mxu0 0.0
    %836 = vmatprep.subr.mxu0 0.0
    %837 = vmatpush1.msra.mxu0 0.0
    %838 = vmatprep.subr.mxu0 0.0
    %839 = vmatpush1.msra.mxu0 0.0
    %840 = vmatprep.subr.mxu0 0.0
    %841 = vmatpush1.msra.mxu0 0.0
    %842 = vmatprep.subr.mxu0 0.0
    %843 = vmatpush1.msra.mxu0 0.0
    %844 = vmatprep.subr.mxu0 0.0
    %845 = vmatpush1.msra.mxu0 0.0
    %846 = vmatprep.subr.mxu0 0.0
    %847 = vmatpush1.msra.mxu0 0.0
    %848 = vmatprep.subr.mxu0 0.0
    %849 = vmatpush1.msra.mxu0 0.0
    %850 = vmatprep.subr.mxu0 0.0
    %851 = vmatpush1.msra.mxu0 0.0
    %852 = vmatprep.subr.mxu0 0.0
    %853 = vmatpush1.msra.mxu0 0.0
    %854 = vmatprep.subr.mxu0 0.0
    %855 = vmatpush1.msra.mxu0 0.0
    %856 = vmatprep.subr.mxu0 0.0
    %857 = vmatpush1.msra.mxu0 0.0
    %858 = vmatprep.subr.mxu0 0.0
    %859 = vmatpush1.msra.mxu0 %v821
    %860 = vmatprep.subr.mxu0 0.0
    %861 = vmatpush1.msra.mxu0 %v819
    %862 = vmatprep.subr.mxu0 0.0
    %863 = vmatpush2.msra.mxu0 0.0
    %864 = vmatprep.subr.mxu0 0.0
    %865 = vmatpush2.msra.mxu0 0.0
    %866 = vmatprep.subr.mxu0 0.0
    %867 = vmatpush2.msra.mxu0 0.0
    %868 = vmatprep.subr.mxu0 0.0
    %869 = vmatpush2.msra.mxu0 0.0
    %870 = vmatprep.subr.mxu0 0.0
    %871 = vmatpush2.msra.mxu0 0.0
    %872 = vmatprep.subr.mxu0 0.0
    %873 = vmatpush2.msra.mxu0 0.0
    %874 = vmatprep.subr.mxu0 0.0
    %875 = vmatpush2.msra.mxu0 0.0
    %876 = vmatprep.subr.mxu0 0.0
    %877 = vmatpush2.msra.mxu0 0.0
    %878 = vmatprep.subr.mxu0 0.0
    %879 = vmatpush2.msra.mxu0 0.0
    %880 = vmatprep.subr.mxu0 0.0
    %881 = vmatpush2.msra.mxu0 0.0
    %882 = vmatprep.subr.mxu0 0.0
    %883 = vmatpush2.msra.mxu0 0.0
    %884 = vmatprep.subr.mxu0 0.0
    %885 = vmatpush2.msra.mxu0 0.0
    %886 = vmatprep.subr.mxu0 0.0
    %887 = vmatpush2.msra.mxu0 0.0
    %888 = vmatprep.subr.mxu0 0.0
    %889 = vmatpush2.msra.mxu0 0.0
    %890 = vmatprep.subr.mxu0 0.0
    %891 = vmatpush2.msra.mxu0 0.0
    %892 = vmatprep.subr.mxu0 0.0
    %893 = vmatpush2.msra.mxu0 0.0
    %894 = vmatprep.mubr.f32.mxu0 0.0
    %895 = vmatmul.mubr.f32.gmra.mxu0 %v825
    %v896 = vpop.f32.mrf.mxu0
    %v897 = vadd.f32 %v808, %v896
    %v898 = vpop.f32.mrf.mxu0
    %899 = vmatprep.mubr.f32.mxu0 0.0
    %900 = vmatmul.mubr.f32.gmra.mxu0 %v828
    %v901 = vpop.f32.mrf.mxu0
    %v902 = vadd.f32 %v813, %v901
    %v903 = vpop.f32.mrf.mxu0
    %904 = vdwg.mxu0
    %v905 = vld [vmem:[#allocation11 + $0x2] sm:$0x1]
    %v906 = vlaneseq
    %v907 = vshrl.u32 %v906, 7
    %v908 = vsub.s32 0, %v907
    %v909 = vrot.slane %v905, %v908
    %v910 = vmul.f32 %v466, %v909
    %v911 = vmul.f32 %v471, %v909
    %v913 = vsel %vm375, %v910, 0
    %v916 = vsel %vm375, %v911, 0
    %918 = vmatprep.subr.mxu0 0.0
    %919 = vmatpush1.xpose.msra.mxu0 0.0
    %920 = vmatprep.subr.mxu0 0.0
    %921 = vmatpush1.xpose.msra.mxu0 0.0
    %922 = vmatprep.subr.mxu0 0.0
    %923 = vmatpush1.xpose.msra.mxu0 0.0
    %924 = vmatprep.subr.mxu0 0.0
    %925 = vmatpush1.xpose.msra.mxu0 0.0
    %926 = vmatprep.subr.mxu0 0.0
    %927 = vmatpush1.xpose.msra.mxu0 0.0
    %928 = vmatprep.subr.mxu0 0.0
    %929 = vmatpush1.xpose.msra.mxu0 0.0
    %930 = vmatprep.subr.mxu0 0.0
    %931 = vmatpush1.xpose.msra.mxu0 0.0
    %932 = vmatprep.subr.mxu0 0.0
    %933 = vmatpush1.xpose.msra.mxu0 0.0
    %934 = vmatprep.subr.mxu0 0.0
    %935 = vmatpush1.xpose.msra.mxu0 0.0
    %936 = vmatprep.subr.mxu0 0.0
    %937 = vmatpush1.xpose.msra.mxu0 0.0
    %938 = vmatprep.subr.mxu0 0.0
    %939 = vmatpush1.xpose.msra.mxu0 0.0
    %940 = vmatprep.subr.mxu0 0.0
    %941 = vmatpush1.xpose.msra.mxu0 0.0
    %942 = vmatprep.subr.mxu0 0.0
    %943 = vmatpush1.xpose.msra.mxu0 0.0
    %944 = vmatprep.subr.mxu0 0.0
    %945 = vmatpush1.xpose.msra.mxu0 0.0
    %946 = vmatprep.subr.mxu0 0.0
    %947 = vmatpush1.xpose.msra.mxu0 %v497
    %948 = vmatprep.subr.mxu0 0.0
    %949 = vmatpush1.xpose.msra.mxu0 %v495
    %950 = vmatprep.subr.mxu0 0.0
    %951 = vmatpush2.xpose.msra.mxu0 0.0
    %952 = vmatprep.subr.mxu0 0.0
    %953 = vmatpush2.xpose.msra.mxu0 0.0
    %954 = vmatprep.subr.mxu0 0.0
    %955 = vmatpush2.xpose.msra.mxu0 0.0
    %956 = vmatprep.subr.mxu0 0.0
    %957 = vmatpush2.xpose.msra.mxu0 0.0
    %958 = vmatprep.subr.mxu0 0.0
    %959 = vmatpush2.xpose.msra.mxu0 0.0
    %960 = vmatprep.subr.mxu0 0.0
    %961 = vmatpush2.xpose.msra.mxu0 0.0
    %962 = vmatprep.subr.mxu0 0.0
    %963 = vmatpush2.xpose.msra.mxu0 0.0
    %964 = vmatprep.subr.mxu0 0.0
    %965 = vmatpush2.xpose.msra.mxu0 0.0
    %966 = vmatprep.subr.mxu0 0.0
    %967 = vmatpush2.xpose.msra.mxu0 0.0
    %968 = vmatprep.subr.mxu0 0.0
    %969 = vmatpush2.xpose.msra.mxu0 0.0
    %970 = vmatprep.subr.mxu0 0.0
    %971 = vmatpush2.xpose.msra.mxu0 0.0
    %972 = vmatprep.subr.mxu0 0.0
    %973 = vmatpush2.xpose.msra.mxu0 0.0
    %974 = vmatprep.subr.mxu0 0.0
    %975 = vmatpush2.xpose.msra.mxu0 0.0
    %976 = vmatprep.subr.mxu0 0.0
    %977 = vmatpush2.xpose.msra.mxu0 0.0
    %978 = vmatprep.subr.mxu0 0.0
    %979 = vmatpush2.xpose.msra.mxu0 0.0
    %980 = vmatprep.subr.mxu0 0.0
    %981 = vmatpush2.xpose.msra.mxu0 0.0
    %982 = vmatprep.mubr.f32.mxu0 0.0
    %983 = vmatmul.mubr.f32.gmra.mxu0 %v913
    %v984 = vpop.f32.mrf.mxu0
    %v985 = vadd.f32 0.0, %v984
    %v986 = vpop.f32.mrf.mxu0
    %987 = vmatprep.mubr.f32.mxu0 0.0
    %988 = vmatmul.mubr.f32.gmra.mxu0 %v916
    %v989 = vpop.f32.mrf.mxu0
    %v990 = vadd.f32 0.0, %v989
    %v991 = vpop.f32.mrf.mxu0
    %992 = vdwg.mxu0
    %v993 = vmul.f32 %v985, 2.828427
    %v994 = vmul.f32 %v990, 2.828427
    %v995 = vadd.f32 %v993, %v474
    %v996 = vadd.f32 %v994, %v475
    %v997 = vsel %vm578, %v995, -inf
    %998 = vmax.xlane.f32.xlu0 %v997
    %v999 = vpop.xlane.xlu0 %998
    %v1000 = vsel %vm578, %v996, -inf
    %1001 = vmax.xlane.f32.xlu0 %v1000
    %v1002 = vpop.xlane.xlu0 %1001
    %v1003 = vsub.f32 %v995, %v999
    %v1004 = vsub.f32 %v996, %v1002
    %v1005 = vmul.f32 %v1003, 1.442695
    %v1006 = vpow.pop %v1005
    %v1007 = vmul.f32 %v1004, 1.442695
    %v1008 = vpow.pop %v1007
    %v1009 = vsel %vm578, %v1006, 0.0
    %1010 = vadd.xlane.f32.xlu0 %v1009
    %v1011 = vpop.xlane.xlu0 %1010
    %v1012 = vsel %vm578, %v1008, 0.0
    %1013 = vadd.xlane.f32.xlu0 %v1012
    %v1014 = vpop.xlane.xlu0 %1013
    %v1015 = vrcp.pop %v1011
    %v1016 = vrcp.pop %v1014
    %v1017 = vmul.f32 %v1006, %v1015
    %v1018 = vmul.f32 %v1008, %v1016
    %1020 = vrot.lane.b32.xlu0 %v909, 64
    %v1021 = vpop.permute.xlu0 %1020
    %v1023 = vmul.f32 %v466, %v1021
    %v1024 = vmul.f32 %v471, %v1021
    %1027 = vrot.lane.b32.xlu0 %v1023, 64
    %v1028 = vpop.permute.xlu0 %1027
    %1029 = vrot.lane.b32.xlu0 %v1024, 64
    %v1030 = vpop.permute.xlu0 %1029
    %v1034 = vsel %vm578, %v1017, 0
    %v1037 = vsel %vm578, %v1018, 0
    %1039 = vmatprep.subr.mxu0 0.0
    %1040 = vmatpush1.msra.mxu0 0.0
    %1041 = vmatprep.subr.mxu0 0.0
    %1042 = vmatpush1.msra.mxu0 0.0
    %1043 = vmatprep.subr.mxu0 0.0
    %1044 = vmatpush1.msra.mxu0 0.0
    %1045 = vmatprep.subr.mxu0 0.0
    %1046 = vmatpush1.msra.mxu0 0.0
    %1047 = vmatprep.subr.mxu0 0.0
    %1048 = vmatpush1.msra.mxu0 0.0
    %1049 = vmatprep.subr.mxu0 0.0
    %1050 = vmatpush1.msra.mxu0 0.0
    %1051 = vmatprep.subr.mxu0 0.0
    %1052 = vmatpush1.msra.mxu0 0.0
    %1053 = vmatprep.subr.mxu0 0.0
    %1054 = vmatpush1.msra.mxu0 0.0
    %1055 = vmatprep.subr.mxu0 0.0
    %1056 = vmatpush1.msra.mxu0 0.0
    %1057 = vmatprep.subr.mxu0 0.0
    %1058 = vmatpush1.msra.mxu0 0.0
    %1059 = vmatprep.subr.mxu0 0.0
    %1060 = vmatpush1.msra.mxu0 0.0
    %1061 = vmatprep.subr.mxu0 0.0
    %1062 = vmatpush1.msra.mxu0 0.0
    %1063 = vmatprep.subr.mxu0 0.0
    %1064 = vmatpush1.msra.mxu0 0.0
    %1065 = vmatprep.subr.mxu0 0.0
    %1066 = vmatpush1.msra.mxu0 0.0
    %1067 = vmatprep.subr.mxu0 0.0
    %1068 = vmatpush1.msra.mxu0 %v1030
    %1069 = vmatprep.subr.mxu0 0.0
    %1070 = vmatpush1.msra.mxu0 %v1028
    %1071 = vmatprep.subr.mxu0 0.0
    %1072 = vmatpush2.msra.mxu0 0.0
    %1073 = vmatprep.subr.mxu0 0.0
    %1074 = vmatpush2.msra.mxu0 0.0
    %1075 = vmatprep.subr.mxu0 0.0
    %1076 = vmatpush2.msra.mxu0 0.0
    %1077 = vmatprep.subr.mxu0 0.0
    %1078 = vmatpush2.msra.mxu0 0.0
    %1079 = vmatprep.subr.mxu0 0.0
    %1080 = vmatpush2.msra.mxu0 0.0
    %1081 = vmatprep.subr.mxu0 0.0
    %1082 = vmatpush2.msra.mxu0 0.0
    %1083 = vmatprep.subr.mxu0 0.0
    %1084 = vmatpush2.msra.mxu0 0.0
    %1085 = vmatprep.subr.mxu0 0.0
    %1086 = vmatpush2.msra.mxu0 0.0
    %1087 = vmatprep.subr.mxu0 0.0
    %1088 = vmatpush2.msra.mxu0 0.0
    %1089 = vmatprep.subr.mxu0 0.0
    %1090 = vmatpush2.msra.mxu0 0.0
    %1091 = vmatprep.subr.mxu0 0.0
    %1092 = vmatpush2.msra.mxu0 0.0
    %1093 = vmatprep.subr.mxu0 0.0
    %1094 = vmatpush2.msra.mxu0 0.0
    %1095 = vmatprep.subr.mxu0 0.0
    %1096 = vmatpush2.msra.mxu0 0.0
    %1097 = vmatprep.subr.mxu0 0.0
    %1098 = vmatpush2.msra.mxu0 0.0
    %1099 = vmatprep.subr.mxu0 0.0
    %1100 = vmatpush2.msra.mxu0 0.0
    %1101 = vmatprep.subr.mxu0 0.0
    %1102 = vmatpush2.msra.mxu0 0.0
    %1103 = vmatprep.mubr.f32.mxu0 0.0
    %1104 = vmatmul.mubr.f32.gmra.mxu0 %v1034
    %v1105 = vpop.f32.mrf.mxu0
    %v1106 = vadd.f32 0.0, %v1105
    %v1107 = vpop.f32.mrf.mxu0
    %1108 = vmatprep.mubr.f32.mxu0 0.0
    %1109 = vmatmul.mubr.f32.gmra.mxu0 %v1037
    %v1110 = vpop.f32.mrf.mxu0
    %v1111 = vadd.f32 0.0, %v1110
    %v1112 = vpop.f32.mrf.mxu0
    %1113 = vdwg.mxu0
    %v1114 = vadd.f32 %v897, %v1106
    %v1115 = vadd.f32 %v902, %v1111
    %v1116 = vld [vmem:[#allocation11 + $0x3] sm:$0x1]
    %v1117 = vlaneseq
    %v1118 = vshrl.u32 %v1117, 7
    %v1119 = vsub.s32 0, %v1118
    %v1120 = vrot.slane %v1116, %v1119
    %v1121 = vmul.f32 %v466, %v1120
    %v1122 = vmul.f32 %v471, %v1120
    %v1124 = vsel %vm375, %v1121, 0
    %v1127 = vsel %vm375, %v1122, 0
    %1129 = vmatprep.subr.mxu0 0.0
    %1130 = vmatpush1.xpose.msra.mxu0 0.0
    %1131 = vmatprep.subr.mxu0 0.0
    %1132 = vmatpush1.xpose.msra.mxu0 0.0
    %1133 = vmatprep.subr.mxu0 0.0
    %1134 = vmatpush1.xpose.msra.mxu0 0.0
    %1135 = vmatprep.subr.mxu0 0.0
    %1136 = vmatpush1.xpose.msra.mxu0 0.0
    %1137 = vmatprep.subr.mxu0 0.0
    %1138 = vmatpush1.xpose.msra.mxu0 0.0
    %1139 = vmatprep.subr.mxu0 0.0
    %1140 = vmatpush1.xpose.msra.mxu0 0.0
    %1141 = vmatprep.subr.mxu0 0.0
    %1142 = vmatpush1.xpose.msra.mxu0 0.0
    %1143 = vmatprep.subr.mxu0 0.0
    %1144 = vmatpush1.xpose.msra.mxu0 0.0
    %1145 = vmatprep.subr.mxu0 0.0
    %1146 = vmatpush1.xpose.msra.mxu0 0.0
    %1147 = vmatprep.subr.mxu0 0.0
    %1148 = vmatpush1.xpose.msra.mxu0 0.0
    %1149 = vmatprep.subr.mxu0 0.0
    %1150 = vmatpush1.xpose.msra.mxu0 0.0
    %1151 = vmatprep.subr.mxu0 0.0
    %1152 = vmatpush1.xpose.msra.mxu0 0.0
    %1153 = vmatprep.subr.mxu0 0.0
    %1154 = vmatpush1.xpose.msra.mxu0 0.0
    %1155 = vmatprep.subr.mxu0 0.0
    %1156 = vmatpush1.xpose.msra.mxu0 0.0
    %1157 = vmatprep.subr.mxu0 0.0
    %1158 = vmatpush1.xpose.msra.mxu0 %v497
    %1159 = vmatprep.subr.mxu0 0.0
    %1160 = vmatpush1.xpose.msra.mxu0 %v495
    %1161 = vmatprep.subr.mxu0 0.0
    %1162 = vmatpush2.xpose.msra.mxu0 0.0
    %1163 = vmatprep.subr.mxu0 0.0
    %1164 = vmatpush2.xpose.msra.mxu0 0.0
    %1165 = vmatprep.subr.mxu0 0.0
    %1166 = vmatpush2.xpose.msra.mxu0 0.0
    %1167 = vmatprep.subr.mxu0 0.0
    %1168 = vmatpush2.xpose.msra.mxu0 0.0
    %1169 = vmatprep.subr.mxu0 0.0
    %1170 = vmatpush2.xpose.msra.mxu0 0.0
    %1171 = vmatprep.subr.mxu0 0.0
    %1172 = vmatpush2.xpose.msra.mxu0 0.0
    %1173 = vmatprep.subr.mxu0 0.0
    %1174 = vmatpush2.xpose.msra.mxu0 0.0
    %1175 = vmatprep.subr.mxu0 0.0
    %1176 = vmatpush2.xpose.msra.mxu0 0.0
    %1177 = vmatprep.subr.mxu0 0.0
    %1178 = vmatpush2.xpose.msra.mxu0 0.0
    %1179 = vmatprep.subr.mxu0 0.0
    %1180 = vmatpush2.xpose.msra.mxu0 0.0
    %1181 = vmatprep.subr.mxu0 0.0
    %1182 = vmatpush2.xpose.msra.mxu0 0.0
    %1183 = vmatprep.subr.mxu0 0.0
    %1184 = vmatpush2.xpose.msra.mxu0 0.0
    %1185 = vmatprep.subr.mxu0 0.0
    %1186 = vmatpush2.xpose.msra.mxu0 0.0
    %1187 = vmatprep.subr.mxu0 0.0
    %1188 = vmatpush2.xpose.msra.mxu0 0.0
    %1189 = vmatprep.subr.mxu0 0.0
    %1190 = vmatpush2.xpose.msra.mxu0 0.0
    %1191 = vmatprep.subr.mxu0 0.0
    %1192 = vmatpush2.xpose.msra.mxu0 0.0
    %1193 = vmatprep.mubr.f32.mxu0 0.0
    %1194 = vmatmul.mubr.f32.gmra.mxu0 %v1124
    %v1195 = vpop.f32.mrf.mxu0
    %v1196 = vadd.f32 0.0, %v1195
    %v1197 = vpop.f32.mrf.mxu0
    %1198 = vmatprep.mubr.f32.mxu0 0.0
    %1199 = vmatmul.mubr.f32.gmra.mxu0 %v1127
    %v1200 = vpop.f32.mrf.mxu0
    %v1201 = vadd.f32 0.0, %v1200
    %v1202 = vpop.f32.mrf.mxu0
    %1203 = vdwg.mxu0
    %v1204 = vmul.f32 %v1196, 2.828427
    %v1205 = vmul.f32 %v1201, 2.828427
    %v1206 = vadd.f32 %v1204, %v474
    %v1207 = vadd.f32 %v1205, %v475
    %v1208 = vsel %vm578, %v1206, -inf
    %1209 = vmax.xlane.f32.xlu0 %v1208
    %v1210 = vpop.xlane.xlu0 %1209
    %v1211 = vsel %vm578, %v1207, -inf
    %1212 = vmax.xlane.f32.xlu0 %v1211
    %v1213 = vpop.xlane.xlu0 %1212
    %v1214 = vsub.f32 %v1206, %v1210
    %v1215 = vsub.f32 %v1207, %v1213
    %v1216 = vmul.f32 %v1214, 1.442695
    %v1217 = vpow.pop %v1216
    %v1218 = vmul.f32 %v1215, 1.442695
    %v1219 = vpow.pop %v1218
    %v1220 = vsel %vm578, %v1217, 0.0
    %1221 = vadd.xlane.f32.xlu0 %v1220
    %v1222 = vpop.xlane.xlu0 %1221
    %v1223 = vsel %vm578, %v1219, 0.0
    %1224 = vadd.xlane.f32.xlu0 %v1223
    %v1225 = vpop.xlane.xlu0 %1224
    %v1226 = vrcp.pop %v1222
    %v1227 = vrcp.pop %v1225
    %v1228 = vmul.f32 %v1217, %v1226
    %v1229 = vmul.f32 %v1219, %v1227
    %1231 = vrot.lane.b32.xlu0 %v1120, 64
    %v1232 = vpop.permute.xlu0 %1231
    %v1234 = vmul.f32 %v466, %v1232
    %v1235 = vmul.f32 %v471, %v1232
    %1238 = vrot.lane.b32.xlu0 %v1234, 64
    %v1239 = vpop.permute.xlu0 %1238
    %1240 = vrot.lane.b32.xlu0 %v1235, 64
    %v1241 = vpop.permute.xlu0 %1240
    %v1245 = vsel %vm578, %v1228, 0
    %v1248 = vsel %vm578, %v1229, 0
    %1250 = vmatprep.subr.mxu0 0.0
    %1251 = vmatpush1.msra.mxu0 0.0
    %1252 = vmatprep.subr.mxu0 0.0
    %1253 = vmatpush1.msra.mxu0 0.0
    %1254 = vmatprep.subr.mxu0 0.0
    %1255 = vmatpush1.msra.mxu0 0.0
    %1256 = vmatprep.subr.mxu0 0.0
    %1257 = vmatpush1.msra.mxu0 0.0
    %1258 = vmatprep.subr.mxu0 0.0
    %1259 = vmatpush1.msra.mxu0 0.0
    %1260 = vmatprep.subr.mxu0 0.0
    %1261 = vmatpush1.msra.mxu0 0.0
    %1262 = vmatprep.subr.mxu0 0.0
    %1263 = vmatpush1.msra.mxu0 0.0
    %1264 = vmatprep.subr.mxu0 0.0
    %1265 = vmatpush1.msra.mxu0 0.0
    %1266 = vmatprep.subr.mxu0 0.0
    %1267 = vmatpush1.msra.mxu0 0.0
    %1268 = vmatprep.subr.mxu0 0.0
    %1269 = vmatpush1.msra.mxu0 0.0
    %1270 = vmatprep.subr.mxu0 0.0
    %1271 = vmatpush1.msra.mxu0 0.0
    %1272 = vmatprep.subr.mxu0 0.0
    %1273 = vmatpush1.msra.mxu0 0.0
    %1274 = vmatprep.subr.mxu0 0.0
    %1275 = vmatpush1.msra.mxu0 0.0
    %1276 = vmatprep.subr.mxu0 0.0
    %1277 = vmatpush1.msra.mxu0 0.0
    %1278 = vmatprep.subr.mxu0 0.0
    %1279 = vmatpush1.msra.mxu0 %v1241
    %1280 = vmatprep.subr.mxu0 0.0
    %1281 = vmatpush1.msra.mxu0 %v1239
    %1282 = vmatprep.subr.mxu0 0.0
    %1283 = vmatpush2.msra.mxu0 0.0
    %1284 = vmatprep.subr.mxu0 0.0
    %1285 = vmatpush2.msra.mxu0 0.0
    %1286 = vmatprep.subr.mxu0 0.0
    %1287 = vmatpush2.msra.mxu0 0.0
    %1288 = vmatprep.subr.mxu0 0.0
    %1289 = vmatpush2.msra.mxu0 0.0
    %1290 = vmatprep.subr.mxu0 0.0
    %1291 = vmatpush2.msra.mxu0 0.0
    %1292 = vmatprep.subr.mxu0 0.0
    %1293 = vmatpush2.msra.mxu0 0.0
    %1294 = vmatprep.subr.mxu0 0.0
    %1295 = vmatpush2.msra.mxu0 0.0
    %1296 = vmatprep.subr.mxu0 0.0
    %1297 = vmatpush2.msra.mxu0 0.0
    %1298 = vmatprep.subr.mxu0 0.0
    %1299 = vmatpush2.msra.mxu0 0.0
    %1300 = vmatprep.subr.mxu0 0.0
    %1301 = vmatpush2.msra.mxu0 0.0
    %1302 = vmatprep.subr.mxu0 0.0
    %1303 = vmatpush2.msra.mxu0 0.0
    %1304 = vmatprep.subr.mxu0 0.0
    %1305 = vmatpush2.msra.mxu0 0.0
    %1306 = vmatprep.subr.mxu0 0.0
    %1307 = vmatpush2.msra.mxu0 0.0
    %1308 = vmatprep.subr.mxu0 0.0
    %1309 = vmatpush2.msra.mxu0 0.0
    %1310 = vmatprep.subr.mxu0 0.0
    %1311 = vmatpush2.msra.mxu0 0.0
    %1312 = vmatprep.subr.mxu0 0.0
    %1313 = vmatpush2.msra.mxu0 0.0
    %1314 = vmatprep.mubr.f32.mxu0 0.0
    %1315 = vmatmul.mubr.f32.gmra.mxu0 %v1245
    %v1316 = vpop.f32.mrf.mxu0
    %v1317 = vadd.f32 0.0, %v1316
    %v1318 = vpop.f32.mrf.mxu0
    %1319 = vmatprep.mubr.f32.mxu0 0.0
    %1320 = vmatmul.mubr.f32.gmra.mxu0 %v1248
    %v1321 = vpop.f32.mrf.mxu0
    %v1322 = vadd.f32 0.0, %v1321
    %v1323 = vpop.f32.mrf.mxu0
    %1324 = vdwg.mxu0
    %v1325 = vadd.f32 %v1114, %v1317
    %v1326 = vadd.f32 %v1115, %v1322
    %v1327 = vld [vmem:[%s9] sm:$0xff]
    %v1328 = vld [vmem:[%s9 + $0x8] sm:$0xff]
    %v1329 = vld [vmem:[%s9 + $0x10] sm:$0xff]
    %v1330 = vld [vmem:[%s9 + $0x18] sm:$0xff]
    %1331 = vrot.lane.b32.xlu0 %v390, 32
    %v1332 = vpop.permute.xlu0 %1331
    %v1335 = vsel %vm375, %v1325, 0
    %v1338 = vsel %vm375, %v1326, 0
    %1340 = vmatprep.subr.mxu0 0.0
    %1341 = vmatpush1.msra.mxu0 0.0
    %1342 = vmatprep.subr.mxu0 0.0
    %1343 = vmatpush1.msra.mxu0 0.0
    %1344 = vmatprep.subr.mxu0 0.0
    %1345 = vmatpush1.msra.mxu0 0.0
    %1346 = vmatprep.subr.mxu0 0.0
    %1347 = vmatpush1.msra.mxu0 0.0
    %1348 = vmatprep.subr.mxu0 0.0
    %1349 = vmatpush1.msra.mxu0 0.0
    %1350 = vmatprep.subr.mxu0 0.0
    %1351 = vmatpush1.msra.mxu0 0.0
    %1352 = vmatprep.subr.mxu0 0.0
    %1353 = vmatpush1.msra.mxu0 0.0
    %1354 = vmatprep.subr.mxu0 0.0
    %1355 = vmatpush1.msra.mxu0 0.0
    %1356 = vmatprep.subr.mxu0 0.0
    %1357 = vmatpush1.msra.mxu0 0.0
    %1358 = vmatprep.subr.mxu0 0.0
    %1359 = vmatpush1.msra.mxu0 0.0
    %1360 = vmatprep.subr.mxu0 0.0
    %1361 = vmatpush1.msra.mxu0 0.0
    %1362 = vmatprep.subr.mxu0 0.0
    %1363 = vmatpush1.msra.mxu0 0.0
    %1364 = vmatprep.subr.mxu0 0.0
    %1365 = vmatpush1.msra.mxu0 %v1330
    %1366 = vmatprep.subr.mxu0 0.0
    %1367 = vmatpush1.msra.mxu0 %v1329
    %1368 = vmatprep.subr.mxu0 0.0
    %1369 = vmatpush1.msra.mxu0 %v1328
    %1370 = vmatprep.subr.mxu0 0.0
    %1371 = vmatpush1.msra.mxu0 %v1327
    %1372 = vmatprep.subr.mxu0 0.0
    %1373 = vmatpush2.msra.mxu0 0.0
    %1374 = vmatprep.subr.mxu0 0.0
    %1375 = vmatpush2.msra.mxu0 0.0
    %1376 = vmatprep.subr.mxu0 0.0
    %1377 = vmatpush2.msra.mxu0 0.0
    %1378 = vmatprep.subr.mxu0 0.0
    %1379 = vmatpush2.msra.mxu0 0.0
    %1380 = vmatprep.subr.mxu0 0.0
    %1381 = vmatpush2.msra.mxu0 0.0
    %1382 = vmatprep.subr.mxu0 0.0
    %1383 = vmatpush2.msra.mxu0 0.0
    %1384 = vmatprep.subr.mxu0 0.0
    %1385 = vmatpush2.msra.mxu0 0.0
    %1386 = vmatprep.subr.mxu0 0.0
    %1387 = vmatpush2.msra.mxu0 0.0
    %1388 = vmatprep.subr.mxu0 0.0
    %1389 = vmatpush2.msra.mxu0 0.0
    %1390 = vmatprep.subr.mxu0 0.0
    %1391 = vmatpush2.msra.mxu0 0.0
    %1392 = vmatprep.subr.mxu0 0.0
    %1393 = vmatpush2.msra.mxu0 0.0
    %1394 = vmatprep.subr.mxu0 0.0
    %1395 = vmatpush2.msra.mxu0 0.0
    %1396 = vmatprep.subr.mxu0 0.0
    %1397 = vmatpush2.msra.mxu0 0.0
    %1398 = vmatprep.subr.mxu0 0.0
    %1399 = vmatpush2.msra.mxu0 0.0
    %1400 = vmatprep.subr.mxu0 0.0
    %1401 = vmatpush2.msra.mxu0 0.0
    %1402 = vmatprep.subr.mxu0 0.0
    %1403 = vmatpush2.msra.mxu0 0.0
    %1404 = vmatprep.mubr.f32.mxu0 0.0
    %1405 = vmatmul.mubr.f32.gmra.mxu0 %v1335
    %v1406 = vpop.f32.mrf.mxu0
    %v1407 = vadd.f32 %v1332, %v1406
    %v1408 = vpop.f32.mrf.mxu0
    %1409 = vmatprep.mubr.f32.mxu0 0.0
    %1410 = vmatmul.mubr.f32.gmra.mxu0 %v1338
    %v1411 = vpop.f32.mrf.mxu0
    %v1412 = vadd.f32 %v1332, %v1411
    %v1413 = vpop.f32.mrf.mxu0
    %1414 = vdwg.mxu0
    %v1417 = vcombine.high %v1407, %v1407
    %v1419 = vunpack.c.l.s4 1983009808
    %v1420 = vunpack.c.0.s8 %v1419
    %v1421 = vlaneseq
    %v1422 = vshrl.u32 %v1421, 7
    %v1423 = vsub.s32 %v1420, %v1422
    %v1424 = vrot.slane %v1407, %v1423
    %v1426 = vunpack.c.l.s4 1983009808
    %v1427 = vunpack.c.0.s8 %v1426
    %v1428 = vlaneseq
    %v1429 = vshrl.u32 %v1428, 7
    %v1430 = vsub.s32 %v1427, %v1429
    %v1431 = vrot.slane %v1417, %v1430
    %v1432 = vcombine.high %v1424, %v1424
    %v1433 = vcombine.high %v1431, %v1431
    %v1434 = vcombine.high %v1412, %v1412
    %v1436 = vunpack.c.l.s4 1983009808
    %v1437 = vunpack.c.0.s8 %v1436
    %v1438 = vlaneseq
    %v1439 = vshrl.u32 %v1438, 7
    %v1440 = vsub.s32 %v1437, %v1439
    %v1441 = vrot.slane %v1412, %v1440
    %v1443 = vunpack.c.l.s4 1983009808
    %v1444 = vunpack.c.0.s8 %v1443
    %v1445 = vlaneseq
    %v1446 = vshrl.u32 %v1445, 7
    %v1447 = vsub.s32 %v1444, %v1446
    %v1448 = vrot.slane %v1434, %v1447
    %v1449 = vcombine.high %v1441, %v1441
    %v1450 = vcombine.high %v1448, %v1448
    %v1459 = vadd.f32 %v243, %v1424
    %v1460 = vadd.f32 %v244, %v1432
    %v1461 = vadd.f32 %v245, %v1431
    %v1462 = vadd.f32 %v246, %v1433
    %v1463 = vadd.f32 %v247, %v1441
    %v1464 = vadd.f32 %v248, %v1449
    %v1465 = vadd.f32 %v249, %v1448
    %v1466 = vadd.f32 %v250, %v1450
    %v1475 = vcombine.low %v1459, %v1460
    %v1476 = vcombine.low %v1461, %v1462
    %v1478 = vunpack.c.l.s4 1983009808
    %v1479 = vunpack.c.0.s8 %v1478
    %v1480 = vlaneseq
    %v1481 = vshrl.u32 %v1480, 7
    %v1482 = vsub.s32 %v1479, %v1481
    %v1483 = vrot.slane %v1475, %v1482
    %v1485 = vunpack.c.l.s4 1983009808
    %v1486 = vunpack.c.0.s8 %v1485
    %v1487 = vlaneseq
    %v1488 = vshrl.u32 %v1487, 7
    %v1489 = vsub.s32 %v1486, %v1488
    %v1490 = vrot.slane %v1476, %v1489
    %v1491 = vcombine.low %v1483, %v1490
    %v1492 = vcombine.low %v1463, %v1464
    %v1493 = vcombine.low %v1465, %v1466
    %v1495 = vunpack.c.l.s4 1983009808
    %v1496 = vunpack.c.0.s8 %v1495
    %v1497 = vlaneseq
    %v1498 = vshrl.u32 %v1497, 7
    %v1499 = vsub.s32 %v1496, %v1498
    %v1500 = vrot.slane %v1492, %v1499
    %v1502 = vunpack.c.l.s4 1983009808
    %v1503 = vunpack.c.0.s8 %v1502
    %v1504 = vlaneseq
    %v1505 = vshrl.u32 %v1504, 7
    %v1506 = vsub.s32 %v1503, %v1505
    %v1507 = vrot.slane %v1493, %v1506
    %v1508 = vcombine.low %v1500, %v1507
    %v1511 = vsel %vm375, %v1491, 0.0
    %1512 = vadd.xlane.f32.xlu0 %v1511
    %v1513 = vpop.xlane.xlu0 %1512
    %v1514 = vsel %vm375, %v1508, 0.0
    %1515 = vadd.xlane.f32.xlu0 %v1514
    %v1516 = vpop.xlane.xlu0 %1515
    %v1517 = vrcp.pop 32.0
    %v1518 = vmul.f32 %v1513, %v1517
    %v1519 = vmul.f32 %v1516, %v1517
    %v1520 = vmul.f32 %v1459, %v1459
    %v1521 = vmul.f32 %v1460, %v1460
    %v1522 = vmul.f32 %v1461, %v1461
    %v1523 = vmul.f32 %v1462, %v1462
    %v1524 = vmul.f32 %v1463, %v1463
    %v1525 = vmul.f32 %v1464, %v1464
    %v1526 = vmul.f32 %v1465, %v1465
    %v1527 = vmul.f32 %v1466, %v1466
    %v1536 = vcombine.low %v1520, %v1521
    %v1537 = vcombine.low %v1522, %v1523
    %v1539 = vunpack.c.l.s4 1983009808
    %v1540 = vunpack.c.0.s8 %v1539
    %v1541 = vlaneseq
    %v1542 = vshrl.u32 %v1541, 7
    %v1543 = vsub.s32 %v1540, %v1542
    %v1544 = vrot.slane %v1536, %v1543
    %v1546 = vunpack.c.l.s4 1983009808
    %v1547 = vunpack.c.0.s8 %v1546
    %v1548 = vlaneseq
    %v1549 = vshrl.u32 %v1548, 7
    %v1550 = vsub.s32 %v1547, %v1549
    %v1551 = vrot.slane %v1537, %v1550
    %v1552 = vcombine.low %v1544, %v1551
    %v1553 = vcombine.low %v1524, %v1525
    %v1554 = vcombine.low %v1526, %v1527
    %v1556 = vunpack.c.l.s4 1983009808
    %v1557 = vunpack.c.0.s8 %v1556
    %v1558 = vlaneseq
    %v1559 = vshrl.u32 %v1558, 7
    %v1560 = vsub.s32 %v1557, %v1559
    %v1561 = vrot.slane %v1553, %v1560
    %v1563 = vunpack.c.l.s4 1983009808
    %v1564 = vunpack.c.0.s8 %v1563
    %v1565 = vlaneseq
    %v1566 = vshrl.u32 %v1565, 7
    %v1567 = vsub.s32 %v1564, %v1566
    %v1568 = vrot.slane %v1554, %v1567
    %v1569 = vcombine.low %v1561, %v1568
    %v1572 = vsel %vm375, %v1552, 0.0
    %1573 = vadd.xlane.f32.xlu0 %v1572
    %v1574 = vpop.xlane.xlu0 %1573
    %v1575 = vsel %vm375, %v1569, 0.0
    %1576 = vadd.xlane.f32.xlu0 %v1575
    %v1577 = vpop.xlane.xlu0 %1576
    %v1578 = vmul.f32 %v1574, %v1517
    %v1579 = vmul.f32 %v1577, %v1517
    %v1580 = vmul.f32 %v1518, %v1518
    %v1581 = vmul.f32 %v1519, %v1519
    %v1582 = vsub.f32 %v1578, %v1580
    %v1583 = vsub.f32 %v1579, %v1581
    %v1587 = vunpack.c.l.s4 269488144
    %v1588 = vunpack.c.0.s8 %v1587
    %v1589 = vlaneseq
    %v1590 = vshrl.u32 %v1589, 7
    %v1591 = vsub.s32 %v1588, %v1590
    %v1592 = vrot.slane %v1518, %v1591
    %v1594 = vunpack.c.l.s4 842150450
    %v1595 = vunpack.c.0.s8 %v1594
    %v1596 = vlaneseq
    %v1597 = vshrl.u32 %v1596, 7
    %v1598 = vsub.s32 %v1595, %v1597
    %v1599 = vrot.slane %v1518, %v1598
    %v1601 = vunpack.c.l.s4 1414812756
    %v1602 = vunpack.c.0.s8 %v1601
    %v1603 = vlaneseq
    %v1604 = vshrl.u32 %v1603, 7
    %v1605 = vsub.s32 %v1602, %v1604
    %v1606 = vrot.slane %v1518, %v1605
    %v1608 = vunpack.c.l.s4 1987475062
    %v1609 = vunpack.c.0.s8 %v1608
    %v1610 = vlaneseq
    %v1611 = vshrl.u32 %v1610, 7
    %v1612 = vsub.s32 %v1609, %v1611
    %v1613 = vrot.slane %v1518, %v1612
    %v1615 = vunpack.c.l.s4 269488144
    %v1616 = vunpack.c.0.s8 %v1615
    %v1617 = vlaneseq
    %v1618 = vshrl.u32 %v1617, 7
    %v1619 = vsub.s32 %v1616, %v1618
    %v1620 = vrot.slane %v1519, %v1619
    %v1622 = vunpack.c.l.s4 842150450
    %v1623 = vunpack.c.0.s8 %v1622
    %v1624 = vlaneseq
    %v1625 = vshrl.u32 %v1624, 7
    %v1626 = vsub.s32 %v1623, %v1625
    %v1627 = vrot.slane %v1519, %v1626
    %v1629 = vunpack.c.l.s4 1414812756
    %v1630 = vunpack.c.0.s8 %v1629
    %v1631 = vlaneseq
    %v1632 = vshrl.u32 %v1631, 7
    %v1633 = vsub.s32 %v1630, %v1632
    %v1634 = vrot.slane %v1519, %v1633
    %v1636 = vunpack.c.l.s4 1987475062
    %v1637 = vunpack.c.0.s8 %v1636
    %v1638 = vlaneseq
    %v1639 = vshrl.u32 %v1638, 7
    %v1640 = vsub.s32 %v1637, %v1639
    %v1641 = vrot.slane %v1519, %v1640
    %v1650 = vsub.f32 %v1459, %v1592
    %v1651 = vsub.f32 %v1460, %v1599
    %v1652 = vsub.f32 %v1461, %v1606
    %v1653 = vsub.f32 %v1462, %v1613
    %v1654 = vsub.f32 %v1463, %v1620
    %v1655 = vsub.f32 %v1464, %v1627
    %v1656 = vsub.f32 %v1465, %v1634
    %v1657 = vsub.f32 %v1466, %v1641
    %v1658 = vadd.f32 %v1582, 1e-05
    %v1659 = vadd.f32 %v1583, 1e-05
    %v1660 = vrsqrt.pop %v1658
    %v1661 = vrsqrt.pop %v1659
    %v1665 = vunpack.c.l.s4 269488144
    %v1666 = vunpack.c.0.s8 %v1665
    %v1667 = vlaneseq
    %v1668 = vshrl.u32 %v1667, 7
    %v1669 = vsub.s32 %v1666, %v1668
    %v1670 = vrot.slane %v1660, %v1669
    %v1672 = vunpack.c.l.s4 842150450
    %v1673 = vunpack.c.0.s8 %v1672
    %v1674 = vlaneseq
    %v1675 = vshrl.u32 %v1674, 7
    %v1676 = vsub.s32 %v1673, %v1675
    %v1677 = vrot.slane %v1660, %v1676
    %v1679 = vunpack.c.l.s4 1414812756
    %v1680 = vunpack.c.0.s8 %v1679
    %v1681 = vlaneseq
    %v1682 = vshrl.u32 %v1681, 7
    %v1683 = vsub.s32 %v1680, %v1682
    %v1684 = vrot.slane %v1660, %v1683
    %v1686 = vunpack.c.l.s4 1987475062
    %v1687 = vunpack.c.0.s8 %v1686
    %v1688 = vlaneseq
    %v1689 = vshrl.u32 %v1688, 7
    %v1690 = vsub.s32 %v1687, %v1689
    %v1691 = vrot.slane %v1660, %v1690
    %v1693 = vunpack.c.l.s4 269488144
    %v1694 = vunpack.c.0.s8 %v1693
    %v1695 = vlaneseq
    %v1696 = vshrl.u32 %v1695, 7
    %v1697 = vsub.s32 %v1694, %v1696
    %v1698 = vrot.slane %v1661, %v1697
    %v1700 = vunpack.c.l.s4 842150450
    %v1701 = vunpack.c.0.s8 %v1700
    %v1702 = vlaneseq
    %v1703 = vshrl.u32 %v1702, 7
    %v1704 = vsub.s32 %v1701, %v1703
    %v1705 = vrot.slane %v1661, %v1704
    %v1707 = vunpack.c.l.s4 1414812756
    %v1708 = vunpack.c.0.s8 %v1707
    %v1709 = vlaneseq
    %v1710 = vshrl.u32 %v1709, 7
    %v1711 = vsub.s32 %v1708, %v1710
    %v1712 = vrot.slane %v1661, %v1711
    %v1714 = vunpack.c.l.s4 1987475062
    %v1715 = vunpack.c.0.s8 %v1714
    %v1716 = vlaneseq
    %v1717 = vshrl.u32 %v1716, 7
    %v1718 = vsub.s32 %v1715, %v1717
    %v1719 = vrot.slane %v1661, %v1718
    %v1728 = vmul.f32 %v1650, %v1670
    %v1729 = vmul.f32 %v1651, %v1677
    %v1730 = vmul.f32 %v1652, %v1684
    %v1731 = vmul.f32 %v1653, %v1691
    %v1732 = vmul.f32 %v1654, %v1698
    %v1733 = vmul.f32 %v1655, %v1705
    %v1734 = vmul.f32 %v1656, %v1712
    %v1735 = vmul.f32 %v1657, %v1719
    %v1736 = vlaneseq
    %v1737 = vshrl.u32 %v1736, 7
    %v1738 = vsub.s32 0, %v1737
    %v1739 = vrot.slane %v273, %v1738
    %v1741 = vcombine.high %v1739, %v1739
    %v1743 = vunpack.c.l.s4 1983009808
    %v1744 = vunpack.c.0.s8 %v1743
    %v1745 = vlaneseq
    %v1746 = vshrl.u32 %v1745, 7
    %v1747 = vsub.s32 %v1744, %v1746
    %v1748 = vrot.slane %v1739, %v1747
    %v1750 = vunpack.c.l.s4 1983009808
    %v1751 = vunpack.c.0.s8 %v1750
    %v1752 = vlaneseq
    %v1753 = vshrl.u32 %v1752, 7
    %v1754 = vsub.s32 %v1751, %v1753
    %v1755 = vrot.slane %v1741, %v1754
    %v1756 = vcombine.high %v1748, %v1748
    %v1757 = vcombine.high %v1755, %v1755
    %v1762 = vmul.f32 %v1728, %v1748
    %v1763 = vmul.f32 %v1729, %v1756
    %v1764 = vmul.f32 %v1730, %v1755
    %v1765 = vmul.f32 %v1731, %v1757
    %v1766 = vmul.f32 %v1732, %v1748
    %v1767 = vmul.f32 %v1733, %v1756
    %v1768 = vmul.f32 %v1734, %v1755
    %v1769 = vmul.f32 %v1735, %v1757
    %v1770 = vlaneseq
    %v1771 = vshrl.u32 %v1770, 7
    %v1772 = vsub.s32 0, %v1771
    %v1773 = vrot.slane %v274, %v1772
    %v1775 = vcombine.high %v1773, %v1773
    %v1777 = vunpack.c.l.s4 1983009808
    %v1778 = vunpack.c.0.s8 %v1777
    %v1779 = vlaneseq
    %v1780 = vshrl.u32 %v1779, 7
    %v1781 = vsub.s32 %v1778, %v1780
    %v1782 = vrot.slane %v1773, %v1781
    %v1784 = vunpack.c.l.s4 1983009808
    %v1785 = vunpack.c.0.s8 %v1784
    %v1786 = vlaneseq
    %v1787 = vshrl.u32 %v1786, 7
    %v1788 = vsub.s32 %v1785, %v1787
    %v1789 = vrot.slane %v1775, %v1788
    %v1790 = vcombine.high %v1782, %v1782
    %v1791 = vcombine.high %v1789, %v1789
    %v1796 = vadd.f32 %v1762, %v1782
    %v1797 = vadd.f32 %v1763, %v1790
    %v1798 = vadd.f32 %v1764, %v1789
    %v1799 = vadd.f32 %v1765, %v1791
    %v1800 = vadd.f32 %v1766, %v1782
    %v1801 = vadd.f32 %v1767, %v1790
    %v1802 = vadd.f32 %v1768, %v1789
    %v1803 = vadd.f32 %v1769, %v1791
    %v1804 = vld [vmem:[#allocation7] sm:$0x3]
    %v1805 = vld [vmem:[#allocation7 + $0x2] sm:$0x3]
    %v1806 = vld [vmem:[#allocation7 + $0x4] sm:$0x3]
    %v1807 = vld [vmem:[#allocation7 + $0x6] sm:$0x3]
    %v1808 = vld [vmem:[#allocation7 + $0x8] sm:$0x3]
    %v1809 = vld [vmem:[#allocation7 + $0xa] sm:$0x3]
    %v1810 = vld [vmem:[#allocation7 + $0xc] sm:$0x3]
    %v1811 = vld [vmem:[#allocation7 + $0xe] sm:$0x3]
    %v1812 = vld [vmem:[#allocation7 + $0x10] sm:$0x3]
    %v1813 = vld [vmem:[#allocation7 + $0x12] sm:$0x3]
    %v1814 = vld [vmem:[#allocation7 + $0x14] sm:$0x3]
    %v1815 = vld [vmem:[#allocation7 + $0x16] sm:$0x3]
    %v1816 = vadd.f32 %v251, %v1804
    %v1817 = vadd.f32 %v252, %v1805
    %v1818 = vadd.f32 %v253, %v1806
    %v1819 = vadd.f32 %v254, %v1807
    %v1820 = vadd.f32 %v255, %v1808
    %v1821 = vadd.f32 %v256, %v1809
    %v1822 = vadd.f32 %v257, %v1810
    %v1823 = vadd.f32 %v258, %v1811
    %v1824 = vadd.f32 %v259, %v1812
    %v1825 = vadd.f32 %v260, %v1813
    %v1826 = vadd.f32 %v261, %v1814
    %v1827 = vadd.f32 %v262, %v1815
    %v1840 = vcombine.low %v1816, %v1817
    %v1841 = vcombine.low %v1818, %v1819
    %v1843 = vunpack.c.l.s4 1983009808
    %v1844 = vunpack.c.0.s8 %v1843
    %v1845 = vlaneseq
    %v1846 = vshrl.u32 %v1845, 7
    %v1847 = vsub.s32 %v1844, %v1846
    %v1848 = vrot.slane %v1840, %v1847
    %v1850 = vunpack.c.l.s4 1983009808
    %v1851 = vunpack.c.0.s8 %v1850
    %v1852 = vlaneseq
    %v1853 = vshrl.u32 %v1852, 7
    %v1854 = vsub.s32 %v1851, %v1853
    %v1855 = vrot.slane %v1841, %v1854
    %v1856 = vcombine.low %v1848, %v1855
    %v1857 = vcombine.low %v1820, %v1821
    %v1858 = vcombine.low %v1822, %v1823
    %v1860 = vunpack.c.l.s4 1983009808
    %v1861 = vunpack.c.0.s8 %v1860
    %v1862 = vlaneseq
    %v1863 = vshrl.u32 %v1862, 7
    %v1864 = vsub.s32 %v1861, %v1863
    %v1865 = vrot.slane %v1857, %v1864
    %v1867 = vunpack.c.l.s4 1983009808
    %v1868 = vunpack.c.0.s8 %v1867
    %v1869 = vlaneseq
    %v1870 = vshrl.u32 %v1869, 7
    %v1871 = vsub.s32 %v1868, %v1870
    %v1872 = vrot.slane %v1858, %v1871
    %v1873 = vcombine.low %v1865, %v1872
    %v1874 = vcombine.low %v1824, %v1825
    %v1875 = vcombine.low %v1826, %v1827
    %v1877 = vunpack.c.l.s4 1983009808
    %v1878 = vunpack.c.0.s8 %v1877
    %v1879 = vlaneseq
    %v1880 = vshrl.u32 %v1879, 7
    %v1881 = vsub.s32 %v1878, %v1880
    %v1882 = vrot.slane %v1874, %v1881
    %v1884 = vunpack.c.l.s4 1983009808
    %v1885 = vunpack.c.0.s8 %v1884
    %v1886 = vlaneseq
    %v1887 = vshrl.u32 %v1886, 7
    %v1888 = vsub.s32 %v1885, %v1887
    %v1889 = vrot.slane %v1875, %v1888
    %v1890 = vcombine.low %v1882, %v1889
    %v1906 = vcombine.low %v251, %v252
    %v1907 = vcombine.low %v253, %v254
    %v1909 = vunpack.c.l.s4 1983009808
    %v1910 = vunpack.c.0.s8 %v1909
    %v1911 = vlaneseq
    %v1912 = vshrl.u32 %v1911, 7
    %v1913 = vsub.s32 %v1910, %v1912
    %v1914 = vrot.slane %v1906, %v1913
    %v1916 = vunpack.c.l.s4 1983009808
    %v1917 = vunpack.c.0.s8 %v1916
    %v1918 = vlaneseq
    %v1919 = vshrl.u32 %v1918, 7
    %v1920 = vsub.s32 %v1917, %v1919
    %v1921 = vrot.slane %v1907, %v1920
    %v1922 = vcombine.low %v1914, %v1921
    %v1923 = vcombine.low %v255, %v256
    %v1924 = vcombine.low %v257, %v258
    %v1926 = vunpack.c.l.s4 1983009808
    %v1927 = vunpack.c.0.s8 %v1926
    %v1928 = vlaneseq
    %v1929 = vshrl.u32 %v1928, 7
    %v1930 = vsub.s32 %v1927, %v1929
    %v1931 = vrot.slane %v1923, %v1930
    %v1933 = vunpack.c.l.s4 1983009808
    %v1934 = vunpack.c.0.s8 %v1933
    %v1935 = vlaneseq
    %v1936 = vshrl.u32 %v1935, 7
    %v1937 = vsub.s32 %v1934, %v1936
    %v1938 = vrot.slane %v1924, %v1937
    %v1939 = vcombine.low %v1931, %v1938
    %v1940 = vcombine.low %v259, %v260
    %v1941 = vcombine.low %v261, %v262
    %v1943 = vunpack.c.l.s4 1983009808
    %v1944 = vunpack.c.0.s8 %v1943
    %v1945 = vlaneseq
    %v1946 = vshrl.u32 %v1945, 7
    %v1947 = vsub.s32 %v1944, %v1946
    %v1948 = vrot.slane %v1940, %v1947
    %v1950 = vunpack.c.l.s4 1983009808
    %v1951 = vunpack.c.0.s8 %v1950
    %v1952 = vlaneseq
    %v1953 = vshrl.u32 %v1952, 7
    %v1954 = vsub.s32 %v1951, %v1953
    %v1955 = vrot.slane %v1941, %v1954
    %v1956 = vcombine.low %v1948, %v1955
    %1957 = vrot.lane.b32.xlu0 %v1922, 32
    %v1958 = vpop.permute.xlu0 %1957
    %1959 = vrot.lane.b32.xlu0 %v1939, 32
    %v1960 = vpop.permute.xlu0 %1959
    %1961 = vrot.lane.b32.xlu0 %v1956, 32
    %v1962 = vpop.permute.xlu0 %1961
    %v1966 = vsel %vm375, %v1856, %v1958
    %v1967 = vsel %vm375, %v1873, %v1960
    %v1968 = vsel %vm375, %v1890, %v1962
    %v1969 = vld [vmem:[#allocation14] sm:$0xff]
    %v1970 = vld [vmem:[#allocation14 + $0x8] sm:$0xff]
    %v1971 = vld [vmem:[#allocation14 + $0x10] sm:$0xff]
    %v1972 = vld [vmem:[#allocation14 + $0x18] sm:$0xff]
    %v1973 = vld [vmem:[#allocation14 + $0x20] sm:$0xff]
    %v1974 = vld [vmem:[#allocation14 + $0x28] sm:$0xff]
    %v1975 = vld [vmem:[#allocation14 + $0x30] sm:$0xff]
    %v1976 = vld [vmem:[#allocation14 + $0x38] sm:$0xff]
    %v1978 = vlaneseq
    %v1979 = vshrl.u32 %v1978, 7
    %v1980 = vsub.s32 0, %v1979
    %v1981 = vrot.slane %v272, %v1980
    %1982 = vrot.lane.b32.xlu0 %v1981, 96
    %v1983 = vpop.permute.xlu0 %1982
    %v1986 = vsel %vm392, %v1966, 0
    %v1989 = vsel %vm392, %v1967, 0
    %v1992 = vsel %vm392, %v1968, 0
    %1994 = vmatprep.subr.mxu0 0.0
    %1995 = vmatpush1.msra.mxu0 0.0
    %1996 = vmatprep.subr.mxu0 0.0
    %1997 = vmatpush1.msra.mxu0 0.0
    %1998 = vmatprep.subr.mxu0 0.0
    %1999 = vmatpush1.msra.mxu0 0.0
    %2000 = vmatprep.subr.mxu0 0.0
    %2001 = vmatpush1.msra.mxu0 0.0
    %2002 = vmatprep.subr.mxu0 0.0
    %2003 = vmatpush1.msra.mxu0 0.0
    %2004 = vmatprep.subr.mxu0 0.0
    %2005 = vmatpush1.msra.mxu0 0.0
    %2006 = vmatprep.subr.mxu0 0.0
    %2007 = vmatpush1.msra.mxu0 0.0
    %2008 = vmatprep.subr.mxu0 0.0
    %2009 = vmatpush1.msra.mxu0 0.0
    %2010 = vmatprep.subr.mxu0 0.0
    %2011 = vmatpush1.msra.mxu0 %v1976
    %2012 = vmatprep.subr.mxu0 0.0
    %2013 = vmatpush1.msra.mxu0 %v1975
    %2014 = vmatprep.subr.mxu0 0.0
    %2015 = vmatpush1.msra.mxu0 %v1974
    %2016 = vmatprep.subr.mxu0 0.0
    %2017 = vmatpush1.msra.mxu0 %v1973
    %2018 = vmatprep.subr.mxu0 0.0
    %2019 = vmatpush1.msra.mxu0 %v1972
    %2020 = vmatprep.subr.mxu0 0.0
    %2021 = vmatpush1.msra.mxu0 %v1971
    %2022 = vmatprep.subr.mxu0 0.0
    %2023 = vmatpush1.msra.mxu0 %v1970
    %2024 = vmatprep.subr.mxu0 0.0
    %2025 = vmatpush1.msra.mxu0 %v1969
    %2026 = vmatprep.subr.mxu0 0.0
    %2027 = vmatpush2.msra.mxu0 0.0
    %2028 = vmatprep.subr.mxu0 0.0
    %2029 = vmatpush2.msra.mxu0 0.0
    %2030 = vmatprep.subr.mxu0 0.0
    %2031 = vmatpush2.msra.mxu0 0.0
    %2032 = vmatprep.subr.mxu0 0.0
    %2033 = vmatpush2.msra.mxu0 0.0
    %2034 = vmatprep.subr.mxu0 0.0
    %2035 = vmatpush2.msra.mxu0 0.0
    %2036 = vmatprep.subr.mxu0 0.0
    %2037 = vmatpush2.msra.mxu0 0.0
    %2038 = vmatprep.subr.mxu0 0.0
    %2039 = vmatpush2.msra.mxu0 0.0
    %2040 = vmatprep.subr.mxu0 0.0
    %2041 = vmatpush2.msra.mxu0 0.0
    %2042 = vmatprep.subr.mxu0 0.0
    %2043 = vmatpush2.msra.mxu0 0.0
    %2044 = vmatprep.subr.mxu0 0.0
    %2045 = vmatpush2.msra.mxu0 0.0
    %2046 = vmatprep.subr.mxu0 0.0
    %2047 = vmatpush2.msra.mxu0 0.0
    %2048 = vmatprep.subr.mxu0 0.0
    %2049 = vmatpush2.msra.mxu0 0.0
    %2050 = vmatprep.subr.mxu0 0.0
    %2051 = vmatpush2.msra.mxu0 0.0
    %2052 = vmatprep.subr.mxu0 0.0
    %2053 = vmatpush2.msra.mxu0 0.0
    %2054 = vmatprep.subr.mxu0 0.0
    %2055 = vmatpush2.msra.mxu0 0.0
    %2056 = vmatprep.subr.mxu0 0.0
    %2057 = vmatpush2.msra.mxu0 0.0
    %2058 = vmatprep.mubr.f32.mxu0 0.0
    %2059 = vmatmul.mubr.f32.gmra.mxu0 %v1986
    %v2060 = vpop.f32.mrf.mxu0
    %v2061 = vadd.f32 %v1983, %v2060
    %v2062 = vpop.f32.mrf.mxu0
    %2063 = vmatprep.mubr.f32.mxu0 0.0
    %2064 = vmatmul.mubr.f32.gmra.mxu0 %v1989
    %v2065 = vpop.f32.mrf.mxu0
    %v2066 = vadd.f32 %v1983, %v2065
    %v2067 = vpop.f32.mrf.mxu0
    %2068 = vmatprep.mubr.f32.mxu0 0.0
    %2069 = vmatmul.mubr.f32.gmra.mxu0 %v1992
    %v2070 = vpop.f32.mrf.mxu0
    %v2071 = vadd.f32 %v1983, %v2070
    %v2072 = vpop.f32.mrf.mxu0
    %2073 = vdwg.mxu0
    %v2074 = vadd.f32 %v1796, %v263
    %v2075 = vadd.f32 %v1797, %v264
    %v2076 = vadd.f32 %v1798, %v265
    %v2077 = vadd.f32 %v1799, %v266
    %v2078 = vadd.f32 %v1800, %v267
    %v2079 = vadd.f32 %v1801, %v268
    %v2080 = vadd.f32 %v1802, %v269
    %v2081 = vadd.f32 %v1803, %v270
    %v2082 = vld [vmem:[#allocation13] sm:$0xff]
    %v2083 = vld [vmem:[#allocation13 + $0x8] sm:$0xff]
    %v2084 = vld [vmem:[#allocation13 + $0x10] sm:$0xff]
    %v2085 = vld [vmem:[#allocation13 + $0x18] sm:$0xff]
    %v2095 = vcombine.low %v2074, %v2075
    %v2096 = vcombine.low %v2076, %v2077
    %v2098 = vunpack.c.l.s4 1983009808
    %v2099 = vunpack.c.0.s8 %v2098
    %v2100 = vlaneseq
    %v2101 = vshrl.u32 %v2100, 7
    %v2102 = vsub.s32 %v2099, %v2101
    %v2103 = vrot.slane %v2095, %v2102
    %v2105 = vunpack.c.l.s4 1983009808
    %v2106 = vunpack.c.0.s8 %v2105
    %v2107 = vlaneseq
    %v2108 = vshrl.u32 %v2107, 7
    %v2109 = vsub.s32 %v2106, %v2108
    %v2110 = vrot.slane %v2096, %v2109
    %v2111 = vcombine.low %v2103, %v2110
    %v2112 = vcombine.low %v2078, %v2079
    %v2113 = vcombine.low %v2080, %v2081
    %v2115 = vunpack.c.l.s4 1983009808
    %v2116 = vunpack.c.0.s8 %v2115
    %v2117 = vlaneseq
    %v2118 = vshrl.u32 %v2117, 7
    %v2119 = vsub.s32 %v2116, %v2118
    %v2120 = vrot.slane %v2112, %v2119
    %v2122 = vunpack.c.l.s4 1983009808
    %v2123 = vunpack.c.0.s8 %v2122
    %v2124 = vlaneseq
    %v2125 = vshrl.u32 %v2124, 7
    %v2126 = vsub.s32 %v2123, %v2125
    %v2127 = vrot.slane %v2113, %v2126
    %v2128 = vcombine.low %v2120, %v2127
    %v2129 = vsel %vm375, %v2111, 0
    %v2131 = vsel %vm375, %v2128, 0
    %2133 = vmatprep.subr.mxu0 0.0
    %2134 = vmatpush1.msra.mxu0 0.0
    %2135 = vmatprep.subr.mxu0 0.0
    %2136 = vmatpush1.msra.mxu0 0.0
    %2137 = vmatprep.subr.mxu0 0.0
    %2138 = vmatpush1.msra.mxu0 0.0
    %2139 = vmatprep.subr.mxu0 0.0
    %2140 = vmatpush1.msra.mxu0 0.0
    %2141 = vmatprep.subr.mxu0 0.0
    %2142 = vmatpush1.msra.mxu0 0.0
    %2143 = vmatprep.subr.mxu0 0.0
    %2144 = vmatpush1.msra.mxu0 0.0
    %2145 = vmatprep.subr.mxu0 0.0
    %2146 = vmatpush1.msra.mxu0 0.0
    %2147 = vmatprep.subr.mxu0 0.0
    %2148 = vmatpush1.msra.mxu0 0.0
    %2149 = vmatprep.subr.mxu0 0.0
    %2150 = vmatpush1.msra.mxu0 0.0
    %2151 = vmatprep.subr.mxu0 0.0
    %2152 = vmatpush1.msra.mxu0 0.0
    %2153 = vmatprep.subr.mxu0 0.0
    %2154 = vmatpush1.msra.mxu0 0.0
    %2155 = vmatprep.subr.mxu0 0.0
    %2156 = vmatpush1.msra.mxu0 0.0
    %2157 = vmatprep.subr.mxu0 0.0
    %2158 = vmatpush1.msra.mxu0 %v2085
    %2159 = vmatprep.subr.mxu0 0.0
    %2160 = vmatpush1.msra.mxu0 %v2084
    %2161 = vmatprep.subr.mxu0 0.0
    %2162 = vmatpush1.msra.mxu0 %v2083
    %2163 = vmatprep.subr.mxu0 0.0
    %2164 = vmatpush1.msra.mxu0 %v2082
    %2165 = vmatprep.subr.mxu0 0.0
    %2166 = vmatpush2.msra.mxu0 0.0
    %2167 = vmatprep.subr.mxu0 0.0
    %2168 = vmatpush2.msra.mxu0 0.0
    %2169 = vmatprep.subr.mxu0 0.0
    %2170 = vmatpush2.msra.mxu0 0.0
    %2171 = vmatprep.subr.mxu0 0.0
    %2172 = vmatpush2.msra.mxu0 0.0
    %2173 = vmatprep.subr.mxu0 0.0
    %2174 = vmatpush2.msra.mxu0 0.0
    %2175 = vmatprep.subr.mxu0 0.0
    %2176 = vmatpush2.msra.mxu0 0.0
    %2177 = vmatprep.subr.mxu0 0.0
    %2178 = vmatpush2.msra.mxu0 0.0
    %2179 = vmatprep.subr.mxu0 0.0
    %2180 = vmatpush2.msra.mxu0 0.0
    %2181 = vmatprep.subr.mxu0 0.0
    %2182 = vmatpush2.msra.mxu0 0.0
    %2183 = vmatprep.subr.mxu0 0.0
    %2184 = vmatpush2.msra.mxu0 0.0
    %2185 = vmatprep.subr.mxu0 0.0
    %2186 = vmatpush2.msra.mxu0 0.0
    %2187 = vmatprep.subr.mxu0 0.0
    %2188 = vmatpush2.msra.mxu0 0.0
    %2189 = vmatprep.subr.mxu0 0.0
    %2190 = vmatpush2.msra.mxu0 0.0
    %2191 = vmatprep.subr.mxu0 0.0
    %2192 = vmatpush2.msra.mxu0 0.0
    %2193 = vmatprep.subr.mxu0 0.0
    %2194 = vmatpush2.msra.mxu0 0.0
    %2195 = vmatprep.subr.mxu0 0.0
    %2196 = vmatpush2.msra.mxu0 0.0
    %2197 = vmatprep.mubr.f32.mxu0 0.0
    %2198 = vmatmul.mubr.f32.gmra.mxu0 %v2129
    %v2199 = vpop.f32.mrf.mxu0
    %v2200 = vadd.f32 %v1981, %v2199
    %v2201 = vpop.f32.mrf.mxu0
    %2202 = vmatprep.mubr.f32.mxu0 0.0
    %2203 = vmatmul.mubr.f32.gmra.mxu0 %v2131
    %v2204 = vpop.f32.mrf.mxu0
    %v2205 = vadd.f32 %v1981, %v2204
    %v2206 = vpop.f32.mrf.mxu0
    %2207 = vdwg.mxu0
    %v2208 = vld [vmem:[#allocation10] sm:$0xff]
    %v2209 = vld [vmem:[#allocation10 + $0x8] sm:$0xff]
    %v2210 = vmul.f32 %v2200, %v480
    %v2211 = vmul.f32 %v2205, %v480
    %v2213 = vsel %vm375, %v2210, 0
    %v2216 = vsel %vm375, %v2211, 0
    %v2219 = vsel %vm375, %v2061, 0
    %v2222 = vsel %vm375, %v2066, 0
    %v2225 = vsel %vm375, %v2071, 0
    %2227 = vmatprep.subr.mxu0 0.0
    %2228 = vmatpush1.xpose.msra.mxu0 0.0
    %2229 = vmatprep.subr.mxu0 0.0
    %2230 = vmatpush1.xpose.msra.mxu0 0.0
    %2231 = vmatprep.subr.mxu0 0.0
    %2232 = vmatpush1.xpose.msra.mxu0 0.0
    %2233 = vmatprep.subr.mxu0 0.0
    %2234 = vmatpush1.xpose.msra.mxu0 0.0
    %2235 = vmatprep.subr.mxu0 0.0
    %2236 = vmatpush1.xpose.msra.mxu0 0.0
    %2237 = vmatprep.subr.mxu0 0.0
    %2238 = vmatpush1.xpose.msra.mxu0 0.0
    %2239 = vmatprep.subr.mxu0 0.0
    %2240 = vmatpush1.xpose.msra.mxu0 0.0
    %2241 = vmatprep.subr.mxu0 0.0
    %2242 = vmatpush1.xpose.msra.mxu0 0.0
    %2243 = vmatprep.subr.mxu0 0.0
    %2244 = vmatpush1.xpose.msra.mxu0 0.0
    %2245 = vmatprep.subr.mxu0 0.0
    %2246 = vmatpush1.xpose.msra.mxu0 0.0
    %2247 = vmatprep.subr.mxu0 0.0
    %2248 = vmatpush1.xpose.msra.mxu0 0.0
    %2249 = vmatprep.subr.mxu0 0.0
    %2250 = vmatpush1.xpose.msra.mxu0 0.0
    %2251 = vmatprep.subr.mxu0 0.0
    %2252 = vmatpush1.xpose.msra.mxu0 0.0
    %2253 = vmatprep.subr.mxu0 0.0
    %2254 = vmatpush1.xpose.msra.mxu0 %v2225
    %2255 = vmatprep.subr.mxu0 0.0
    %2256 = vmatpush1.xpose.msra.mxu0 %v2222
    %2257 = vmatprep.subr.mxu0 0.0
    %2258 = vmatpush1.xpose.msra.mxu0 %v2219
    %2259 = vmatprep.subr.mxu0 0.0
    %2260 = vmatpush2.xpose.msra.mxu0 0.0
    %2261 = vmatprep.subr.mxu0 0.0
    %2262 = vmatpush2.xpose.msra.mxu0 0.0
    %2263 = vmatprep.subr.mxu0 0.0
    %2264 = vmatpush2.xpose.msra.mxu0 0.0
    %2265 = vmatprep.subr.mxu0 0.0
    %2266 = vmatpush2.xpose.msra.mxu0 0.0
    %2267 = vmatprep.subr.mxu0 0.0
    %2268 = vmatpush2.xpose.msra.mxu0 0.0
    %2269 = vmatprep.subr.mxu0 0.0
    %2270 = vmatpush2.xpose.msra.mxu0 0.0
    %2271 = vmatprep.subr.mxu0 0.0
    %2272 = vmatpush2.xpose.msra.mxu0 0.0
    %2273 = vmatprep.subr.mxu0 0.0
    %2274 = vmatpush2.xpose.msra.mxu0 0.0
    %2275 = vmatprep.subr.mxu0 0.0
    %2276 = vmatpush2.xpose.msra.mxu0 0.0
    %2277 = vmatprep.subr.mxu0 0.0
    %2278 = vmatpush2.xpose.msra.mxu0 0.0
    %2279 = vmatprep.subr.mxu0 0.0
    %2280 = vmatpush2.xpose.msra.mxu0 0.0
    %2281 = vmatprep.subr.mxu0 0.0
    %2282 = vmatpush2.xpose.msra.mxu0 0.0
    %2283 = vmatprep.subr.mxu0 0.0
    %2284 = vmatpush2.xpose.msra.mxu0 0.0
    %2285 = vmatprep.subr.mxu0 0.0
    %2286 = vmatpush2.xpose.msra.mxu0 0.0
    %2287 = vmatprep.subr.mxu0 0.0
    %2288 = vmatpush2.xpose.msra.mxu0 0.0
    %2289 = vmatprep.subr.mxu0 0.0
    %2290 = vmatpush2.xpose.msra.mxu0 0.0
    %2291 = vmatprep.mubr.f32.mxu0 0.0
    %2292 = vmatmul.mubr.f32.gmra.mxu0 %v2213
    %v2293 = vpop.f32.mrf.mxu0
    %v2294 = vadd.f32 0.0, %v2293
    %v2295 = vpop.f32.mrf.mxu0
    %2296 = vmatprep.mubr.f32.mxu0 0.0
    %2297 = vmatmul.mubr.f32.gmra.mxu0 %v2216
    %v2298 = vpop.f32.mrf.mxu0
    %v2299 = vadd.f32 0.0, %v2298
    %v2300 = vpop.f32.mrf.mxu0
    %2301 = vdwg.mxu0
    %v2302 = vmul.f32 %v2294, 0.35355338
    %v2303 = vmul.f32 %v2299, 0.35355338
    %v2304 = vadd.f32 %v2302, %v2208
    %v2305 = vadd.f32 %v2303, %v2209
    %vm2306 = vcmask 195584
    %v2307 = vsel %vm2306, %v2304, -inf
    %2308 = vmax.xlane.f32.xlu0 %v2307
    %v2309 = vpop.xlane.xlu0 %2308
    %v2310 = vsel %vm2306, %v2305, -inf
    %2311 = vmax.xlane.f32.xlu0 %v2310
    %v2312 = vpop.xlane.xlu0 %2311
    %v2313 = vsub.f32 %v2304, %v2309
    %v2314 = vsub.f32 %v2305, %v2312
    %v2315 = vmul.f32 %v2313, 1.442695
    %v2316 = vpow.pop %v2315
    %v2317 = vmul.f32 %v2314, 1.442695
    %v2318 = vpow.pop %v2317
    %v2319 = vsel %vm2306, %v2316, 0.0
    %2320 = vadd.xlane.f32.xlu0 %v2319
    %v2321 = vpop.xlane.xlu0 %2320
    %v2322 = vsel %vm2306, %v2318, 0.0
    %2323 = vadd.xlane.f32.xlu0 %v2322
    %v2324 = vpop.xlane.xlu0 %2323
    %v2325 = vrcp.pop %v2321
    %v2326 = vrcp.pop %v2324
    %v2327 = vmul.f32 %v2316, %v2325
    %v2328 = vmul.f32 %v2318, %v2326
    %2329 = vrot.lane.b32.xlu0 %v480, 32
    %v2330 = vpop.permute.xlu0 %2329
    %v2332 = vmul.f32 %v2061, %v2330
    %v2333 = vmul.f32 %v2066, %v2330
    %v2334 = vmul.f32 %v2071, %v2330
    %v2335 = vmul.f32 %v2200, %v611
    %v2336 = vmul.f32 %v2205, %v611
    %v2338 = vsel %vm375, %v2335, 0
    %v2341 = vsel %vm375, %v2336, 0
    %2343 = vmatprep.subr.mxu0 0.0
    %2344 = vmatpush1.xpose.msra.mxu0 0.0
    %2345 = vmatprep.subr.mxu0 0.0
    %2346 = vmatpush1.xpose.msra.mxu0 0.0
    %2347 = vmatprep.subr.mxu0 0.0
    %2348 = vmatpush1.xpose.msra.mxu0 0.0
    %2349 = vmatprep.subr.mxu0 0.0
    %2350 = vmatpush1.xpose.msra.mxu0 0.0
    %2351 = vmatprep.subr.mxu0 0.0
    %2352 = vmatpush1.xpose.msra.mxu0 0.0
    %2353 = vmatprep.subr.mxu0 0.0
    %2354 = vmatpush1.xpose.msra.mxu0 0.0
    %2355 = vmatprep.subr.mxu0 0.0
    %2356 = vmatpush1.xpose.msra.mxu0 0.0
    %2357 = vmatprep.subr.mxu0 0.0
    %2358 = vmatpush1.xpose.msra.mxu0 0.0
    %2359 = vmatprep.subr.mxu0 0.0
    %2360 = vmatpush1.xpose.msra.mxu0 0.0
    %2361 = vmatprep.subr.mxu0 0.0
    %2362 = vmatpush1.xpose.msra.mxu0 0.0
    %2363 = vmatprep.subr.mxu0 0.0
    %2364 = vmatpush1.xpose.msra.mxu0 0.0
    %2365 = vmatprep.subr.mxu0 0.0
    %2366 = vmatpush1.xpose.msra.mxu0 0.0
    %2367 = vmatprep.subr.mxu0 0.0
    %2368 = vmatpush1.xpose.msra.mxu0 0.0
    %2369 = vmatprep.subr.mxu0 0.0
    %2370 = vmatpush1.xpose.msra.mxu0 %v2225
    %2371 = vmatprep.subr.mxu0 0.0
    %2372 = vmatpush1.xpose.msra.mxu0 %v2222
    %2373 = vmatprep.subr.mxu0 0.0
    %2374 = vmatpush1.xpose.msra.mxu0 %v2219
    %2375 = vmatprep.subr.mxu0 0.0
    %2376 = vmatpush2.xpose.msra.mxu0 0.0
    %2377 = vmatprep.subr.mxu0 0.0
    %2378 = vmatpush2.xpose.msra.mxu0 0.0
    %2379 = vmatprep.subr.mxu0 0.0
    %2380 = vmatpush2.xpose.msra.mxu0 0.0
    %2381 = vmatprep.subr.mxu0 0.0
    %2382 = vmatpush2.xpose.msra.mxu0 0.0
    %2383 = vmatprep.subr.mxu0 0.0
    %2384 = vmatpush2.xpose.msra.mxu0 0.0
    %2385 = vmatprep.subr.mxu0 0.0
    %2386 = vmatpush2.xpose.msra.mxu0 0.0
    %2387 = vmatprep.subr.mxu0 0.0
    %2388 = vmatpush2.xpose.msra.mxu0 0.0
    %2389 = vmatprep.subr.mxu0 0.0
    %2390 = vmatpush2.xpose.msra.mxu0 0.0
    %2391 = vmatprep.subr.mxu0 0.0
    %2392 = vmatpush2.xpose.msra.mxu0 0.0
    %2393 = vmatprep.subr.mxu0 0.0
    %2394 = vmatpush2.xpose.msra.mxu0 0.0
    %2395 = vmatprep.subr.mxu0 0.0
    %2396 = vmatpush2.xpose.msra.mxu0 0.0
    %2397 = vmatprep.subr.mxu0 0.0
    %2398 = vmatpush2.xpose.msra.mxu0 0.0
    %2399 = vmatprep.subr.mxu0 0.0
    %2400 = vmatpush2.xpose.msra.mxu0 0.0
    %2401 = vmatprep.subr.mxu0 0.0
    %2402 = vmatpush2.xpose.msra.mxu0 0.0
    %2403 = vmatprep.subr.mxu0 0.0
    %2404 = vmatpush2.xpose.msra.mxu0 0.0
    %2405 = vmatprep.subr.mxu0 0.0
    %2406 = vmatpush2.xpose.msra.mxu0 0.0
    %2407 = vmatprep.mubr.f32.mxu0 0.0
    %2408 = vmatmul.mubr.f32.gmra.mxu0 %v2338
    %v2409 = vpop.f32.mrf.mxu0
    %v2410 = vadd.f32 0.0, %v2409
    %v2411 = vpop.f32.mrf.mxu0
    %2412 = vmatprep.mubr.f32.mxu0 0.0
    %2413 = vmatmul.mubr.f32.gmra.mxu0 %v2341
    %v2414 = vpop.f32.mrf.mxu0
    %v2415 = vadd.f32 0.0, %v2414
    %v2416 = vpop.f32.mrf.mxu0
    %2417 = vdwg.mxu0
    %v2418 = vmul.f32 %v2410, 0.35355338
    %v2419 = vmul.f32 %v2415, 0.35355338
    %v2420 = vadd.f32 %v2418, %v2208
    %v2421 = vadd.f32 %v2419, %v2209
    %v2422 = vsel %vm2306, %v2420, -inf
    %2423 = vmax.xlane.f32.xlu0 %v2422
    %v2424 = vpop.xlane.xlu0 %2423
    %v2425 = vsel %vm2306, %v2421, -inf
    %2426 = vmax.xlane.f32.xlu0 %v2425
    %v2427 = vpop.xlane.xlu0 %2426
    %v2428 = vsub.f32 %v2420, %v2424
    %v2429 = vsub.f32 %v2421, %v2427
    %v2430 = vmul.f32 %v2428, 1.442695
    %v2431 = vpow.pop %v2430
    %v2432 = vmul.f32 %v2429, 1.442695
    %v2433 = vpow.pop %v2432
    %v2434 = vsel %vm2306, %v2431, 0.0
    %2435 = vadd.xlane.f32.xlu0 %v2434
    %v2436 = vpop.xlane.xlu0 %2435
    %v2437 = vsel %vm2306, %v2433, 0.0
    %2438 = vadd.xlane.f32.xlu0 %v2437
    %v2439 = vpop.xlane.xlu0 %2438
    %v2440 = vrcp.pop %v2436
    %v2441 = vrcp.pop %v2439
    %v2442 = vmul.f32 %v2431, %v2440
    %v2443 = vmul.f32 %v2433, %v2441
    %2444 = vrot.lane.b32.xlu0 %v611, 32
    %v2445 = vpop.permute.xlu0 %2444
    %v2447 = vmul.f32 %v2061, %v2445
    %v2448 = vmul.f32 %v2066, %v2445
    %v2449 = vmul.f32 %v2071, %v2445
    %2453 = vrot.lane.b32.xlu0 %v2447, 96
    %v2454 = vpop.permute.xlu0 %2453
    %2455 = vrot.lane.b32.xlu0 %v2448, 96
    %v2456 = vpop.permute.xlu0 %2455
    %2457 = vrot.lane.b32.xlu0 %v2449, 96
    %v2458 = vpop.permute.xlu0 %2457
    %v2463 = vsel %vm2306, %v2442, 0
    %v2466 = vsel %vm2306, %v2443, 0
    %2468 = vmatprep.subr.mxu0 0.0
    %2469 = vmatpush1.msra.mxu0 0.0
    %2470 = vmatprep.subr.mxu0 0.0
    %2471 = vmatpush1.msra.mxu0 0.0
    %2472 = vmatprep.subr.mxu0 0.0
    %2473 = vmatpush1.msra.mxu0 0.0
    %2474 = vmatprep.subr.mxu0 0.0
    %2475 = vmatpush1.msra.mxu0 0.0
    %2476 = vmatprep.subr.mxu0 0.0
    %2477 = vmatpush1.msra.mxu0 0.0
    %2478 = vmatprep.subr.mxu0 0.0
    %2479 = vmatpush1.msra.mxu0 0.0
    %2480 = vmatprep.subr.mxu0 0.0
    %2481 = vmatpush1.msra.mxu0 0.0
    %2482 = vmatprep.subr.mxu0 0.0
    %2483 = vmatpush1.msra.mxu0 0.0
    %2484 = vmatprep.subr.mxu0 0.0
    %2485 = vmatpush1.msra.mxu0 0.0
    %2486 = vmatprep.subr.mxu0 0.0
    %2487 = vmatpush1.msra.mxu0 0.0
    %2488 = vmatprep.subr.mxu0 0.0
    %2489 = vmatpush1.msra.mxu0 0.0
    %2490 = vmatprep.subr.mxu0 0.0
    %2491 = vmatpush1.msra.mxu0 0.0
    %2492 = vmatprep.subr.mxu0 0.0
    %2493 = vmatpush1.msra.mxu0 0.0
    %2494 = vmatprep.subr.mxu0 0.0
    %2495 = vmatpush1.msra.mxu0 %v2458
    %2496 = vmatprep.subr.mxu0 0.0
    %2497 = vmatpush1.msra.mxu0 %v2456
    %2498 = vmatprep.subr.mxu0 0.0
    %2499 = vmatpush1.msra.mxu0 %v2454
    %2500 = vmatprep.subr.mxu0 0.0
    %2501 = vmatpush2.msra.mxu0 0.0
    %2502 = vmatprep.subr.mxu0 0.0
    %2503 = vmatpush2.msra.mxu0 0.0
    %2504 = vmatprep.subr.mxu0 0.0
    %2505 = vmatpush2.msra.mxu0 0.0
    %2506 = vmatprep.subr.mxu0 0.0
    %2507 = vmatpush2.msra.mxu0 0.0
    %2508 = vmatprep.subr.mxu0 0.0
    %2509 = vmatpush2.msra.mxu0 0.0
    %2510 = vmatprep.subr.mxu0 0.0
    %2511 = vmatpush2.msra.mxu0 0.0
    %2512 = vmatprep.subr.mxu0 0.0
    %2513 = vmatpush2.msra.mxu0 0.0
    %2514 = vmatprep.subr.mxu0 0.0
    %2515 = vmatpush2.msra.mxu0 0.0
    %2516 = vmatprep.subr.mxu0 0.0
    %2517 = vmatpush2.msra.mxu0 0.0
    %2518 = vmatprep.subr.mxu0 0.0
    %2519 = vmatpush2.msra.mxu0 0.0
    %2520 = vmatprep.subr.mxu0 0.0
    %2521 = vmatpush2.msra.mxu0 0.0
    %2522 = vmatprep.subr.mxu0 0.0
    %2523 = vmatpush2.msra.mxu0 0.0
    %2524 = vmatprep.subr.mxu0 0.0
    %2525 = vmatpush2.msra.mxu0 0.0
    %2526 = vmatprep.subr.mxu0 0.0
    %2527 = vmatpush2.msra.mxu0 0.0
    %2528 = vmatprep.subr.mxu0 0.0
    %2529 = vmatpush2.msra.mxu0 0.0
    %2530 = vmatprep.subr.mxu0 0.0
    %2531 = vmatpush2.msra.mxu0 0.0
    %2532 = vmatprep.mubr.f32.mxu0 0.0
    %2533 = vmatmul.mubr.f32.gmra.mxu0 %v2463
    %v2534 = vpop.f32.mrf.mxu0
    %v2535 = vadd.f32 0.0, %v2534
    %v2536 = vpop.f32.mrf.mxu0
    %2537 = vmatprep.mubr.f32.mxu0 0.0
    %2538 = vmatmul.mubr.f32.gmra.mxu0 %v2466
    %v2539 = vpop.f32.mrf.mxu0
    %v2540 = vadd.f32 0.0, %v2539
    %v2541 = vpop.f32.mrf.mxu0
    %2542 = vdwg.mxu0
    %2546 = vrot.lane.b32.xlu0 %v2332, 96
    %v2547 = vpop.permute.xlu0 %2546
    %2548 = vrot.lane.b32.xlu0 %v2333, 96
    %v2549 = vpop.permute.xlu0 %2548
    %2550 = vrot.lane.b32.xlu0 %v2334, 96
    %v2551 = vpop.permute.xlu0 %2550
    %v2556 = vsel %vm2306, %v2327, 0
    %v2559 = vsel %vm2306, %v2328, 0
    %2561 = vmatprep.subr.mxu0 0.0
    %2562 = vmatpush1.msra.mxu0 0.0
    %2563 = vmatprep.subr.mxu0 0.0
    %2564 = vmatpush1.msra.mxu0 0.0
    %2565 = vmatprep.subr.mxu0 0.0
    %2566 = vmatpush1.msra.mxu0 0.0
    %2567 = vmatprep.subr.mxu0 0.0
    %2568 = vmatpush1.msra.mxu0 0.0
    %2569 = vmatprep.subr.mxu0 0.0
    %2570 = vmatpush1.msra.mxu0 0.0
    %2571 = vmatprep.subr.mxu0 0.0
    %2572 = vmatpush1.msra.mxu0 0.0
    %2573 = vmatprep.subr.mxu0 0.0
    %2574 = vmatpush1.msra.mxu0 0.0
    %2575 = vmatprep.subr.mxu0 0.0
    %2576 = vmatpush1.msra.mxu0 0.0
    %2577 = vmatprep.subr.mxu0 0.0
    %2578 = vmatpush1.msra.mxu0 0.0
    %2579 = vmatprep.subr.mxu0 0.0
    %2580 = vmatpush1.msra.mxu0 0.0
    %2581 = vmatprep.subr.mxu0 0.0
    %2582 = vmatpush1.msra.mxu0 0.0
    %2583 = vmatprep.subr.mxu0 0.0
    %2584 = vmatpush1.msra.mxu0 0.0
    %2585 = vmatprep.subr.mxu0 0.0
    %2586 = vmatpush1.msra.mxu0 0.0
    %2587 = vmatprep.subr.mxu0 0.0
    %2588 = vmatpush1.msra.mxu0 %v2551
    %2589 = vmatprep.subr.mxu0 0.0
    %2590 = vmatpush1.msra.mxu0 %v2549
    %2591 = vmatprep.subr.mxu0 0.0
    %2592 = vmatpush1.msra.mxu0 %v2547
    %2593 = vmatprep.subr.mxu0 0.0
    %2594 = vmatpush2.msra.mxu0 0.0
    %2595 = vmatprep.subr.mxu0 0.0
    %2596 = vmatpush2.msra.mxu0 0.0
    %2597 = vmatprep.subr.mxu0 0.0
    %2598 = vmatpush2.msra.mxu0 0.0
    %2599 = vmatprep.subr.mxu0 0.0
    %2600 = vmatpush2.msra.mxu0 0.0
    %2601 = vmatprep.subr.mxu0 0.0
    %2602 = vmatpush2.msra.mxu0 0.0
    %2603 = vmatprep.subr.mxu0 0.0
    %2604 = vmatpush2.msra.mxu0 0.0
    %2605 = vmatprep.subr.mxu0 0.0
    %2606 = vmatpush2.msra.mxu0 0.0
    %2607 = vmatprep.subr.mxu0 0.0
    %2608 = vmatpush2.msra.mxu0 0.0
    %2609 = vmatprep.subr.mxu0 0.0
    %2610 = vmatpush2.msra.mxu0 0.0
    %2611 = vmatprep.subr.mxu0 0.0
    %2612 = vmatpush2.msra.mxu0 0.0
    %2613 = vmatprep.subr.mxu0 0.0
    %2614 = vmatpush2.msra.mxu0 0.0
    %2615 = vmatprep.subr.mxu0 0.0
    %2616 = vmatpush2.msra.mxu0 0.0
    %2617 = vmatprep.subr.mxu0 0.0
    %2618 = vmatpush2.msra.mxu0 0.0
    %2619 = vmatprep.subr.mxu0 0.0
    %2620 = vmatpush2.msra.mxu0 0.0
    %2621 = vmatprep.subr.mxu0 0.0
    %2622 = vmatpush2.msra.mxu0 0.0
    %2623 = vmatprep.subr.mxu0 0.0
    %2624 = vmatpush2.msra.mxu0 0.0
    %2625 = vmatprep.mubr.f32.mxu0 0.0
    %2626 = vmatmul.mubr.f32.gmra.mxu0 %v2556
    %v2627 = vpop.f32.mrf.mxu0
    %v2628 = vadd.f32 %v2535, %v2627
    %v2629 = vpop.f32.mrf.mxu0
    %2630 = vmatprep.mubr.f32.mxu0 0.0
    %2631 = vmatmul.mubr.f32.gmra.mxu0 %v2559
    %v2632 = vpop.f32.mrf.mxu0
    %v2633 = vadd.f32 %v2540, %v2632
    %v2634 = vpop.f32.mrf.mxu0
    %2635 = vdwg.mxu0
    %v2636 = vmul.f32 %v2200, %v909
    %v2637 = vmul.f32 %v2205, %v909
    %v2639 = vsel %vm375, %v2636, 0
    %v2642 = vsel %vm375, %v2637, 0
    %2644 = vmatprep.subr.mxu0 0.0
    %2645 = vmatpush1.xpose.msra.mxu0 0.0
    %2646 = vmatprep.subr.mxu0 0.0
    %2647 = vmatpush1.xpose.msra.mxu0 0.0
    %2648 = vmatprep.subr.mxu0 0.0
    %2649 = vmatpush1.xpose.msra.mxu0 0.0
    %2650 = vmatprep.subr.mxu0 0.0
    %2651 = vmatpush1.xpose.msra.mxu0 0.0
    %2652 = vmatprep.subr.mxu0 0.0
    %2653 = vmatpush1.xpose.msra.mxu0 0.0
    %2654 = vmatprep.subr.mxu0 0.0
    %2655 = vmatpush1.xpose.msra.mxu0 0.0
    %2656 = vmatprep.subr.mxu0 0.0
    %2657 = vmatpush1.xpose.msra.mxu0 0.0
    %2658 = vmatprep.subr.mxu0 0.0
    %2659 = vmatpush1.xpose.msra.mxu0 0.0
    %2660 = vmatprep.subr.mxu0 0.0
    %2661 = vmatpush1.xpose.msra.mxu0 0.0
    %2662 = vmatprep.subr.mxu0 0.0
    %2663 = vmatpush1.xpose.msra.mxu0 0.0
    %2664 = vmatprep.subr.mxu0 0.0
    %2665 = vmatpush1.xpose.msra.mxu0 0.0
    %2666 = vmatprep.subr.mxu0 0.0
    %2667 = vmatpush1.xpose.msra.mxu0 0.0
    %2668 = vmatprep.subr.mxu0 0.0
    %2669 = vmatpush1.xpose.msra.mxu0 0.0
    %2670 = vmatprep.subr.mxu0 0.0
    %2671 = vmatpush1.xpose.msra.mxu0 %v2225
    %2672 = vmatprep.subr.mxu0 0.0
    %2673 = vmatpush1.xpose.msra.mxu0 %v2222
    %2674 = vmatprep.subr.mxu0 0.0
    %2675 = vmatpush1.xpose.msra.mxu0 %v2219
    %2676 = vmatprep.subr.mxu0 0.0
    %2677 = vmatpush2.xpose.msra.mxu0 0.0
    %2678 = vmatprep.subr.mxu0 0.0
    %2679 = vmatpush2.xpose.msra.mxu0 0.0
    %2680 = vmatprep.subr.mxu0 0.0
    %2681 = vmatpush2.xpose.msra.mxu0 0.0
    %2682 = vmatprep.subr.mxu0 0.0
    %2683 = vmatpush2.xpose.msra.mxu0 0.0
    %2684 = vmatprep.subr.mxu0 0.0
    %2685 = vmatpush2.xpose.msra.mxu0 0.0
    %2686 = vmatprep.subr.mxu0 0.0
    %2687 = vmatpush2.xpose.msra.mxu0 0.0
    %2688 = vmatprep.subr.mxu0 0.0
    %2689 = vmatpush2.xpose.msra.mxu0 0.0
    %2690 = vmatprep.subr.mxu0 0.0
    %2691 = vmatpush2.xpose.msra.mxu0 0.0
    %2692 = vmatprep.subr.mxu0 0.0
    %2693 = vmatpush2.xpose.msra.mxu0 0.0
    %2694 = vmatprep.subr.mxu0 0.0
    %2695 = vmatpush2.xpose.msra.mxu0 0.0
    %2696 = vmatprep.subr.mxu0 0.0
    %2697 = vmatpush2.xpose.msra.mxu0 0.0
    %2698 = vmatprep.subr.mxu0 0.0
    %2699 = vmatpush2.xpose.msra.mxu0 0.0
    %2700 = vmatprep.subr.mxu0 0.0
    %2701 = vmatpush2.xpose.msra.mxu0 0.0
    %2702 = vmatprep.subr.mxu0 0.0
    %2703 = vmatpush2.xpose.msra.mxu0 0.0
    %2704 = vmatprep.subr.mxu0 0.0
    %2705 = vmatpush2.xpose.msra.mxu0 0.0
    %2706 = vmatprep.subr.mxu0 0.0
    %2707 = vmatpush2.xpose.msra.mxu0 0.0
    %2708 = vmatprep.mubr.f32.mxu0 0.0
    %2709 = vmatmul.mubr.f32.gmra.mxu0 %v2639
    %v2710 = vpop.f32.mrf.mxu0
    %v2711 = vadd.f32 0.0, %v2710
    %v2712 = vpop.f32.mrf.mxu0
    %2713 = vmatprep.mubr.f32.mxu0 0.0
    %2714 = vmatmul.mubr.f32.gmra.mxu0 %v2642
    %v2715 = vpop.f32.mrf.mxu0
    %v2716 = vadd.f32 0.0, %v2715
    %v2717 = vpop.f32.mrf.mxu0
    %2718 = vdwg.mxu0
    %v2719 = vmul.f32 %v2711, 0.35355338
    %v2720 = vmul.f32 %v2716, 0.35355338
    %v2721 = vadd.f32 %v2719, %v2208
    %v2722 = vadd.f32 %v2720, %v2209
    %v2723 = vsel %vm2306, %v2721, -inf
    %2724 = vmax.xlane.f32.xlu0 %v2723
    %v2725 = vpop.xlane.xlu0 %2724
    %v2726 = vsel %vm2306, %v2722, -inf
    %2727 = vmax.xlane.f32.xlu0 %v2726
    %v2728 = vpop.xlane.xlu0 %2727
    %v2729 = vsub.f32 %v2721, %v2725
    %v2730 = vsub.f32 %v2722, %v2728
    %v2731 = vmul.f32 %v2729, 1.442695
    %v2732 = vpow.pop %v2731
    %v2733 = vmul.f32 %v2730, 1.442695
    %v2734 = vpow.pop %v2733
    %v2735 = vsel %vm2306, %v2732, 0.0
    %2736 = vadd.xlane.f32.xlu0 %v2735
    %v2737 = vpop.xlane.xlu0 %2736
    %v2738 = vsel %vm2306, %v2734, 0.0
    %2739 = vadd.xlane.f32.xlu0 %v2738
    %v2740 = vpop.xlane.xlu0 %2739
    %v2741 = vrcp.pop %v2737
    %v2742 = vrcp.pop %v2740
    %v2743 = vmul.f32 %v2732, %v2741
    %v2744 = vmul.f32 %v2734, %v2742
    %2745 = vrot.lane.b32.xlu0 %v909, 32
    %v2746 = vpop.permute.xlu0 %2745
    %v2748 = vmul.f32 %v2061, %v2746
    %v2749 = vmul.f32 %v2066, %v2746
    %v2750 = vmul.f32 %v2071, %v2746
    %2754 = vrot.lane.b32.xlu0 %v2748, 96
    %v2755 = vpop.permute.xlu0 %2754
    %2756 = vrot.lane.b32.xlu0 %v2749, 96
    %v2757 = vpop.permute.xlu0 %2756
    %2758 = vrot.lane.b32.xlu0 %v2750, 96
    %v2759 = vpop.permute.xlu0 %2758
    %v2764 = vsel %vm2306, %v2743, 0
    %v2767 = vsel %vm2306, %v2744, 0
    %2769 = vmatprep.subr.mxu0 0.0
    %2770 = vmatpush1.msra.mxu0 0.0
    %2771 = vmatprep.subr.mxu0 0.0
    %2772 = vmatpush1.msra.mxu0 0.0
    %2773 = vmatprep.subr.mxu0 0.0
    %2774 = vmatpush1.msra.mxu0 0.0
    %2775 = vmatprep.subr.mxu0 0.0
    %2776 = vmatpush1.msra.mxu0 0.0
    %2777 = vmatprep.subr.mxu0 0.0
    %2778 = vmatpush1.msra.mxu0 0.0
    %2779 = vmatprep.subr.mxu0 0.0
    %2780 = vmatpush1.msra.mxu0 0.0
    %2781 = vmatprep.subr.mxu0 0.0
    %2782 = vmatpush1.msra.mxu0 0.0
    %2783 = vmatprep.subr.mxu0 0.0
    %2784 = vmatpush1.msra.mxu0 0.0
    %2785 = vmatprep.subr.mxu0 0.0
    %2786 = vmatpush1.msra.mxu0 0.0
    %2787 = vmatprep.subr.mxu0 0.0
    %2788 = vmatpush1.msra.mxu0 0.0
    %2789 = vmatprep.subr.mxu0 0.0
    %2790 = vmatpush1.msra.mxu0 0.0
    %2791 = vmatprep.subr.mxu0 0.0
    %2792 = vmatpush1.msra.mxu0 0.0
    %2793 = vmatprep.subr.mxu0 0.0
    %2794 = vmatpush1.msra.mxu0 0.0
    %2795 = vmatprep.subr.mxu0 0.0
    %2796 = vmatpush1.msra.mxu0 %v2759
    %2797 = vmatprep.subr.mxu0 0.0
    %2798 = vmatpush1.msra.mxu0 %v2757
    %2799 = vmatprep.subr.mxu0 0.0
    %2800 = vmatpush1.msra.mxu0 %v2755
    %2801 = vmatprep.subr.mxu0 0.0
    %2802 = vmatpush2.msra.mxu0 0.0
    %2803 = vmatprep.subr.mxu0 0.0
    %2804 = vmatpush2.msra.mxu0 0.0
    %2805 = vmatprep.subr.mxu0 0.0
    %2806 = vmatpush2.msra.mxu0 0.0
    %2807 = vmatprep.subr.mxu0 0.0
    %2808 = vmatpush2.msra.mxu0 0.0
    %2809 = vmatprep.subr.mxu0 0.0
    %2810 = vmatpush2.msra.mxu0 0.0
    %2811 = vmatprep.subr.mxu0 0.0
    %2812 = vmatpush2.msra.mxu0 0.0
    %2813 = vmatprep.subr.mxu0 0.0
    %2814 = vmatpush2.msra.mxu0 0.0
    %2815 = vmatprep.subr.mxu0 0.0
    %2816 = vmatpush2.msra.mxu0 0.0
    %2817 = vmatprep.subr.mxu0 0.0
    %2818 = vmatpush2.msra.mxu0 0.0
    %2819 = vmatprep.subr.mxu0 0.0
    %2820 = vmatpush2.msra.mxu0 0.0
    %2821 = vmatprep.subr.mxu0 0.0
    %2822 = vmatpush2.msra.mxu0 0.0
    %2823 = vmatprep.subr.mxu0 0.0
    %2824 = vmatpush2.msra.mxu0 0.0
    %2825 = vmatprep.subr.mxu0 0.0
    %2826 = vmatpush2.msra.mxu0 0.0
    %2827 = vmatprep.subr.mxu0 0.0
    %2828 = vmatpush2.msra.mxu0 0.0
    %2829 = vmatprep.subr.mxu0 0.0
    %2830 = vmatpush2.msra.mxu0 0.0
    %2831 = vmatprep.subr.mxu0 0.0
    %2832 = vmatpush2.msra.mxu0 0.0
    %2833 = vmatprep.mubr.f32.mxu0 0.0
    %2834 = vmatmul.mubr.f32.gmra.mxu0 %v2764
    %v2835 = vpop.f32.mrf.mxu0
    %v2836 = vadd.f32 0.0, %v2835
    %v2837 = vpop.f32.mrf.mxu0
    %2838 = vmatprep.mubr.f32.mxu0 0.0
    %2839 = vmatmul.mubr.f32.gmra.mxu0 %v2767
    %v2840 = vpop.f32.mrf.mxu0
    %v2841 = vadd.f32 0.0, %v2840
    %v2842 = vpop.f32.mrf.mxu0
    %2843 = vdwg.mxu0
    %v2844 = vadd.f32 %v2628, %v2836
    %v2845 = vadd.f32 %v2633, %v2841
    %v2846 = vmul.f32 %v2200, %v1120
    %v2847 = vmul.f32 %v2205, %v1120
    %v2849 = vsel %vm375, %v2846, 0
    %v2852 = vsel %vm375, %v2847, 0
    %2854 = vmatprep.subr.mxu0 0.0
    %2855 = vmatpush1.xpose.msra.mxu0 0.0
    %2856 = vmatprep.subr.mxu0 0.0
    %2857 = vmatpush1.xpose.msra.mxu0 0.0
    %2858 = vmatprep.subr.mxu0 0.0
    %2859 = vmatpush1.xpose.msra.mxu0 0.0
    %2860 = vmatprep.subr.mxu0 0.0
    %2861 = vmatpush1.xpose.msra.mxu0 0.0
    %2862 = vmatprep.subr.mxu0 0.0
    %2863 = vmatpush1.xpose.msra.mxu0 0.0
    %2864 = vmatprep.subr.mxu0 0.0
    %2865 = vmatpush1.xpose.msra.mxu0 0.0
    %2866 = vmatprep.subr.mxu0 0.0
    %2867 = vmatpush1.xpose.msra.mxu0 0.0
    %2868 = vmatprep.subr.mxu0 0.0
    %2869 = vmatpush1.xpose.msra.mxu0 0.0
    %2870 = vmatprep.subr.mxu0 0.0
    %2871 = vmatpush1.xpose.msra.mxu0 0.0
    %2872 = vmatprep.subr.mxu0 0.0
    %2873 = vmatpush1.xpose.msra.mxu0 0.0
    %2874 = vmatprep.subr.mxu0 0.0
    %2875 = vmatpush1.xpose.msra.mxu0 0.0
    %2876 = vmatprep.subr.mxu0 0.0
    %2877 = vmatpush1.xpose.msra.mxu0 0.0
    %2878 = vmatprep.subr.mxu0 0.0
    %2879 = vmatpush1.xpose.msra.mxu0 0.0
    %2880 = vmatprep.subr.mxu0 0.0
    %2881 = vmatpush1.xpose.msra.mxu0 %v2225
    %2882 = vmatprep.subr.mxu0 0.0
    %2883 = vmatpush1.xpose.msra.mxu0 %v2222
    %2884 = vmatprep.subr.mxu0 0.0
    %2885 = vmatpush1.xpose.msra.mxu0 %v2219
    %2886 = vmatprep.subr.mxu0 0.0
    %2887 = vmatpush2.xpose.msra.mxu0 0.0
    %2888 = vmatprep.subr.mxu0 0.0
    %2889 = vmatpush2.xpose.msra.mxu0 0.0
    %2890 = vmatprep.subr.mxu0 0.0
    %2891 = vmatpush2.xpose.msra.mxu0 0.0
    %2892 = vmatprep.subr.mxu0 0.0
    %2893 = vmatpush2.xpose.msra.mxu0 0.0
    %2894 = vmatprep.subr.mxu0 0.0
    %2895 = vmatpush2.xpose.msra.mxu0 0.0
    %2896 = vmatprep.subr.mxu0 0.0
    %2897 = vmatpush2.xpose.msra.mxu0 0.0
    %2898 = vmatprep.subr.mxu0 0.0
    %2899 = vmatpush2.xpose.msra.mxu0 0.0
    %2900 = vmatprep.subr.mxu0 0.0
    %2901 = vmatpush2.xpose.msra.mxu0 0.0
    %2902 = vmatprep.subr.mxu0 0.0
    %2903 = vmatpush2.xpose.msra.mxu0 0.0
    %2904 = vmatprep.subr.mxu0 0.0
    %2905 = vmatpush2.xpose.msra.mxu0 0.0
    %2906 = vmatprep.subr.mxu0 0.0
    %2907 = vmatpush2.xpose.msra.mxu0 0.0
    %2908 = vmatprep.subr.mxu0 0.0
    %2909 = vmatpush2.xpose.msra.mxu0 0.0
    %2910 = vmatprep.subr.mxu0 0.0
    %2911 = vmatpush2.xpose.msra.mxu0 0.0
    %2912 = vmatprep.subr.mxu0 0.0
    %2913 = vmatpush2.xpose.msra.mxu0 0.0
    %2914 = vmatprep.subr.mxu0 0.0
    %2915 = vmatpush2.xpose.msra.mxu0 0.0
    %2916 = vmatprep.subr.mxu0 0.0
    %2917 = vmatpush2.xpose.msra.mxu0 0.0
    %2918 = vmatprep.mubr.f32.mxu0 0.0
    %2919 = vmatmul.mubr.f32.gmra.mxu0 %v2849
    %v2920 = vpop.f32.mrf.mxu0
    %v2921 = vadd.f32 0.0, %v2920
    %v2922 = vpop.f32.mrf.mxu0
    %2923 = vmatprep.mubr.f32.mxu0 0.0
    %2924 = vmatmul.mubr.f32.gmra.mxu0 %v2852
    %v2925 = vpop.f32.mrf.mxu0
    %v2926 = vadd.f32 0.0, %v2925
    %v2927 = vpop.f32.mrf.mxu0
    %2928 = vdwg.mxu0
    %v2929 = vmul.f32 %v2921, 0.35355338
    %v2930 = vmul.f32 %v2926, 0.35355338
    %v2931 = vadd.f32 %v2929, %v2208
    %v2932 = vadd.f32 %v2930, %v2209
    %v2933 = vsel %vm2306, %v2931, -inf
    %2934 = vmax.xlane.f32.xlu0 %v2933
    %v2935 = vpop.xlane.xlu0 %2934
    %v2936 = vsel %vm2306, %v2932, -inf
    %2937 = vmax.xlane.f32.xlu0 %v2936
    %v2938 = vpop.xlane.xlu0 %2937
    %v2939 = vsub.f32 %v2931, %v2935
    %v2940 = vsub.f32 %v2932, %v2938
    %v2941 = vmul.f32 %v2939, 1.442695
    %v2942 = vpow.pop %v2941
    %v2943 = vmul.f32 %v2940, 1.442695
    %v2944 = vpow.pop %v2943
    %v2945 = vsel %vm2306, %v2942, 0.0
    %2946 = vadd.xlane.f32.xlu0 %v2945
    %v2947 = vpop.xlane.xlu0 %2946
    %v2948 = vsel %vm2306, %v2944, 0.0
    %2949 = vadd.xlane.f32.xlu0 %v2948
    %v2950 = vpop.xlane.xlu0 %2949
    %v2951 = vrcp.pop %v2947
    %v2952 = vrcp.pop %v2950
    %v2953 = vmul.f32 %v2942, %v2951
    %v2954 = vmul.f32 %v2944, %v2952
    %2955 = vrot.lane.b32.xlu0 %v1120, 32
    %v2956 = vpop.permute.xlu0 %2955
    %v2958 = vmul.f32 %v2061, %v2956
    %v2959 = vmul.f32 %v2066, %v2956
    %v2960 = vmul.f32 %v2071, %v2956
    %2964 = vrot.lane.b32.xlu0 %v2958, 96
    %v2965 = vpop.permute.xlu0 %2964
    %2966 = vrot.lane.b32.xlu0 %v2959, 96
    %v2967 = vpop.permute.xlu0 %2966
    %2968 = vrot.lane.b32.xlu0 %v2960, 96
    %v2969 = vpop.permute.xlu0 %2968
    %v2974 = vsel %vm2306, %v2953, 0
    %v2977 = vsel %vm2306, %v2954, 0
    %2979 = vmatprep.subr.mxu0 0.0
    %2980 = vmatpush1.msra.mxu0 0.0
    %2981 = vmatprep.subr.mxu0 0.0
    %2982 = vmatpush1.msra.mxu0 0.0
    %2983 = vmatprep.subr.mxu0 0.0
    %2984 = vmatpush1.msra.mxu0 0.0
    %2985 = vmatprep.subr.mxu0 0.0
    %2986 = vmatpush1.msra.mxu0 0.0
    %2987 = vmatprep.subr.mxu0 0.0
    %2988 = vmatpush1.msra.mxu0 0.0
    %2989 = vmatprep.subr.mxu0 0.0
    %2990 = vmatpush1.msra.mxu0 0.0
    %2991 = vmatprep.subr.mxu0 0.0
    %2992 = vmatpush1.msra.mxu0 0.0
    %2993 = vmatprep.subr.mxu0 0.0
    %2994 = vmatpush1.msra.mxu0 0.0
    %2995 = vmatprep.subr.mxu0 0.0
    %2996 = vmatpush1.msra.mxu0 0.0
    %2997 = vmatprep.subr.mxu0 0.0
    %2998 = vmatpush1.msra.mxu0 0.0
    %2999 = vmatprep.subr.mxu0 0.0
    %3000 = vmatpush1.msra.mxu0 0.0
    %3001 = vmatprep.subr.mxu0 0.0
    %3002 = vmatpush1.msra.mxu0 0.0
    %3003 = vmatprep.subr.mxu0 0.0
    %3004 = vmatpush1.msra.mxu0 0.0
    %3005 = vmatprep.subr.mxu0 0.0
    %3006 = vmatpush1.msra.mxu0 %v2969
    %3007 = vmatprep.subr.mxu0 0.0
    %3008 = vmatpush1.msra.mxu0 %v2967
    %3009 = vmatprep.subr.mxu0 0.0
    %3010 = vmatpush1.msra.mxu0 %v2965
    %3011 = vmatprep.subr.mxu0 0.0
    %3012 = vmatpush2.msra.mxu0 0.0
    %3013 = vmatprep.subr.mxu0 0.0
    %3014 = vmatpush2.msra.mxu0 0.0
    %3015 = vmatprep.subr.mxu0 0.0
    %3016 = vmatpush2.msra.mxu0 0.0
    %3017 = vmatprep.subr.mxu0 0.0
    %3018 = vmatpush2.msra.mxu0 0.0
    %3019 = vmatprep.subr.mxu0 0.0
    %3020 = vmatpush2.msra.mxu0 0.0
    %3021 = vmatprep.subr.mxu0 0.0
    %3022 = vmatpush2.msra.mxu0 0.0
    %3023 = vmatprep.subr.mxu0 0.0
    %3024 = vmatpush2.msra.mxu0 0.0
    %3025 = vmatprep.subr.mxu0 0.0
    %3026 = vmatpush2.msra.mxu0 0.0
    %3027 = vmatprep.subr.mxu0 0.0
    %3028 = vmatpush2.msra.mxu0 0.0
    %3029 = vmatprep.subr.mxu0 0.0
    %3030 = vmatpush2.msra.mxu0 0.0
    %3031 = vmatprep.subr.mxu0 0.0
    %3032 = vmatpush2.msra.mxu0 0.0
    %3033 = vmatprep.subr.mxu0 0.0
    %3034 = vmatpush2.msra.mxu0 0.0
    %3035 = vmatprep.subr.mxu0 0.0
    %3036 = vmatpush2.msra.mxu0 0.0
    %3037 = vmatprep.subr.mxu0 0.0
    %3038 = vmatpush2.msra.mxu0 0.0
    %3039 = vmatprep.subr.mxu0 0.0
    %3040 = vmatpush2.msra.mxu0 0.0
    %3041 = vmatprep.subr.mxu0 0.0
    %3042 = vmatpush2.msra.mxu0 0.0
    %3043 = vmatprep.mubr.f32.mxu0 0.0
    %3044 = vmatmul.mubr.f32.gmra.mxu0 %v2974
    %v3045 = vpop.f32.mrf.mxu0
    %v3046 = vadd.f32 0.0, %v3045
    %v3047 = vpop.f32.mrf.mxu0
    %3048 = vmatprep.mubr.f32.mxu0 0.0
    %3049 = vmatmul.mubr.f32.gmra.mxu0 %v2977
    %v3050 = vpop.f32.mrf.mxu0
    %v3051 = vadd.f32 0.0, %v3050
    %v3052 = vpop.f32.mrf.mxu0
    %3053 = vdwg.mxu0
    %v3054 = vadd.f32 %v2844, %v3046
    %v3055 = vadd.f32 %v2845, %v3051
    %v3056 = vld [vmem:[#allocation16] sm:$0xff]
    %v3057 = vld [vmem:[#allocation16 + $0x8] sm:$0xff]
    %v3058 = vld [vmem:[#allocation16 + $0x10] sm:$0xff]
    %v3059 = vld [vmem:[#allocation16 + $0x18] sm:$0xff]
    %3060 = vrot.lane.b32.xlu0 %v1981, 32
    %v3061 = vpop.permute.xlu0 %3060
    %v3064 = vsel %vm375, %v3054, 0
    %v3067 = vsel %vm375, %v3055, 0
    %3069 = vmatprep.subr.mxu0 0.0
    %3070 = vmatpush1.msra.mxu0 0.0
    %3071 = vmatprep.subr.mxu0 0.0
    %3072 = vmatpush1.msra.mxu0 0.0
    %3073 = vmatprep.subr.mxu0 0.0
    %3074 = vmatpush1.msra.mxu0 0.0
    %3075 = vmatprep.subr.mxu0 0.0
    %3076 = vmatpush1.msra.mxu0 0.0
    %3077 = vmatprep.subr.mxu0 0.0
    %3078 = vmatpush1.msra.mxu0 0.0
    %3079 = vmatprep.subr.mxu0 0.0
    %3080 = vmatpush1.msra.mxu0 0.0
    %3081 = vmatprep.subr.mxu0 0.0
    %3082 = vmatpush1.msra.mxu0 0.0
    %3083 = vmatprep.subr.mxu0 0.0
    %3084 = vmatpush1.msra.mxu0 0.0
    %3085 = vmatprep.subr.mxu0 0.0
    %3086 = vmatpush1.msra.mxu0 0.0
    %3087 = vmatprep.subr.mxu0 0.0
    %3088 = vmatpush1.msra.mxu0 0.0
    %3089 = vmatprep.subr.mxu0 0.0
    %3090 = vmatpush1.msra.mxu0 0.0
    %3091 = vmatprep.subr.mxu0 0.0
    %3092 = vmatpush1.msra.mxu0 0.0
    %3093 = vmatprep.subr.mxu0 0.0
    %3094 = vmatpush1.msra.mxu0 %v3059
    %3095 = vmatprep.subr.mxu0 0.0
    %3096 = vmatpush1.msra.mxu0 %v3058
    %3097 = vmatprep.subr.mxu0 0.0
    %3098 = vmatpush1.msra.mxu0 %v3057
    %3099 = vmatprep.subr.mxu0 0.0
    %3100 = vmatpush1.msra.mxu0 %v3056
    %3101 = vmatprep.subr.mxu0 0.0
    %3102 = vmatpush2.msra.mxu0 0.0
    %3103 = vmatprep.subr.mxu0 0.0
    %3104 = vmatpush2.msra.mxu0 0.0
    %3105 = vmatprep.subr.mxu0 0.0
    %3106 = vmatpush2.msra.mxu0 0.0
    %3107 = vmatprep.subr.mxu0 0.0
    %3108 = vmatpush2.msra.mxu0 0.0
    %3109 = vmatprep.subr.mxu0 0.0
    %3110 = vmatpush2.msra.mxu0 0.0
    %3111 = vmatprep.subr.mxu0 0.0
    %3112 = vmatpush2.msra.mxu0 0.0
    %3113 = vmatprep.subr.mxu0 0.0
    %3114 = vmatpush2.msra.mxu0 0.0
    %3115 = vmatprep.subr.mxu0 0.0
    %3116 = vmatpush2.msra.mxu0 0.0
    %3117 = vmatprep.subr.mxu0 0.0
    %3118 = vmatpush2.msra.mxu0 0.0
    %3119 = vmatprep.subr.mxu0 0.0
    %3120 = vmatpush2.msra.mxu0 0.0
    %3121 = vmatprep.subr.mxu0 0.0
    %3122 = vmatpush2.msra.mxu0 0.0
    %3123 = vmatprep.subr.mxu0 0.0
    %3124 = vmatpush2.msra.mxu0 0.0
    %3125 = vmatprep.subr.mxu0 0.0
    %3126 = vmatpush2.msra.mxu0 0.0
    %3127 = vmatprep.subr.mxu0 0.0
    %3128 = vmatpush2.msra.mxu0 0.0
    %3129 = vmatprep.subr.mxu0 0.0
    %3130 = vmatpush2.msra.mxu0 0.0
    %3131 = vmatprep.subr.mxu0 0.0
    %3132 = vmatpush2.msra.mxu0 0.0
    %3133 = vmatprep.mubr.f32.mxu0 0.0
    %3134 = vmatmul.mubr.f32.gmra.mxu0 %v3064
    %v3135 = vpop.f32.mrf.mxu0
    %v3136 = vadd.f32 %v3061, %v3135
    %v3137 = vpop.f32.mrf.mxu0
    %3138 = vmatprep.mubr.f32.mxu0 0.0
    %3139 = vmatmul.mubr.f32.gmra.mxu0 %v3067
    %v3140 = vpop.f32.mrf.mxu0
    %v3141 = vadd.f32 %v3061, %v3140
    %v3142 = vpop.f32.mrf.mxu0
    %3143 = vdwg.mxu0
    %v3146 = vcombine.high %v3136, %v3136
    %v3148 = vunpack.c.l.s4 1983009808
    %v3149 = vunpack.c.0.s8 %v3148
    %v3150 = vlaneseq
    %v3151 = vshrl.u32 %v3150, 7
    %v3152 = vsub.s32 %v3149, %v3151
    %v3153 = vrot.slane %v3136, %v3152
    %v3155 = vunpack.c.l.s4 1983009808
    %v3156 = vunpack.c.0.s8 %v3155
    %v3157 = vlaneseq
    %v3158 = vshrl.u32 %v3157, 7
    %v3159 = vsub.s32 %v3156, %v3158
    %v3160 = vrot.slane %v3146, %v3159
    %v3161 = vcombine.high %v3153, %v3153
    %v3162 = vcombine.high %v3160, %v3160
    %v3163 = vcombine.high %v3141, %v3141
    %v3165 = vunpack.c.l.s4 1983009808
    %v3166 = vunpack.c.0.s8 %v3165
    %v3167 = vlaneseq
    %v3168 = vshrl.u32 %v3167, 7
    %v3169 = vsub.s32 %v3166, %v3168
    %v3170 = vrot.slane %v3141, %v3169
    %v3172 = vunpack.c.l.s4 1983009808
    %v3173 = vunpack.c.0.s8 %v3172
    %v3174 = vlaneseq
    %v3175 = vshrl.u32 %v3174, 7
    %v3176 = vsub.s32 %v3173, %v3175
    %v3177 = vrot.slane %v3163, %v3176
    %v3178 = vcombine.high %v3170, %v3170
    %v3179 = vcombine.high %v3177, %v3177
    %v3188 = vadd.f32 %v1796, %v3153
    %v3189 = vadd.f32 %v1797, %v3161
    %v3190 = vadd.f32 %v1798, %v3160
    %v3191 = vadd.f32 %v1799, %v3162
    %v3192 = vadd.f32 %v1800, %v3170
    %v3193 = vadd.f32 %v1801, %v3178
    %v3194 = vadd.f32 %v1802, %v3177
    %v3195 = vadd.f32 %v1803, %v3179
    %v3204 = vcombine.low %v3188, %v3189
    %v3205 = vcombine.low %v3190, %v3191
    %v3207 = vunpack.c.l.s4 1983009808
    %v3208 = vunpack.c.0.s8 %v3207
    %v3209 = vlaneseq
    %v3210 = vshrl.u32 %v3209, 7
    %v3211 = vsub.s32 %v3208, %v3210
    %v3212 = vrot.slane %v3204, %v3211
    %v3214 = vunpack.c.l.s4 1983009808
    %v3215 = vunpack.c.0.s8 %v3214
    %v3216 = vlaneseq
    %v3217 = vshrl.u32 %v3216, 7
    %v3218 = vsub.s32 %v3215, %v3217
    %v3219 = vrot.slane %v3205, %v3218
    %v3220 = vcombine.low %v3212, %v3219
    %v3221 = vcombine.low %v3192, %v3193
    %v3222 = vcombine.low %v3194, %v3195
    %v3224 = vunpack.c.l.s4 1983009808
    %v3225 = vunpack.c.0.s8 %v3224
    %v3226 = vlaneseq
    %v3227 = vshrl.u32 %v3226, 7
    %v3228 = vsub.s32 %v3225, %v3227
    %v3229 = vrot.slane %v3221, %v3228
    %v3231 = vunpack.c.l.s4 1983009808
    %v3232 = vunpack.c.0.s8 %v3231
    %v3233 = vlaneseq
    %v3234 = vshrl.u32 %v3233, 7
    %v3235 = vsub.s32 %v3232, %v3234
    %v3236 = vrot.slane %v3222, %v3235
    %v3237 = vcombine.low %v3229, %v3236
    %v3240 = vsel %vm375, %v3220, 0.0
    %3241 = vadd.xlane.f32.xlu0 %v3240
    %v3242 = vpop.xlane.xlu0 %3241
    %v3243 = vsel %vm375, %v3237, 0.0
    %3244 = vadd.xlane.f32.xlu0 %v3243
    %v3245 = vpop.xlane.xlu0 %3244
    %v3246 = vmul.f32 %v3242, %v1517
    %v3247 = vmul.f32 %v3245, %v1517
    %v3248 = vmul.f32 %v3188, %v3188
    %v3249 = vmul.f32 %v3189, %v3189
    %v3250 = vmul.f32 %v3190, %v3190
    %v3251 = vmul.f32 %v3191, %v3191
    %v3252 = vmul.f32 %v3192, %v3192
    %v3253 = vmul.f32 %v3193, %v3193
    %v3254 = vmul.f32 %v3194, %v3194
    %v3255 = vmul.f32 %v3195, %v3195
    %v3264 = vcombine.low %v3248, %v3249
    %v3265 = vcombine.low %v3250, %v3251
    %v3267 = vunpack.c.l.s4 1983009808
    %v3268 = vunpack.c.0.s8 %v3267
    %v3269 = vlaneseq
    %v3270 = vshrl.u32 %v3269, 7
    %v3271 = vsub.s32 %v3268, %v3270
    %v3272 = vrot.slane %v3264, %v3271
    %v3274 = vunpack.c.l.s4 1983009808
    %v3275 = vunpack.c.0.s8 %v3274
    %v3276 = vlaneseq
    %v3277 = vshrl.u32 %v3276, 7
    %v3278 = vsub.s32 %v3275, %v3277
    %v3279 = vrot.slane %v3265, %v3278
    %v3280 = vcombine.low %v3272, %v3279
    %v3281 = vcombine.low %v3252, %v3253
    %v3282 = vcombine.low %v3254, %v3255
    %v3284 = vunpack.c.l.s4 1983009808
    %v3285 = vunpack.c.0.s8 %v3284
    %v3286 = vlaneseq
    %v3287 = vshrl.u32 %v3286, 7
    %v3288 = vsub.s32 %v3285, %v3287
    %v3289 = vrot.slane %v3281, %v3288
    %v3291 = vunpack.c.l.s4 1983009808
    %v3292 = vunpack.c.0.s8 %v3291
    %v3293 = vlaneseq
    %v3294 = vshrl.u32 %v3293, 7
    %v3295 = vsub.s32 %v3292, %v3294
    %v3296 = vrot.slane %v3282, %v3295
    %v3297 = vcombine.low %v3289, %v3296
    %v3300 = vsel %vm375, %v3280, 0.0
    %3301 = vadd.xlane.f32.xlu0 %v3300
    %v3302 = vpop.xlane.xlu0 %3301
    %v3303 = vsel %vm375, %v3297, 0.0
    %3304 = vadd.xlane.f32.xlu0 %v3303
    %v3305 = vpop.xlane.xlu0 %3304
    %v3306 = vmul.f32 %v3302, %v1517
    %v3307 = vmul.f32 %v3305, %v1517
    %v3308 = vmul.f32 %v3246, %v3246
    %v3309 = vmul.f32 %v3247, %v3247
    %v3310 = vsub.f32 %v3306, %v3308
    %v3311 = vsub.f32 %v3307, %v3309
    %v3315 = vunpack.c.l.s4 269488144
    %v3316 = vunpack.c.0.s8 %v3315
    %v3317 = vlaneseq
    %v3318 = vshrl.u32 %v3317, 7
    %v3319 = vsub.s32 %v3316, %v3318
    %v3320 = vrot.slane %v3246, %v3319
    %v3322 = vunpack.c.l.s4 842150450
    %v3323 = vunpack.c.0.s8 %v3322
    %v3324 = vlaneseq
    %v3325 = vshrl.u32 %v3324, 7
    %v3326 = vsub.s32 %v3323, %v3325
    %v3327 = vrot.slane %v3246, %v3326
    %v3329 = vunpack.c.l.s4 1414812756
    %v3330 = vunpack.c.0.s8 %v3329
    %v3331 = vlaneseq
    %v3332 = vshrl.u32 %v3331, 7
    %v3333 = vsub.s32 %v3330, %v3332
    %v3334 = vrot.slane %v3246, %v3333
    %v3336 = vunpack.c.l.s4 1987475062
    %v3337 = vunpack.c.0.s8 %v3336
    %v3338 = vlaneseq
    %v3339 = vshrl.u32 %v3338, 7
    %v3340 = vsub.s32 %v3337, %v3339
    %v3341 = vrot.slane %v3246, %v3340
    %v3343 = vunpack.c.l.s4 269488144
    %v3344 = vunpack.c.0.s8 %v3343
    %v3345 = vlaneseq
    %v3346 = vshrl.u32 %v3345, 7
    %v3347 = vsub.s32 %v3344, %v3346
    %v3348 = vrot.slane %v3247, %v3347
    %v3350 = vunpack.c.l.s4 842150450
    %v3351 = vunpack.c.0.s8 %v3350
    %v3352 = vlaneseq
    %v3353 = vshrl.u32 %v3352, 7
    %v3354 = vsub.s32 %v3351, %v3353
    %v3355 = vrot.slane %v3247, %v3354
    %v3357 = vunpack.c.l.s4 1414812756
    %v3358 = vunpack.c.0.s8 %v3357
    %v3359 = vlaneseq
    %v3360 = vshrl.u32 %v3359, 7
    %v3361 = vsub.s32 %v3358, %v3360
    %v3362 = vrot.slane %v3247, %v3361
    %v3364 = vunpack.c.l.s4 1987475062
    %v3365 = vunpack.c.0.s8 %v3364
    %v3366 = vlaneseq
    %v3367 = vshrl.u32 %v3366, 7
    %v3368 = vsub.s32 %v3365, %v3367
    %v3369 = vrot.slane %v3247, %v3368
    %v3378 = vsub.f32 %v3188, %v3320
    %v3379 = vsub.f32 %v3189, %v3327
    %v3380 = vsub.f32 %v3190, %v3334
    %v3381 = vsub.f32 %v3191, %v3341
    %v3382 = vsub.f32 %v3192, %v3348
    %v3383 = vsub.f32 %v3193, %v3355
    %v3384 = vsub.f32 %v3194, %v3362
    %v3385 = vsub.f32 %v3195, %v3369
    %v3386 = vadd.f32 %v3310, 1e-05
    %v3387 = vadd.f32 %v3311, 1e-05
    %v3388 = vrsqrt.pop %v3386
    %v3389 = vrsqrt.pop %v3387
    %v3393 = vunpack.c.l.s4 269488144
    %v3394 = vunpack.c.0.s8 %v3393
    %v3395 = vlaneseq
    %v3396 = vshrl.u32 %v3395, 7
    %v3397 = vsub.s32 %v3394, %v3396
    %v3398 = vrot.slane %v3388, %v3397
    %v3400 = vunpack.c.l.s4 842150450
    %v3401 = vunpack.c.0.s8 %v3400
    %v3402 = vlaneseq
    %v3403 = vshrl.u32 %v3402, 7
    %v3404 = vsub.s32 %v3401, %v3403
    %v3405 = vrot.slane %v3388, %v3404
    %v3407 = vunpack.c.l.s4 1414812756
    %v3408 = vunpack.c.0.s8 %v3407
    %v3409 = vlaneseq
    %v3410 = vshrl.u32 %v3409, 7
    %v3411 = vsub.s32 %v3408, %v3410
    %v3412 = vrot.slane %v3388, %v3411
    %v3414 = vunpack.c.l.s4 1987475062
    %v3415 = vunpack.c.0.s8 %v3414
    %v3416 = vlaneseq
    %v3417 = vshrl.u32 %v3416, 7
    %v3418 = vsub.s32 %v3415, %v3417
    %v3419 = vrot.slane %v3388, %v3418
    %v3421 = vunpack.c.l.s4 269488144
    %v3422 = vunpack.c.0.s8 %v3421
    %v3423 = vlaneseq
    %v3424 = vshrl.u32 %v3423, 7
    %v3425 = vsub.s32 %v3422, %v3424
    %v3426 = vrot.slane %v3389, %v3425
    %v3428 = vunpack.c.l.s4 842150450
    %v3429 = vunpack.c.0.s8 %v3428
    %v3430 = vlaneseq
    %v3431 = vshrl.u32 %v3430, 7
    %v3432 = vsub.s32 %v3429, %v3431
    %v3433 = vrot.slane %v3389, %v3432
    %v3435 = vunpack.c.l.s4 1414812756
    %v3436 = vunpack.c.0.s8 %v3435
    %v3437 = vlaneseq
    %v3438 = vshrl.u32 %v3437, 7
    %v3439 = vsub.s32 %v3436, %v3438
    %v3440 = vrot.slane %v3389, %v3439
    %v3442 = vunpack.c.l.s4 1987475062
    %v3443 = vunpack.c.0.s8 %v3442
    %v3444 = vlaneseq
    %v3445 = vshrl.u32 %v3444, 7
    %v3446 = vsub.s32 %v3443, %v3445
    %v3447 = vrot.slane %v3389, %v3446
    %v3456 = vmul.f32 %v3378, %v3398
    %v3457 = vmul.f32 %v3379, %v3405
    %v3458 = vmul.f32 %v3380, %v3412
    %v3459 = vmul.f32 %v3381, %v3419
    %v3460 = vmul.f32 %v3382, %v3426
    %v3461 = vmul.f32 %v3383, %v3433
    %v3462 = vmul.f32 %v3384, %v3440
    %v3463 = vmul.f32 %v3385, %v3447
    %v3464 = vlaneseq
    %v3465 = vshrl.u32 %v3464, 7
    %v3466 = vsub.s32 1, %v3465
    %v3467 = vrot.slane %v273, %v3466
    %v3469 = vcombine.high %v3467, %v3467
    %v3471 = vunpack.c.l.s4 1983009808
    %v3472 = vunpack.c.0.s8 %v3471
    %v3473 = vlaneseq
    %v3474 = vshrl.u32 %v3473, 7
    %v3475 = vsub.s32 %v3472, %v3474
    %v3476 = vrot.slane %v3467, %v3475
    %v3478 = vunpack.c.l.s4 1983009808
    %v3479 = vunpack.c.0.s8 %v3478
    %v3480 = vlaneseq
    %v3481 = vshrl.u32 %v3480, 7
    %v3482 = vsub.s32 %v3479, %v3481
    %v3483 = vrot.slane %v3469, %v3482
    %v3484 = vcombine.high %v3476, %v3476
    %v3485 = vcombine.high %v3483, %v3483
    %v3490 = vmul.f32 %v3456, %v3476
    %v3491 = vmul.f32 %v3457, %v3484
    %v3492 = vmul.f32 %v3458, %v3483
    %v3493 = vmul.f32 %v3459, %v3485
    %v3494 = vmul.f32 %v3460, %v3476
    %v3495 = vmul.f32 %v3461, %v3484
    %v3496 = vmul.f32 %v3462, %v3483
    %v3497 = vmul.f32 %v3463, %v3485
    %v3498 = vlaneseq
    %v3499 = vshrl.u32 %v3498, 7
    %v3500 = vsub.s32 1, %v3499
    %v3501 = vrot.slane %v274, %v3500
    %v3503 = vcombine.high %v3501, %v3501
    %v3505 = vunpack.c.l.s4 1983009808
    %v3506 = vunpack.c.0.s8 %v3505
    %v3507 = vlaneseq
    %v3508 = vshrl.u32 %v3507, 7
    %v3509 = vsub.s32 %v3506, %v3508
    %v3510 = vrot.slane %v3501, %v3509
    %v3512 = vunpack.c.l.s4 1983009808
    %v3513 = vunpack.c.0.s8 %v3512
    %v3514 = vlaneseq
    %v3515 = vshrl.u32 %v3514, 7
    %v3516 = vsub.s32 %v3513, %v3515
    %v3517 = vrot.slane %v3503, %v3516
    %v3518 = vcombine.high %v3510, %v3510
    %v3519 = vcombine.high %v3517, %v3517
    %v3524 = vadd.f32 %v3490, %v3510
    %v3525 = vadd.f32 %v3491, %v3518
    %v3526 = vadd.f32 %v3492, %v3517
    %v3527 = vadd.f32 %v3493, %v3519
    %v3528 = vadd.f32 %v3494, %v3510
    %v3529 = vadd.f32 %v3495, %v3518
    %v3530 = vadd.f32 %v3496, %v3517
    %v3531 = vadd.f32 %v3497, %v3519
    %v3532 = vld [vmem:[#allocation20] sm:$0x1]
    %v3533 = vld [vmem:[#allocation19] sm:$0xff]
    %v3534 = vld [vmem:[#allocation19 + $0x8] sm:$0xff]
    %v3535 = vld [vmem:[#allocation19 + $0x10] sm:$0xff]
    %v3536 = vld [vmem:[#allocation19 + $0x18] sm:$0xff]
    %v3538 = vlaneseq
    %v3539 = vshrl.u32 %v3538, 7
    %v3540 = vsub.s32 0, %v3539
    %v3541 = vrot.slane %v3532, %v3540
    %v3551 = vcombine.low %v3524, %v3525
    %v3552 = vcombine.low %v3526, %v3527
    %v3554 = vunpack.c.l.s4 1983009808
    %v3555 = vunpack.c.0.s8 %v3554
    %v3556 = vlaneseq
    %v3557 = vshrl.u32 %v3556, 7
    %v3558 = vsub.s32 %v3555, %v3557
    %v3559 = vrot.slane %v3551, %v3558
    %v3561 = vunpack.c.l.s4 1983009808
    %v3562 = vunpack.c.0.s8 %v3561
    %v3563 = vlaneseq
    %v3564 = vshrl.u32 %v3563, 7
    %v3565 = vsub.s32 %v3562, %v3564
    %v3566 = vrot.slane %v3552, %v3565
    %v3567 = vcombine.low %v3559, %v3566
    %v3568 = vcombine.low %v3528, %v3529
    %v3569 = vcombine.low %v3530, %v3531
    %v3571 = vunpack.c.l.s4 1983009808
    %v3572 = vunpack.c.0.s8 %v3571
    %v3573 = vlaneseq
    %v3574 = vshrl.u32 %v3573, 7
    %v3575 = vsub.s32 %v3572, %v3574
    %v3576 = vrot.slane %v3568, %v3575
    %v3578 = vunpack.c.l.s4 1983009808
    %v3579 = vunpack.c.0.s8 %v3578
    %v3580 = vlaneseq
    %v3581 = vshrl.u32 %v3580, 7
    %v3582 = vsub.s32 %v3579, %v3581
    %v3583 = vrot.slane %v3569, %v3582
    %v3584 = vcombine.low %v3576, %v3583
    %v3585 = vsel %vm375, %v3567, 0
    %v3587 = vsel %vm375, %v3584, 0
    %3589 = vmatprep.subr.mxu0 0.0
    %3590 = vmatpush1.msra.mxu0 0.0
    %3591 = vmatprep.subr.mxu0 0.0
    %3592 = vmatpush1.msra.mxu0 0.0
    %3593 = vmatprep.subr.mxu0 0.0
    %3594 = vmatpush1.msra.mxu0 0.0
    %3595 = vmatprep.subr.mxu0 0.0
    %3596 = vmatpush1.msra.mxu0 0.0
    %3597 = vmatprep.subr.mxu0 0.0
    %3598 = vmatpush1.msra.mxu0 0.0
    %3599 = vmatprep.subr.mxu0 0.0
    %3600 = vmatpush1.msra.mxu0 0.0
    %3601 = vmatprep.subr.mxu0 0.0
    %3602 = vmatpush1.msra.mxu0 0.0
    %3603 = vmatprep.subr.mxu0 0.0
    %3604 = vmatpush1.msra.mxu0 0.0
    %3605 = vmatprep.subr.mxu0 0.0
    %3606 = vmatpush1.msra.mxu0 0.0
    %3607 = vmatprep.subr.mxu0 0.0
    %3608 = vmatpush1.msra.mxu0 0.0
    %3609 = vmatprep.subr.mxu0 0.0
    %3610 = vmatpush1.msra.mxu0 0.0
    %3611 = vmatprep.subr.mxu0 0.0
    %3612 = vmatpush1.msra.mxu0 0.0
    %3613 = vmatprep.subr.mxu0 0.0
    %3614 = vmatpush1.msra.mxu0 %v3536
    %3615 = vmatprep.subr.mxu0 0.0
    %3616 = vmatpush1.msra.mxu0 %v3535
    %3617 = vmatprep.subr.mxu0 0.0
    %3618 = vmatpush1.msra.mxu0 %v3534
    %3619 = vmatprep.subr.mxu0 0.0
    %3620 = vmatpush1.msra.mxu0 %v3533
    %3621 = vmatprep.subr.mxu0 0.0
    %3622 = vmatpush2.msra.mxu0 0.0
    %3623 = vmatprep.subr.mxu0 0.0
    %3624 = vmatpush2.msra.mxu0 0.0
    %3625 = vmatprep.subr.mxu0 0.0
    %3626 = vmatpush2.msra.mxu0 0.0
    %3627 = vmatprep.subr.mxu0 0.0
    %3628 = vmatpush2.msra.mxu0 0.0
    %3629 = vmatprep.subr.mxu0 0.0
    %3630 = vmatpush2.msra.mxu0 0.0
    %3631 = vmatprep.subr.mxu0 0.0
    %3632 = vmatpush2.msra.mxu0 0.0
    %3633 = vmatprep.subr.mxu0 0.0
    %3634 = vmatpush2.msra.mxu0 0.0
    %3635 = vmatprep.subr.mxu0 0.0
    %3636 = vmatpush2.msra.mxu0 0.0
    %3637 = vmatprep.subr.mxu0 0.0
    %3638 = vmatpush2.msra.mxu0 0.0
    %3639 = vmatprep.subr.mxu0 0.0
    %3640 = vmatpush2.msra.mxu0 0.0
    %3641 = vmatprep.subr.mxu0 0.0
    %3642 = vmatpush2.msra.mxu0 0.0
    %3643 = vmatprep.subr.mxu0 0.0
    %3644 = vmatpush2.msra.mxu0 0.0
    %3645 = vmatprep.subr.mxu0 0.0
    %3646 = vmatpush2.msra.mxu0 0.0
    %3647 = vmatprep.subr.mxu0 0.0
    %3648 = vmatpush2.msra.mxu0 0.0
    %3649 = vmatprep.subr.mxu0 0.0
    %3650 = vmatpush2.msra.mxu0 0.0
    %3651 = vmatprep.subr.mxu0 0.0
    %3652 = vmatpush2.msra.mxu0 0.0
    %3653 = vmatprep.mubr.f32.mxu0 0.0
    %3654 = vmatmul.mubr.f32.gmra.mxu0 %v3585
    %v3655 = vpop.f32.mrf.mxu0
    %v3656 = vadd.f32 %v3541, %v3655
    %v3657 = vpop.f32.mrf.mxu0
    %3658 = vmatprep.mubr.f32.mxu0 0.0
    %3659 = vmatmul.mubr.f32.gmra.mxu0 %v3587
    %v3660 = vpop.f32.mrf.mxu0
    %v3661 = vadd.f32 %v3541, %v3660
    %v3662 = vpop.f32.mrf.mxu0
    %3663 = vdwg.mxu0
    %v3664 = vmax.f32 %v3656, 0.0
    %v3665 = vmax.f32 %v3661, 0.0
    %v3666 = vld [vmem:[%s15] sm:$0xff]
    %v3667 = vld [vmem:[%s15 + $0x8] sm:$0xff]
    %v3668 = vld [vmem:[%s15 + $0x10] sm:$0xff]
    %v3669 = vld [vmem:[%s15 + $0x18] sm:$0xff]
    %v3670 = vld [vmem:[%s15 + $0x20] sm:$0xff]
    %v3671 = vld [vmem:[%s15 + $0x28] sm:$0xff]
    %v3672 = vld [vmem:[%s15 + $0x30] sm:$0xff]
    %v3673 = vld [vmem:[%s15 + $0x38] sm:$0xff]
    %3674 = vrot.lane.b32.xlu0 %v3541, 64
    %v3675 = vpop.permute.xlu0 %3674
    %v3678 = vsel %vm392, %v3664, 0
    %v3681 = vsel %vm392, %v3665, 0
    %3683 = vmatprep.subr.mxu0 0.0
    %3684 = vmatpush1.msra.mxu0 0.0
    %3685 = vmatprep.subr.mxu0 0.0
    %3686 = vmatpush1.msra.mxu0 0.0
    %3687 = vmatprep.subr.mxu0 0.0
    %3688 = vmatpush1.msra.mxu0 0.0
    %3689 = vmatprep.subr.mxu0 0.0
    %3690 = vmatpush1.msra.mxu0 0.0
    %3691 = vmatprep.subr.mxu0 0.0
    %3692 = vmatpush1.msra.mxu0 0.0
    %3693 = vmatprep.subr.mxu0 0.0
    %3694 = vmatpush1.msra.mxu0 0.0
    %3695 = vmatprep.subr.mxu0 0.0
    %3696 = vmatpush1.msra.mxu0 0.0
    %3697 = vmatprep.subr.mxu0 0.0
    %3698 = vmatpush1.msra.mxu0 0.0
    %3699 = vmatprep.subr.mxu0 0.0
    %3700 = vmatpush1.msra.mxu0 %v3673
    %3701 = vmatprep.subr.mxu0 0.0
    %3702 = vmatpush1.msra.mxu0 %v3672
    %3703 = vmatprep.subr.mxu0 0.0
    %3704 = vmatpush1.msra.mxu0 %v3671
    %3705 = vmatprep.subr.mxu0 0.0
    %3706 = vmatpush1.msra.mxu0 %v3670
    %3707 = vmatprep.subr.mxu0 0.0
    %3708 = vmatpush1.msra.mxu0 %v3669
    %3709 = vmatprep.subr.mxu0 0.0
    %3710 = vmatpush1.msra.mxu0 %v3668
    %3711 = vmatprep.subr.mxu0 0.0
    %3712 = vmatpush1.msra.mxu0 %v3667
    %3713 = vmatprep.subr.mxu0 0.0
    %3714 = vmatpush1.msra.mxu0 %v3666
    %3715 = vmatprep.subr.mxu0 0.0
    %3716 = vmatpush2.msra.mxu0 0.0
    %3717 = vmatprep.subr.mxu0 0.0
    %3718 = vmatpush2.msra.mxu0 0.0
    %3719 = vmatprep.subr.mxu0 0.0
    %3720 = vmatpush2.msra.mxu0 0.0
    %3721 = vmatprep.subr.mxu0 0.0
    %3722 = vmatpush2.msra.mxu0 0.0
    %3723 = vmatprep.subr.mxu0 0.0
    %3724 = vmatpush2.msra.mxu0 0.0
    %3725 = vmatprep.subr.mxu0 0.0
    %3726 = vmatpush2.msra.mxu0 0.0
    %3727 = vmatprep.subr.mxu0 0.0
    %3728 = vmatpush2.msra.mxu0 0.0
    %3729 = vmatprep.subr.mxu0 0.0
    %3730 = vmatpush2.msra.mxu0 0.0
    %3731 = vmatprep.subr.mxu0 0.0
    %3732 = vmatpush2.msra.mxu0 0.0
    %3733 = vmatprep.subr.mxu0 0.0
    %3734 = vmatpush2.msra.mxu0 0.0
    %3735 = vmatprep.subr.mxu0 0.0
    %3736 = vmatpush2.msra.mxu0 0.0
    %3737 = vmatprep.subr.mxu0 0.0
    %3738 = vmatpush2.msra.mxu0 0.0
    %3739 = vmatprep.subr.mxu0 0.0
    %3740 = vmatpush2.msra.mxu0 0.0
    %3741 = vmatprep.subr.mxu0 0.0
    %3742 = vmatpush2.msra.mxu0 0.0
    %3743 = vmatprep.subr.mxu0 0.0
    %3744 = vmatpush2.msra.mxu0 0.0
    %3745 = vmatprep.subr.mxu0 0.0
    %3746 = vmatpush2.msra.mxu0 0.0
    %3747 = vmatprep.mubr.f32.mxu0 0.0
    %3748 = vmatmul.mubr.f32.gmra.mxu0 %v3678
    %v3749 = vpop.f32.mrf.mxu0
    %v3750 = vadd.f32 %v3675, %v3749
    %v3751 = vpop.f32.mrf.mxu0
    %3752 = vmatprep.mubr.f32.mxu0 0.0
    %3753 = vmatmul.mubr.f32.gmra.mxu0 %v3681
    %v3754 = vpop.f32.mrf.mxu0
    %v3755 = vadd.f32 %v3675, %v3754
    %v3756 = vpop.f32.mrf.mxu0
    %3757 = vdwg.mxu0
    %v3760 = vcombine.high %v3750, %v3750
    %v3762 = vunpack.c.l.s4 1983009808
    %v3763 = vunpack.c.0.s8 %v3762
    %v3764 = vlaneseq
    %v3765 = vshrl.u32 %v3764, 7
    %v3766 = vsub.s32 %v3763, %v3765
    %v3767 = vrot.slane %v3750, %v3766
    %v3769 = vunpack.c.l.s4 1983009808
    %v3770 = vunpack.c.0.s8 %v3769
    %v3771 = vlaneseq
    %v3772 = vshrl.u32 %v3771, 7
    %v3773 = vsub.s32 %v3770, %v3772
    %v3774 = vrot.slane %v3760, %v3773
    %v3775 = vcombine.high %v3767, %v3767
    %v3776 = vcombine.high %v3774, %v3774
    %v3777 = vcombine.high %v3755, %v3755
    %v3779 = vunpack.c.l.s4 1983009808
    %v3780 = vunpack.c.0.s8 %v3779
    %v3781 = vlaneseq
    %v3782 = vshrl.u32 %v3781, 7
    %v3783 = vsub.s32 %v3780, %v3782
    %v3784 = vrot.slane %v3755, %v3783
    %v3786 = vunpack.c.l.s4 1983009808
    %v3787 = vunpack.c.0.s8 %v3786
    %v3788 = vlaneseq
    %v3789 = vshrl.u32 %v3788, 7
    %v3790 = vsub.s32 %v3787, %v3789
    %v3791 = vrot.slane %v3777, %v3790
    %v3792 = vcombine.high %v3784, %v3784
    %v3793 = vcombine.high %v3791, %v3791
    %v3802 = vadd.f32 %v3524, %v3767
    %v3803 = vadd.f32 %v3525, %v3775
    %v3804 = vadd.f32 %v3526, %v3774
    %v3805 = vadd.f32 %v3527, %v3776
    %v3806 = vadd.f32 %v3528, %v3784
    %v3807 = vadd.f32 %v3529, %v3792
    %v3808 = vadd.f32 %v3530, %v3791
    %v3809 = vadd.f32 %v3531, %v3793
    %v3818 = vcombine.low %v3802, %v3803
    %v3819 = vcombine.low %v3804, %v3805
    %v3821 = vunpack.c.l.s4 1983009808
    %v3822 = vunpack.c.0.s8 %v3821
    %v3823 = vlaneseq
    %v3824 = vshrl.u32 %v3823, 7
    %v3825 = vsub.s32 %v3822, %v3824
    %v3826 = vrot.slane %v3818, %v3825
    %v3828 = vunpack.c.l.s4 1983009808
    %v3829 = vunpack.c.0.s8 %v3828
    %v3830 = vlaneseq
    %v3831 = vshrl.u32 %v3830, 7
    %v3832 = vsub.s32 %v3829, %v3831
    %v3833 = vrot.slane %v3819, %v3832
    %v3834 = vcombine.low %v3826, %v3833
    %v3835 = vcombine.low %v3806, %v3807
    %v3836 = vcombine.low %v3808, %v3809
    %v3838 = vunpack.c.l.s4 1983009808
    %v3839 = vunpack.c.0.s8 %v3838
    %v3840 = vlaneseq
    %v3841 = vshrl.u32 %v3840, 7
    %v3842 = vsub.s32 %v3839, %v3841
    %v3843 = vrot.slane %v3835, %v3842
    %v3845 = vunpack.c.l.s4 1983009808
    %v3846 = vunpack.c.0.s8 %v3845
    %v3847 = vlaneseq
    %v3848 = vshrl.u32 %v3847, 7
    %v3849 = vsub.s32 %v3846, %v3848
    %v3850 = vrot.slane %v3836, %v3849
    %v3851 = vcombine.low %v3843, %v3850
    %v3854 = vsel %vm375, %v3834, 0.0
    %3855 = vadd.xlane.f32.xlu0 %v3854
    %v3856 = vpop.xlane.xlu0 %3855
    %v3857 = vsel %vm375, %v3851, 0.0
    %3858 = vadd.xlane.f32.xlu0 %v3857
    %v3859 = vpop.xlane.xlu0 %3858
    %v3860 = vmul.f32 %v3856, %v1517
    %v3861 = vmul.f32 %v3859, %v1517
    %v3862 = vmul.f32 %v3802, %v3802
    %v3863 = vmul.f32 %v3803, %v3803
    %v3864 = vmul.f32 %v3804, %v3804
    %v3865 = vmul.f32 %v3805, %v3805
    %v3866 = vmul.f32 %v3806, %v3806
    %v3867 = vmul.f32 %v3807, %v3807
    %v3868 = vmul.f32 %v3808, %v3808
    %v3869 = vmul.f32 %v3809, %v3809
    %v3878 = vcombine.low %v3862, %v3863
    %v3879 = vcombine.low %v3864, %v3865
    %v3881 = vunpack.c.l.s4 1983009808
    %v3882 = vunpack.c.0.s8 %v3881
    %v3883 = vlaneseq
    %v3884 = vshrl.u32 %v3883, 7
    %v3885 = vsub.s32 %v3882, %v3884
    %v3886 = vrot.slane %v3878, %v3885
    %v3888 = vunpack.c.l.s4 1983009808
    %v3889 = vunpack.c.0.s8 %v3888
    %v3890 = vlaneseq
    %v3891 = vshrl.u32 %v3890, 7
    %v3892 = vsub.s32 %v3889, %v3891
    %v3893 = vrot.slane %v3879, %v3892
    %v3894 = vcombine.low %v3886, %v3893
    %v3895 = vcombine.low %v3866, %v3867
    %v3896 = vcombine.low %v3868, %v3869
    %v3898 = vunpack.c.l.s4 1983009808
    %v3899 = vunpack.c.0.s8 %v3898
    %v3900 = vlaneseq
    %v3901 = vshrl.u32 %v3900, 7
    %v3902 = vsub.s32 %v3899, %v3901
    %v3903 = vrot.slane %v3895, %v3902
    %v3905 = vunpack.c.l.s4 1983009808
    %v3906 = vunpack.c.0.s8 %v3905
    %v3907 = vlaneseq
    %v3908 = vshrl.u32 %v3907, 7
    %v3909 = vsub.s32 %v3906, %v3908
    %v3910 = vrot.slane %v3896, %v3909
    %v3911 = vcombine.low %v3903, %v3910
    %v3914 = vsel %vm375, %v3894, 0.0
    %3915 = vadd.xlane.f32.xlu0 %v3914
    %v3916 = vpop.xlane.xlu0 %3915
    %v3917 = vsel %vm375, %v3911, 0.0
    %3918 = vadd.xlane.f32.xlu0 %v3917
    %v3919 = vpop.xlane.xlu0 %3918
    %v3920 = vmul.f32 %v3916, %v1517
    %v3921 = vmul.f32 %v3919, %v1517
    %v3922 = vmul.f32 %v3860, %v3860
    %v3923 = vmul.f32 %v3861, %v3861
    %v3924 = vsub.f32 %v3920, %v3922
    %v3925 = vsub.f32 %v3921, %v3923
    %v3929 = vunpack.c.l.s4 269488144
    %v3930 = vunpack.c.0.s8 %v3929
    %v3931 = vlaneseq
    %v3932 = vshrl.u32 %v3931, 7
    %v3933 = vsub.s32 %v3930, %v3932
    %v3934 = vrot.slane %v3860, %v3933
    %v3936 = vunpack.c.l.s4 842150450
    %v3937 = vunpack.c.0.s8 %v3936
    %v3938 = vlaneseq
    %v3939 = vshrl.u32 %v3938, 7
    %v3940 = vsub.s32 %v3937, %v3939
    %v3941 = vrot.slane %v3860, %v3940
    %v3943 = vunpack.c.l.s4 1414812756
    %v3944 = vunpack.c.0.s8 %v3943
    %v3945 = vlaneseq
    %v3946 = vshrl.u32 %v3945, 7
    %v3947 = vsub.s32 %v3944, %v3946
    %v3948 = vrot.slane %v3860, %v3947
    %v3950 = vunpack.c.l.s4 1987475062
    %v3951 = vunpack.c.0.s8 %v3950
    %v3952 = vlaneseq
    %v3953 = vshrl.u32 %v3952, 7
    %v3954 = vsub.s32 %v3951, %v3953
    %v3955 = vrot.slane %v3860, %v3954
    %v3957 = vunpack.c.l.s4 269488144
    %v3958 = vunpack.c.0.s8 %v3957
    %v3959 = vlaneseq
    %v3960 = vshrl.u32 %v3959, 7
    %v3961 = vsub.s32 %v3958, %v3960
    %v3962 = vrot.slane %v3861, %v3961
    %v3964 = vunpack.c.l.s4 842150450
    %v3965 = vunpack.c.0.s8 %v3964
    %v3966 = vlaneseq
    %v3967 = vshrl.u32 %v3966, 7
    %v3968 = vsub.s32 %v3965, %v3967
    %v3969 = vrot.slane %v3861, %v3968
    %v3971 = vunpack.c.l.s4 1414812756
    %v3972 = vunpack.c.0.s8 %v3971
    %v3973 = vlaneseq
    %v3974 = vshrl.u32 %v3973, 7
    %v3975 = vsub.s32 %v3972, %v3974
    %v3976 = vrot.slane %v3861, %v3975
    %v3978 = vunpack.c.l.s4 1987475062
    %v3979 = vunpack.c.0.s8 %v3978
    %v3980 = vlaneseq
    %v3981 = vshrl.u32 %v3980, 7
    %v3982 = vsub.s32 %v3979, %v3981
    %v3983 = vrot.slane %v3861, %v3982
    %v3992 = vsub.f32 %v3802, %v3934
    %v3993 = vsub.f32 %v3803, %v3941
    %v3994 = vsub.f32 %v3804, %v3948
    %v3995 = vsub.f32 %v3805, %v3955
    %v3996 = vsub.f32 %v3806, %v3962
    %v3997 = vsub.f32 %v3807, %v3969
    %v3998 = vsub.f32 %v3808, %v3976
    %v3999 = vsub.f32 %v3809, %v3983
    %v4000 = vadd.f32 %v3924, 1e-05
    %v4001 = vadd.f32 %v3925, 1e-05
    %v4002 = vrsqrt.pop %v4000
    %v4003 = vrsqrt.pop %v4001
    %v4007 = vunpack.c.l.s4 269488144
    %v4008 = vunpack.c.0.s8 %v4007
    %v4009 = vlaneseq
    %v4010 = vshrl.u32 %v4009, 7
    %v4011 = vsub.s32 %v4008, %v4010
    %v4012 = vrot.slane %v4002, %v4011
    %v4014 = vunpack.c.l.s4 842150450
    %v4015 = vunpack.c.0.s8 %v4014
    %v4016 = vlaneseq
    %v4017 = vshrl.u32 %v4016, 7
    %v4018 = vsub.s32 %v4015, %v4017
    %v4019 = vrot.slane %v4002, %v4018
    %v4021 = vunpack.c.l.s4 1414812756
    %v4022 = vunpack.c.0.s8 %v4021
    %v4023 = vlaneseq
    %v4024 = vshrl.u32 %v4023, 7
    %v4025 = vsub.s32 %v4022, %v4024
    %v4026 = vrot.slane %v4002, %v4025
    %v4028 = vunpack.c.l.s4 1987475062
    %v4029 = vunpack.c.0.s8 %v4028
    %v4030 = vlaneseq
    %v4031 = vshrl.u32 %v4030, 7
    %v4032 = vsub.s32 %v4029, %v4031
    %v4033 = vrot.slane %v4002, %v4032
    %v4035 = vunpack.c.l.s4 269488144
    %v4036 = vunpack.c.0.s8 %v4035
    %v4037 = vlaneseq
    %v4038 = vshrl.u32 %v4037, 7
    %v4039 = vsub.s32 %v4036, %v4038
    %v4040 = vrot.slane %v4003, %v4039
    %v4042 = vunpack.c.l.s4 842150450
    %v4043 = vunpack.c.0.s8 %v4042
    %v4044 = vlaneseq
    %v4045 = vshrl.u32 %v4044, 7
    %v4046 = vsub.s32 %v4043, %v4045
    %v4047 = vrot.slane %v4003, %v4046
    %v4049 = vunpack.c.l.s4 1414812756
    %v4050 = vunpack.c.0.s8 %v4049
    %v4051 = vlaneseq
    %v4052 = vshrl.u32 %v4051, 7
    %v4053 = vsub.s32 %v4050, %v4052
    %v4054 = vrot.slane %v4003, %v4053
    %v4056 = vunpack.c.l.s4 1987475062
    %v4057 = vunpack.c.0.s8 %v4056
    %v4058 = vlaneseq
    %v4059 = vshrl.u32 %v4058, 7
    %v4060 = vsub.s32 %v4057, %v4059
    %v4061 = vrot.slane %v4003, %v4060
    %v4070 = vmul.f32 %v3992, %v4012
    %v4071 = vmul.f32 %v3993, %v4019
    %v4072 = vmul.f32 %v3994, %v4026
    %v4073 = vmul.f32 %v3995, %v4033
    %v4074 = vmul.f32 %v3996, %v4040
    %v4075 = vmul.f32 %v3997, %v4047
    %v4076 = vmul.f32 %v3998, %v4054
    %v4077 = vmul.f32 %v3999, %v4061
    %v4078 = vlaneseq
    %v4079 = vshrl.u32 %v4078, 7
    %v4080 = vsub.s32 2, %v4079
    %v4081 = vrot.slane %v273, %v4080
    %v4083 = vcombine.high %v4081, %v4081
    %v4085 = vunpack.c.l.s4 1983009808
    %v4086 = vunpack.c.0.s8 %v4085
    %v4087 = vlaneseq
    %v4088 = vshrl.u32 %v4087, 7
    %v4089 = vsub.s32 %v4086, %v4088
    %v4090 = vrot.slane %v4081, %v4089
    %v4092 = vunpack.c.l.s4 1983009808
    %v4093 = vunpack.c.0.s8 %v4092
    %v4094 = vlaneseq
    %v4095 = vshrl.u32 %v4094, 7
    %v4096 = vsub.s32 %v4093, %v4095
    %v4097 = vrot.slane %v4083, %v4096
    %v4098 = vcombine.high %v4090, %v4090
    %v4099 = vcombine.high %v4097, %v4097
    %v4104 = vmul.f32 %v4070, %v4090
    %v4105 = vmul.f32 %v4071, %v4098
    %v4106 = vmul.f32 %v4072, %v4097
    %v4107 = vmul.f32 %v4073, %v4099
    %v4108 = vmul.f32 %v4074, %v4090
    %v4109 = vmul.f32 %v4075, %v4098
    %v4110 = vmul.f32 %v4076, %v4097
    %v4111 = vmul.f32 %v4077, %v4099
    %v4112 = vlaneseq
    %v4113 = vshrl.u32 %v4112, 7
    %v4114 = vsub.s32 2, %v4113
    %v4115 = vrot.slane %v274, %v4114
    %v4117 = vcombine.high %v4115, %v4115
    %v4119 = vunpack.c.l.s4 1983009808
    %v4120 = vunpack.c.0.s8 %v4119
    %v4121 = vlaneseq
    %v4122 = vshrl.u32 %v4121, 7
    %v4123 = vsub.s32 %v4120, %v4122
    %v4124 = vrot.slane %v4115, %v4123
    %v4126 = vunpack.c.l.s4 1983009808
    %v4127 = vunpack.c.0.s8 %v4126
    %v4128 = vlaneseq
    %v4129 = vshrl.u32 %v4128, 7
    %v4130 = vsub.s32 %v4127, %v4129
    %v4131 = vrot.slane %v4117, %v4130
    %v4132 = vcombine.high %v4124, %v4124
    %v4133 = vcombine.high %v4131, %v4131
    %v4138 = vadd.f32 %v4104, %v4124
    %v4139 = vadd.f32 %v4105, %v4132
    %v4140 = vadd.f32 %v4106, %v4131
    %v4141 = vadd.f32 %v4107, %v4133
    %v4142 = vadd.f32 %v4108, %v4124
    %v4143 = vadd.f32 %v4109, %v4132
    %v4144 = vadd.f32 %v4110, %v4131
    %v4145 = vadd.f32 %v4111, %v4133
    %vm4146 = vcmask 254976
    %4147 = vst.msk [vmem:[#allocation25] sm:$0x3] %vm4146, %v4138
    %4148 = vst.msk [vmem:[#allocation25 + $0x2] sm:$0x3] %vm4146, %v4139
    %4149 = vst.msk [vmem:[#allocation25 + $0x4] sm:$0x3] %vm4146, %v4140
    %4150 = vst.msk [vmem:[#allocation25 + $0x6] sm:$0x3] %vm4146, %v4141
    %4151 = vst.msk [vmem:[#allocation25 + $0x8] sm:$0x3] %vm4146, %v4142
    %4152 = vst.msk [vmem:[#allocation25 + $0xa] sm:$0x3] %vm4146, %v4143
    %4153 = vst.msk [vmem:[#allocation25 + $0xc] sm:$0x3] %vm4146, %v4144
    %4154 = vst.msk [vmem:[#allocation25 + $0xe] sm:$0x3] %vm4146, %v4145
    // Predicated region
    $region134: #{decoder_layer_forward.1} parent=1 // pred_check
      _
    $region135: #{decoder_layer_forward.1} parent=1 // pred_check_branch
      %4156 = sbr.rel (0) target = $region137
    $region136: #{decoder_layer_forward.1} parent=1 // pred_region
      %s4158 = ssub.s32 256, 256
      %4159 = vsyncadd [#allocation4], %s4158
      %s4160 = sshll.u32 [#allocation25], 4
      %s4161 = int_to_ptr.vmem [resolvable:$true] %s4160
      %4166 = dma.vmem_to_hbm [thread:$0]  %s4161, 256, %s19, [#allocation4], 32, 32, 2
    $region137: #{decoder_layer_forward.1} parent=1 // pred_fallthru
      _
    // Predicated region
    $region138: #{decoder_layer_forward.1} parent=1 // pred_check
      _
    $region139: #{decoder_layer_forward.1} parent=1 // pred_check_branch
      %4168 = sbr.rel (0) target = $region141
    $region140: #{decoder_layer_forward.1} parent=1 // pred_region
      %4169 = dma.done [#allocation4], 256
    $region141: #{decoder_layer_forward.1} parent=1 // pred_fallthru
      _
    %4170 = vsyncpa [#allocation3], 1
    %4171 = vsyncpa [#allocation6], 1
    %4172 = vsyncpa [#allocation9], 1
    %4173 = vsyncpa [#allocation12], 1
    %4174 = vsyncpa [#allocation15], 1
    %4175 = vsyncpa [#allocation18], 1
    %4176 = vsyncpa [#allocation21], 1
    %4177 = vsyncpa [#allocation24], 1
    %4178 = vsyncpa [#allocation4], 1

</llo_original>
